<compile_context>
chip_gen: v6e
topology: v6e:2x2x1
jax: 0.10.0
libtpu: 0.0.40
codegen_flags: <defaults>
</compile_context>

<pallas_src>
import math

import jax
import jax.numpy as jnp
from jax import lax
from jax.experimental import pallas as pl
from jax.experimental.pallas import tpu as pltpu

_BF16 = jnp.bfloat16


def _sigmoid(x):
    # Same formula in the kernel and in the pure-JAX reference.
    return 1.0 / (1.0 + jnp.exp(-x))


def _pick_block_batch(batch):
    """Single grid step (bm = batch) unless the batch is large enough that a
    split still keeps the MXU M dimension >= 128 per tile (only then is a
    multi-step grid / dual-TC sharding worth the per-step pipeline overhead)."""
    if batch <= 256:
        return batch
    for cand in (256, 128):
        if batch % cand == 0:
            return cand
    return batch


def _vmem_limit_bytes():
    """Generation-aware VMEM budget: ~75% of physical (96 MiB on v5e/v6e,
    48 MiB on v7x), clamped, with a safe fallback."""
    try:
        cap = int(pltpu.get_tpu_info().vmem_capacity_bytes)
        return max(32 * 1024 * 1024, min(cap * 3 // 4, 100 * 1024 * 1024))
    except Exception:
        return 48 * 1024 * 1024


def _prepare_params(params, voca_size):
    """Pad the vocab axis to a lane-dense multiple of 128, fuse the LSTM gate
    weights, and fold the word-embedding table into the input->gate weight:

        w_warm = [w_ih ; w_hh]        shape (E + H, 4H)   (warm-up steps)
        w_cap  = [emb @ w_ih ; w_hh]  shape (v_pad + H, 4H) (caption steps)

    so every LSTM step is a single MXU matmul. Padded prob-layer columns get a
    -1e30 bias so the greedy argmax can never pick a pad column."""
    (w_att, b_att, w_feat, b_feat, emb, w_ih, w_hh, b_ih, b_hh,
     w_prob, b_prob) = params
    emb_dim = emb.shape[1]
    hidden = w_hh.shape[0]
    v_pad = ((voca_size + 127) // 128) * 128

    emb_p = jnp.zeros((v_pad, emb_dim), jnp.float32).at[:voca_size].set(emb)
    emb_ih = jnp.dot(emb_p, w_ih)                        # f32 (v_pad, 4H)
    w_warm = jnp.concatenate([w_ih, w_hh], axis=0)       # (E+H, 4H)
    w_cap = jnp.concatenate([emb_ih, w_hh], axis=0)      # (v_pad+H, 4H)

    w_prob_p = jnp.zeros((hidden, v_pad), jnp.float32).at[:, :voca_size].set(w_prob)
    b_prob_p = jnp.full((1, v_pad), -1e30, jnp.float32).at[0, :voca_size].set(b_prob)
    b_lstm = (b_ih + b_hh).reshape(1, 4 * hidden)

    return (
        w_att.astype(_BF16), b_att.reshape(1, -1).astype(jnp.float32),
        w_feat.astype(_BF16), b_feat.reshape(1, -1).astype(jnp.float32),
        w_warm.astype(_BF16), w_cap.astype(_BF16), b_lstm.astype(jnp.float32),
        w_prob_p.astype(_BF16), b_prob_p.astype(jnp.float32),
    )


def _dvcsg_forward_raw(input_feats, input_atts, prep, caps_length, block_batch=None):
    """Pallas kernel. Returns:
       preds: raw unmasked per-step logits over the padded vocab,
              (batch, caps_length-1, v_pad) float32
       words: greedy word ids per step, (batch, caps_length-1) int32."""
    (w_att, b_att, w_feat, b_feat, w_warm, w_cap, b_lstm, w_prob, b_prob) = prep
    batch, in_c = input_feats.shape
    att_size = input_atts.shape[1]
    emb_dim = w_att.shape[1]
    hidden = w_prob.shape[0]
    v_pad = w_prob.shape[1]
    t_steps = caps_length - 1
    assert t_steps >= 1

    bm = _pick_block_batch(batch) if block_batch is None else block_batch
    # TODO(synk): handle ragged batch remainders (pl.cdiv grid + masking).
    assert batch % bm == 0, "batch must be divisible by the batch tile"

    # Pre-cast activations to bf16 (halves the activation HBM->VMEM DMA).
    feats_bf = input_feats.astype(_BF16)
    atts_bf = input_atts.astype(_BF16)

    def kernel(feats_ref, atts_ref, w_att_ref, b_att_ref, w_feat_ref, b_feat_ref,
               w_warm_ref, w_cap_ref, b_lstm_ref, w_prob_ref, b_prob_ref,
               preds_ref, words_ref):
        H = hidden

        def cell(xh_bf16, w_ref, c):
            # Single fused MXU matmul for all four gates of both x and h paths.
            gates = jnp.dot(xh_bf16, w_ref[...],
                            preferred_element_type=jnp.float32) + b_lstm_ref[...]
            i_g = _sigmoid(gates[:, 0 * H:1 * H])
            f_g = _sigmoid(gates[:, 1 * H:2 * H])
            g_g = jnp.tanh(gates[:, 2 * H:3 * H])
            o_g = _sigmoid(gates[:, 3 * H:4 * H])
            c_n = f_g * c + i_g * g_g
            h_n = o_g * jnp.tanh(c_n)
            return h_n, c_n

        h = jnp.zeros((bm, H), jnp.float32)
        c = jnp.zeros((bm, H), jnp.float32)

        # warm-up 1: attribute embedding -> LSTM
        att = jnp.dot(atts_ref[...], w_att_ref[...],
                      preferred_element_type=jnp.float32) + b_att_ref[...]
        h, c = cell(jnp.concatenate([att.astype(_BF16), h.astype(_BF16)], axis=1),
                    w_warm_ref, c)
        # warm-up 2: feature embedding -> LSTM
        feat = jnp.dot(feats_ref[...], w_feat_ref[...],
                       preferred_element_type=jnp.float32) + b_feat_ref[...]
        h, c = cell(jnp.concatenate([feat.astype(_BF16), h.astype(_BF16)], axis=1),
                    w_warm_ref, c)

        col = lax.broadcasted_iota(jnp.int32, (bm, v_pad), 1)   # hoisted
        col_f = col.astype(jnp.float32)        # exact only for v_pad < 2**24
        it = jnp.ones((bm, 1), jnp.int32)      # <start> token id 1 (eval path)

        # Autoregressive caption loop, fully unrolled (t_steps small & static).
        # TODO(synk): switch to lax.fori_loop with a dynamic preds store for
        #             long captions / huge vocab to bound vreg live ranges.
        for i in range(t_steps):
            # word embedding folded into w_cap: one-hot selects the emb@w_ih row
            onehot = (col == it).astype(_BF16)
            h, c = cell(jnp.concatenate([onehot, h.astype(_BF16)], axis=1),
                        w_cap_ref, c)
            logits = jnp.dot(h.astype(_BF16), w_prob_ref[...],
                             preferred_element_type=jnp.float32) + b_prob_ref[...]
            # 128-aligned, lane-dense, unmasked store of this step's logits.
            preds_ref[:, i * v_pad:(i + 1) * v_pad] = logits
            # greedy word: argmax(log_softmax(logits)) == argmax(logits);
            # min-index-of-max matches torch.max's first-max tie break.
            m = jnp.max(logits, axis=-1, keepdims=True)
            idx = jnp.where(logits == m, col_f, float(v_pad))
            it = jnp.min(idx, axis=-1, keepdims=True).astype(jnp.int32)
            words_ref[:, i:i + 1] = it

    grid = (batch // bm,)
    const = lambda b: (0, 0)
    preds_flat, words = pl.pallas_call(
        kernel,
        out_shape=(jax.ShapeDtypeStruct((batch, t_steps * v_pad), jnp.float32),
                   jax.ShapeDtypeStruct((batch, t_steps), jnp.int32)),
        grid_spec=pltpu.PrefetchScalarGridSpec(
            num_scalar_prefetch=0,
            grid=grid,
            in_specs=[
                pl.BlockSpec((bm, in_c), lambda b: (b, 0)),
                pl.BlockSpec((bm, att_size), lambda b: (b, 0)),
                # constant-index weights: fetched once, not per grid step
                pl.BlockSpec((att_size, emb_dim), const),
                pl.BlockSpec((1, emb_dim), const),
                pl.BlockSpec((in_c, emb_dim), const),
                pl.BlockSpec((1, emb_dim), const),
                pl.BlockSpec((emb_dim + hidden, 4 * hidden), const),
                pl.BlockSpec((v_pad + hidden, 4 * hidden), const),
                pl.BlockSpec((1, 4 * hidden), const),
                pl.BlockSpec((hidden, v_pad), const),
                pl.BlockSpec((1, v_pad), const),
            ],
            out_specs=[
                pl.BlockSpec((bm, t_steps * v_pad), lambda b: (b, 0)),
                pl.BlockSpec((bm, t_steps), lambda b: (b, 0)),
            ],
        ),
        compiler_params=pltpu.CompilerParams(
            dimension_semantics=("parallel",),
            vmem_limit_bytes=_vmem_limit_bytes(),
        ),
    )(feats_bf, atts_bf, w_att, b_att, w_feat, b_feat,
      w_warm, w_cap, b_lstm, w_prob, b_prob)

    # Layout-preserving reshape (no transpose / extra HBM pass).
    return preds_flat.reshape(batch, t_steps, v_pad), words


def _finalize(preds_pad, words, voca_size):
    """Slice off vocab padding and apply the batch-global early-stop zero-masking
    exactly as the PyTorch break + zero-fill does (words come from the kernel)."""
    preds = preds_pad[:, :, :voca_size]
    t_steps = preds.shape[1]
    if t_steps > 1:
        # condition at step i>=1 checks the *input* word = generated word of step i-1
        trig = jnp.sum(words[:, :-1], axis=0) == 0
        dead = jnp.concatenate(
            [jnp.zeros((1,), bool), jnp.cumsum(trig.astype(jnp.int32)) > 0])
    else:
        dead = jnp.zeros((t_steps,), bool)
    words = jnp.where(dead[None, :], 0, words)
    preds = jnp.where(dead[None, :, None], 0.0, preds)
    # mirror PyTorch's squeeze(1) / squeeze(2)
    if t_steps == 1:
        words = words[:, 0]
    if voca_size == 1:
        preds = preds[:, :, 0]
    return words, preds


def dvcsg_forward(input_feats, input_atts, params, caps_length, voca_size,
                  *, block_batch=None):
    """DVCSG.forward (eval path). Returns (outputs, output_preds):
    greedy word ids (int32, (B, caps_length-1)) and raw prob_layer logits
    (float32, (B, caps_length-1, voca_size))."""
    prep = _prepare_params(params, voca_size)
    raw_preds, raw_words = _dvcsg_forward_raw(input_feats, input_atts, prep,
                                              caps_length, block_batch)
    return _finalize(raw_preds, raw_words, voca_size)


def _reference_teacher_forced(input_feats, input_atts, params, fed_words, voca_size):
    """Pure-JAX recomputation of the per-step math from the ORIGINAL (unfused)
    parameters (bf16 weights, f32 accumulation), with the word fed at step i
    given by fed_words[:, i]. Independently validates both the kernel mechanics
    and the emb@w_ih / [w_ih;w_hh] weight fusions."""
    (w_att, b_att, w_feat, b_feat, emb, w_ih, w_hh, b_ih, b_hh,
     w_prob, b_prob) = params
    batch = input_feats.shape[0]
    hidden = w_hh.shape[0]
    t_steps = fed_words.shape[1]
    w_att_b, w_feat_b = w_att.astype(_BF16), w_feat.astype(_BF16)
    w_ih_b, w_hh_b = w_ih.astype(_BF16), w_hh.astype(_BF16)
    emb_b, w_prob_b = emb.astype(_BF16), w_prob.astype(_BF16)
    b_lstm = (b_ih + b_hh)[None, :]

    def cell(x_b, h, c):
        gates = (jnp.dot(x_b, w_ih_b, preferred_element_type=jnp.float32)
                 + jnp.dot(h.astype(_BF16), w_hh_b, preferred_element_type=jnp.float32)
                 + b_lstm)
        i_g = _sigmoid(gates[:, 0:hidden])
        f_g = _sigmoid(gates[:, hidden:2 * hidden])
        g_g = jnp.tanh(gates[:, 2 * hidden:3 * hidden])
        o_g = _sigmoid(gates[:, 3 * hidden:4 * hidden])
        c_n = f_g * c + i_g * g_g
        return o_g * jnp.tanh(c_n), c_n

    h = jnp.zeros((batch, hidden), jnp.float32)
    c = jnp.zeros((batch, hidden), jnp.float32)
    att = jnp.dot(input_atts.astype(_BF16), w_att_b,
                  preferred_element_type=jnp.float32) + b_att[None, :]
    h, c = cell(att.astype(_BF16), h, c)
    feat = jnp.dot(input_feats.astype(_BF16), w_feat_b,
                   preferred_element_type=jnp.float32) + b_feat[None, :]
    h, c = cell(feat.astype(_BF16), h, c)

    preds = []
    for i in range(t_steps):
        wvec = jnp.take(emb_b, fed_words[:, i], axis=0)
        h, c = cell(wvec, h, c)
        logits = jnp.dot(h.astype(_BF16), w_prob_b,
                         preferred_element_type=jnp.float32) + b_prob[None, :]
        preds.append(logits)
    return jnp.stack(preds, axis=1)   # (B, T-1, voca_size)


def init_params(key, in_c, attribute_size, voca_size, embedding_dim, hidden_dim):
    """Deterministic params in the layout the kernel expects (weights stored as
    (in_features, out_features)); Linear layers xavier + zero bias like the module."""
    assert embedding_dim == hidden_dim, "DVCSG feeds (B, embedding_dim) zeros as LSTM state"
    ks = jax.random.split(key, 8)
    E, H, V = embedding_dim, hidden_dim, voca_size

    def xavier(k, fan_in, fan_out):
        std = math.sqrt(2.0 / (fan_in + fan_out))
        return jax.random.normal(k, (fan_in, fan_out), jnp.float32) * std

    w_att = xavier(ks[0], attribute_size, E)
    b_att = jnp.zeros((E,), jnp.float32)
    w_feat = xavier(ks[1], in_c, E)
    b_feat = jnp.zeros((E,), jnp.float32)
    emb = jax.random.normal(ks[2], (V, E), jnp.float32)          # nn.Embedding default
    k_lstm = 1.0 / math.sqrt(H)                                  # nn.LSTMCell default
    w_ih = jax.random.uniform(ks[3], (E, 4 * H), jnp.float32, -k_lstm, k_lstm)
    w_hh = jax.random.uniform(ks[4], (H, 4 * H), jnp.float32, -k_lstm, k_lstm)
    b_ih = jax.random.uniform(ks[5], (4 * H,), jnp.float32, -k_lstm, k_lstm)
    b_hh = jax.random.uniform(ks[6], (4 * H,), jnp.float32, -k_lstm, k_lstm)
    w_prob = xavier(ks[7], H, V)
    b_prob = jnp.zeros((V,), jnp.float32)
    return (w_att, b_att, w_feat, b_feat, emb, w_ih, w_hh, b_ih, b_hh, w_prob, b_prob)


if __name__ == "__main__":
    key = jax.random.PRNGKey(0)
    k_feat, k_att, k_par = jax.random.split(key, 3)

    batch, in_c, attribute_size = 16, 128, 128
    embedding_dim = hidden_dim = 128
    voca_size, caps_length = 20, 8          # vocab padded to 128 internally
    t_steps = caps_length - 1

    input_feats = jax.random.normal(k_feat, (batch, in_c), jnp.float32)
    input_atts = jax.random.normal(k_att, (batch, attribute_size), jnp.float32)
    params = init_params(k_par, in_c, attribute_size, voca_size,
                         embedding_dim, hidden_dim)

    # public forward: batch <= 256 -> single grid step (whole-batch MXU tiles)
    outputs, output_preds = dvcsg_forward(input_feats, input_atts, params,
                                          caps_length, voca_size)
    outputs, output_preds = jax.block_until_ready((outputs, output_preds))
    assert outputs.shape == (batch, t_steps)
    assert output_preds.shape == (batch, t_steps, voca_size)

    # --- correctness check 1: per-step math vs pure-JAX unfused reference ------
    prep = _prepare_params(params, voca_size)
    raw_preds, raw_words = _dvcsg_forward_raw(input_feats, input_atts, prep, caps_length)
    fed = jnp.concatenate([jnp.ones((batch, 1), jnp.int32), raw_words[:, :-1]], axis=1)
    ref = _reference_teacher_forced(input_feats, input_atts, params, fed, voca_size)
    assert jnp.allclose(raw_preds[:, :, :voca_size], ref, atol=5e-2, rtol=5e-2)
    # kernel-emitted greedy words must equal argmax of its own logits
    assert jnp.array_equal(
        raw_words, jnp.argmax(raw_preds[:, :, :voca_size], axis=-1).astype(jnp.int32))

    # --- correctness check 2: public wrapper consistent with the raw outputs ---
    exp_words, exp_preds = _finalize(raw_preds, raw_words, voca_size)
    assert jnp.array_equal(outputs, exp_words)
    assert jnp.array_equal(output_preds, exp_preds)

    # --- correctness check 3: early-stop (break + zero-fill) masking -----------
    t_targets = jnp.array([[1, 0, 2, 1], [2, 0, 1, 1]], jnp.int32)
    t_preds = jax.nn.one_hot(t_targets, 3, dtype=jnp.float32) * 5.0 + 0.25
    t_words, t_masked = _finalize(t_preds, t_targets, 3)
    assert jnp.array_equal(t_words, jnp.array([[1, 0, 0, 0], [2, 0, 0, 0]], jnp.int32))
    assert jnp.array_equal(t_masked, t_preds.at[:, 2:, :].set(0.0))

    print("KERNEL_OK")
</pallas_src>

<mosaic_0001>
module attributes {stable_mosaic.version = 11 : i64} {
  func.func @kernel(%arg0: i32, %arg1: memref<16x128xbf16, #tpu.memory_space<vmem>>, %arg2: memref<16x128xbf16, #tpu.memory_space<vmem>>, %arg3: memref<128x128xbf16, #tpu.memory_space<vmem>>, %arg4: memref<1x128xf32, #tpu.memory_space<vmem>>, %arg5: memref<128x128xbf16, #tpu.memory_space<vmem>>, %arg6: memref<1x128xf32, #tpu.memory_space<vmem>>, %arg7: memref<256x512xbf16, #tpu.memory_space<vmem>>, %arg8: memref<256x512xbf16, #tpu.memory_space<vmem>>, %arg9: memref<1x512xf32, #tpu.memory_space<vmem>>, %arg10: memref<128x128xbf16, #tpu.memory_space<vmem>>, %arg11: memref<1x128xf32, #tpu.memory_space<vmem>>, %arg12: memref<16x896xf32, #tpu.memory_space<vmem>>, %arg13: memref<16x7xi32, #tpu.memory_space<vmem>>) attributes {dimension_semantics = [#tpu.dimension_semantics<parallel>], iteration_bounds = array<i64: 1>, scalar_prefetch = 0 : i64, scratch_operands = 0 : i64, tpu.core_type = #tpu.core_type<tc>, window_params = [{transform_indices = @transform_0, window_bounds = array<i64: 16, 128>}, {transform_indices = @transform_1, window_bounds = array<i64: 16, 128>}, {pipeline_mode = #tpu.pipeline_mode<synchronous>, transform_indices = @transform_2, window_bounds = array<i64: 128, 128>}, {pipeline_mode = #tpu.pipeline_mode<synchronous>, transform_indices = @transform_3, window_bounds = array<i64: 1, 128>}, {pipeline_mode = #tpu.pipeline_mode<synchronous>, transform_indices = @transform_4, window_bounds = array<i64: 128, 128>}, {pipeline_mode = #tpu.pipeline_mode<synchronous>, transform_indices = @transform_5, window_bounds = array<i64: 1, 128>}, {pipeline_mode = #tpu.pipeline_mode<synchronous>, transform_indices = @transform_6, window_bounds = array<i64: 256, 512>}, {pipeline_mode = #tpu.pipeline_mode<synchronous>, transform_indices = @transform_7, window_bounds = array<i64: 256, 512>}, {pipeline_mode = #tpu.pipeline_mode<synchronous>, transform_indices = @transform_8, window_bounds = array<i64: 1, 512>}, {pipeline_mode = #tpu.pipeline_mode<synchronous>, transform_indices = @transform_9, window_bounds = array<i64: 128, 128>}, {pipeline_mode = #tpu.pipeline_mode<synchronous>, transform_indices = @transform_10, window_bounds = array<i64: 1, 128>}, {transform_indices = @transform_11, window_bounds = array<i64: 16, 896>}, {transform_indices = @transform_12, window_bounds = array<i64: 16, 7>}]} {
    %cst = arith.constant 0.000000e+00 : f32
    %0 = vector.broadcast %cst : f32 to vector<16x128xf32>
    %cst_0 = arith.constant 0.000000e+00 : f32
    %1 = vector.broadcast %cst_0 : f32 to vector<16x128xf32>
    %c0 = arith.constant 0 : index
    %c0_1 = arith.constant 0 : index
    %2 = vector.load %arg2[%c0, %c0_1] : memref<16x128xbf16, #tpu.memory_space<vmem>>, vector<16x128xbf16>
    %c0_2 = arith.constant 0 : index
    %c0_3 = arith.constant 0 : index
    %3 = vector.load %arg3[%c0_2, %c0_3] : memref<128x128xbf16, #tpu.memory_space<vmem>>, vector<128x128xbf16>
    %cst_4 = arith.constant dense<0.000000e+00> : vector<16x128xf32>
    %4 = tpu.matmul %2, %3, %cst_4 {dimension_numbers = #tpu.dot_dimension_numbers<[1], [0], [0], [1], [0, 0, 1, 1], [], []>} : vector<16x128xbf16>, vector<128x128xbf16>, vector<16x128xf32> -> vector<16x128xf32>
    %c0_5 = arith.constant 0 : index
    %c0_6 = arith.constant 0 : index
    %5 = vector.load %arg4[%c0_5, %c0_6] : memref<1x128xf32, #tpu.memory_space<vmem>>, vector<1x128xf32>
    %6 = vector.broadcast %5 : vector<1x128xf32> to vector<16x128xf32>
    %7 = arith.addf %4, %6 : vector<16x128xf32>
    %8 = arith.truncf %7 : vector<16x128xf32> to vector<16x128xbf16>
    %9 = arith.truncf %0 : vector<16x128xf32> to vector<16x128xbf16>
    %10 = tpu.concatenate %8, %9 in 1 : vector<16x128xbf16>, vector<16x128xbf16> -> vector<16x256xbf16>
    %c0_7 = arith.constant 0 : index
    %c0_8 = arith.constant 0 : index
    %11 = vector.load %arg7[%c0_7, %c0_8] : memref<256x512xbf16, #tpu.memory_space<vmem>>, vector<256x512xbf16>
    %cst_9 = arith.constant dense<0.000000e+00> : vector<16x512xf32>
    %12 = tpu.matmul %10, %11, %cst_9 {dimension_numbers = #tpu.dot_dimension_numbers<[1], [0], [0], [1], [0, 0, 1, 1], [], []>} : vector<16x256xbf16>, vector<256x512xbf16>, vector<16x512xf32> -> vector<16x512xf32>
    %c0_10 = arith.constant 0 : index
    %c0_11 = arith.constant 0 : index
    %13 = vector.load %arg9[%c0_10, %c0_11] : memref<1x512xf32, #tpu.memory_space<vmem>>, vector<1x512xf32>
    %14 = vector.broadcast %13 : vector<1x512xf32> to vector<16x512xf32>
    %15 = arith.addf %12, %14 : vector<16x512xf32>
    %16 = vector.extract_strided_slice %15 {offsets = [0, 0], sizes = [16, 128], strides = [1, 1]} : vector<16x512xf32> to vector<16x128xf32>
    %cst_12 = arith.constant 0.000000e+00 : f32
    %17 = vector.broadcast %cst_12 : f32 to vector<16x128xf32>
    %18 = arith.subf %17, %16 : vector<16x128xf32>
    %19 = math.exp %18 : vector<16x128xf32>
    %cst_13 = arith.constant 1.000000e+00 : f32
    %20 = vector.broadcast %cst_13 : f32 to vector<16x128xf32>
    %21 = arith.addf %20, %19 : vector<16x128xf32>
    %cst_14 = arith.constant 1.000000e+00 : f32
    %22 = vector.broadcast %cst_14 : f32 to vector<16x128xf32>
    %23 = arith.divf %22, %21 : vector<16x128xf32>
    %24 = vector.extract_strided_slice %15 {offsets = [0, 128], sizes = [16, 128], strides = [1, 1]} : vector<16x512xf32> to vector<16x128xf32>
    %cst_15 = arith.constant 0.000000e+00 : f32
    %25 = vector.broadcast %cst_15 : f32 to vector<16x128xf32>
    %26 = arith.subf %25, %24 : vector<16x128xf32>
    %27 = math.exp %26 : vector<16x128xf32>
    %cst_16 = arith.constant 1.000000e+00 : f32
    %28 = vector.broadcast %cst_16 : f32 to vector<16x128xf32>
    %29 = arith.addf %28, %27 : vector<16x128xf32>
    %cst_17 = arith.constant 1.000000e+00 : f32
    %30 = vector.broadcast %cst_17 : f32 to vector<16x128xf32>
    %31 = arith.divf %30, %29 : vector<16x128xf32>
    %32 = vector.extract_strided_slice %15 {offsets = [0, 256], sizes = [16, 128], strides = [1, 1]} : vector<16x512xf32> to vector<16x128xf32>
    %33 = math.tanh %32 : vector<16x128xf32>
    %34 = vector.extract_strided_slice %15 {offsets = [0, 384], sizes = [16, 128], strides = [1, 1]} : vector<16x512xf32> to vector<16x128xf32>
    %cst_18 = arith.constant 0.000000e+00 : f32
    %35 = vector.broadcast %cst_18 : f32 to vector<16x128xf32>
    %36 = arith.subf %35, %34 : vector<16x128xf32>
    %37 = math.exp %36 : vector<16x128xf32>
    %cst_19 = arith.constant 1.000000e+00 : f32
    %38 = vector.broadcast %cst_19 : f32 to vector<16x128xf32>
    %39 = arith.addf %38, %37 : vector<16x128xf32>
    %cst_20 = arith.constant 1.000000e+00 : f32
    %40 = vector.broadcast %cst_20 : f32 to vector<16x128xf32>
    %41 = arith.divf %40, %39 : vector<16x128xf32>
    %42 = arith.mulf %31, %1 : vector<16x128xf32>
    %43 = arith.mulf %23, %33 : vector<16x128xf32>
    %44 = arith.addf %42, %43 : vector<16x128xf32>
    %45 = math.tanh %44 : vector<16x128xf32>
    %46 = arith.mulf %41, %45 : vector<16x128xf32>
    %c0_21 = arith.constant 0 : index
    %c0_22 = arith.constant 0 : index
    %47 = vector.load %arg1[%c0_21, %c0_22] : memref<16x128xbf16, #tpu.memory_space<vmem>>, vector<16x128xbf16>
    %c0_23 = arith.constant 0 : index
    %c0_24 = arith.constant 0 : index
    %48 = vector.load %arg5[%c0_23, %c0_24] : memref<128x128xbf16, #tpu.memory_space<vmem>>, vector<128x128xbf16>
    %cst_25 = arith.constant dense<0.000000e+00> : vector<16x128xf32>
    %49 = tpu.matmul %47, %48, %cst_25 {dimension_numbers = #tpu.dot_dimension_numbers<[1], [0], [0], [1], [0, 0, 1, 1], [], []>} : vector<16x128xbf16>, vector<128x128xbf16>, vector<16x128xf32> -> vector<16x128xf32>
    %c0_26 = arith.constant 0 : index
    %c0_27 = arith.constant 0 : index
    %50 = vector.load %arg6[%c0_26, %c0_27] : memref<1x128xf32, #tpu.memory_space<vmem>>, vector<1x128xf32>
    %51 = vector.broadcast %50 : vector<1x128xf32> to vector<16x128xf32>
    %52 = arith.addf %49, %51 : vector<16x128xf32>
    %53 = arith.truncf %52 : vector<16x128xf32> to vector<16x128xbf16>
    %54 = arith.truncf %46 : vector<16x128xf32> to vector<16x128xbf16>
    %55 = tpu.concatenate %53, %54 in 1 : vector<16x128xbf16>, vector<16x128xbf16> -> vector<16x256xbf16>
    %c0_28 = arith.constant 0 : index
    %c0_29 = arith.constant 0 : index
    %56 = vector.load %arg7[%c0_28, %c0_29] : memref<256x512xbf16, #tpu.memory_space<vmem>>, vector<256x512xbf16>
    %cst_30 = arith.constant dense<0.000000e+00> : vector<16x512xf32>
    %57 = tpu.matmul %55, %56, %cst_30 {dimension_numbers = #tpu.dot_dimension_numbers<[1], [0], [0], [1], [0, 0, 1, 1], [], []>} : vector<16x256xbf16>, vector<256x512xbf16>, vector<16x512xf32> -> vector<16x512xf32>
    %c0_31 = arith.constant 0 : index
    %c0_32 = arith.constant 0 : index
    %58 = vector.load %arg9[%c0_31, %c0_32] : memref<1x512xf32, #tpu.memory_space<vmem>>, vector<1x512xf32>
    %59 = vector.broadcast %58 : vector<1x512xf32> to vector<16x512xf32>
    %60 = arith.addf %57, %59 : vector<16x512xf32>
    %61 = vector.extract_strided_slice %60 {offsets = [0, 0], sizes = [16, 128], strides = [1, 1]} : vector<16x512xf32> to vector<16x128xf32>
    %cst_33 = arith.constant 0.000000e+00 : f32
    %62 = vector.broadcast %cst_33 : f32 to vector<16x128xf32>
    %63 = arith.subf %62, %61 : vector<16x128xf32>
    %64 = math.exp %63 : vector<16x128xf32>
    %cst_34 = arith.constant 1.000000e+00 : f32
    %65 = vector.broadcast %cst_34 : f32 to vector<16x128xf32>
    %66 = arith.addf %65, %64 : vector<16x128xf32>
    %cst_35 = arith.constant 1.000000e+00 : f32
    %67 = vector.broadcast %cst_35 : f32 to vector<16x128xf32>
    %68 = arith.divf %67, %66 : vector<16x128xf32>
    %69 = vector.extract_strided_slice %60 {offsets = [0, 128], sizes = [16, 128], strides = [1, 1]} : vector<16x512xf32> to vector<16x128xf32>
    %cst_36 = arith.constant 0.000000e+00 : f32
    %70 = vector.broadcast %cst_36 : f32 to vector<16x128xf32>
    %71 = arith.subf %70, %69 : vector<16x128xf32>
    %72 = math.exp %71 : vector<16x128xf32>
    %cst_37 = arith.constant 1.000000e+00 : f32
    %73 = vector.broadcast %cst_37 : f32 to vector<16x128xf32>
    %74 = arith.addf %73, %72 : vector<16x128xf32>
    %cst_38 = arith.constant 1.000000e+00 : f32
    %75 = vector.broadcast %cst_38 : f32 to vector<16x128xf32>
    %76 = arith.divf %75, %74 : vector<16x128xf32>
    %77 = vector.extract_strided_slice %60 {offsets = [0, 256], sizes = [16, 128], strides = [1, 1]} : vector<16x512xf32> to vector<16x128xf32>
    %78 = math.tanh %77 : vector<16x128xf32>
    %79 = vector.extract_strided_slice %60 {offsets = [0, 384], sizes = [16, 128], strides = [1, 1]} : vector<16x512xf32> to vector<16x128xf32>
    %cst_39 = arith.constant 0.000000e+00 : f32
    %80 = vector.broadcast %cst_39 : f32 to vector<16x128xf32>
    %81 = arith.subf %80, %79 : vector<16x128xf32>
    %82 = math.exp %81 : vector<16x128xf32>
    %cst_40 = arith.constant 1.000000e+00 : f32
    %83 = vector.broadcast %cst_40 : f32 to vector<16x128xf32>
    %84 = arith.addf %83, %82 : vector<16x128xf32>
    %cst_41 = arith.constant 1.000000e+00 : f32
    %85 = vector.broadcast %cst_41 : f32 to vector<16x128xf32>
    %86 = arith.divf %85, %84 : vector<16x128xf32>
    %87 = arith.mulf %76, %44 : vector<16x128xf32>
    %88 = arith.mulf %68, %78 : vector<16x128xf32>
    %89 = arith.addf %87, %88 : vector<16x128xf32>
    %90 = math.tanh %89 : vector<16x128xf32>
    %91 = arith.mulf %86, %90 : vector<16x128xf32>
    %92 = tpu.iota {dimensions = array<i32: 1>} : vector<16x128xi32>
    %93 = arith.sitofp %92 : vector<16x128xi32> to vector<16x128xf32>
    %c1_i32 = arith.constant 1 : i32
    %94 = vector.broadcast %c1_i32 : i32 to vector<16x1xi32>
    %95 = vector.broadcast %94 : vector<16x1xi32> to vector<16x128xi32>
    %96 = arith.cmpi eq, %92, %95 : vector<16x128xi32>
    %97 = arith.extui %96 : vector<16x128xi1> to vector<16x128xi32>
    %98 = arith.sitofp %97 : vector<16x128xi32> to vector<16x128xf32>
    %99 = arith.truncf %98 : vector<16x128xf32> to vector<16x128xbf16>
    %100 = arith.truncf %91 : vector<16x128xf32> to vector<16x128xbf16>
    %101 = tpu.concatenate %99, %100 in 1 : vector<16x128xbf16>, vector<16x128xbf16> -> vector<16x256xbf16>
    %c0_42 = arith.constant 0 : index
    %c0_43 = arith.constant 0 : index
    %102 = vector.load %arg8[%c0_42, %c0_43] : memref<256x512xbf16, #tpu.memory_space<vmem>>, vector<256x512xbf16>
    %cst_44 = arith.constant dense<0.000000e+00> : vector<16x512xf32>
    %103 = tpu.matmul %101, %102, %cst_44 {dimension_numbers = #tpu.dot_dimension_numbers<[1], [0], [0], [1], [0, 0, 1, 1], [], []>} : vector<16x256xbf16>, vector<256x512xbf16>, vector<16x512xf32> -> vector<16x512xf32>
    %c0_45 = arith.constant 0 : index
    %c0_46 = arith.constant 0 : index
    %104 = vector.load %arg9[%c0_45, %c0_46] : memref<1x512xf32, #tpu.memory_space<vmem>>, vector<1x512xf32>
    %105 = vector.broadcast %104 : vector<1x512xf32> to vector<16x512xf32>
    %106 = arith.addf %103, %105 : vector<16x512xf32>
    %107 = vector.extract_strided_slice %106 {offsets = [0, 0], sizes = [16, 128], strides = [1, 1]} : vector<16x512xf32> to vector<16x128xf32>
    %cst_47 = arith.constant 0.000000e+00 : f32
    %108 = vector.broadcast %cst_47 : f32 to vector<16x128xf32>
    %109 = arith.subf %108, %107 : vector<16x128xf32>
    %110 = math.exp %109 : vector<16x128xf32>
    %cst_48 = arith.constant 1.000000e+00 : f32
    %111 = vector.broadcast %cst_48 : f32 to vector<16x128xf32>
    %112 = arith.addf %111, %110 : vector<16x128xf32>
    %cst_49 = arith.constant 1.000000e+00 : f32
    %113 = vector.broadcast %cst_49 : f32 to vector<16x128xf32>
    %114 = arith.divf %113, %112 : vector<16x128xf32>
    %115 = vector.extract_strided_slice %106 {offsets = [0, 128], sizes = [16, 128], strides = [1, 1]} : vector<16x512xf32> to vector<16x128xf32>
    %cst_50 = arith.constant 0.000000e+00 : f32
    %116 = vector.broadcast %cst_50 : f32 to vector<16x128xf32>
    %117 = arith.subf %116, %115 : vector<16x128xf32>
    %118 = math.exp %117 : vector<16x128xf32>
    %cst_51 = arith.constant 1.000000e+00 : f32
    %119 = vector.broadcast %cst_51 : f32 to vector<16x128xf32>
    %120 = arith.addf %119, %118 : vector<16x128xf32>
    %cst_52 = arith.constant 1.000000e+00 : f32
    %121 = vector.broadcast %cst_52 : f32 to vector<16x128xf32>
    %122 = arith.divf %121, %120 : vector<16x128xf32>
    %123 = vector.extract_strided_slice %106 {offsets = [0, 256], sizes = [16, 128], strides = [1, 1]} : vector<16x512xf32> to vector<16x128xf32>
    %124 = math.tanh %123 : vector<16x128xf32>
    %125 = vector.extract_strided_slice %106 {offsets = [0, 384], sizes = [16, 128], strides = [1, 1]} : vector<16x512xf32> to vector<16x128xf32>
    %cst_53 = arith.constant 0.000000e+00 : f32
    %126 = vector.broadcast %cst_53 : f32 to vector<16x128xf32>
    %127 = arith.subf %126, %125 : vector<16x128xf32>
    %128 = math.exp %127 : vector<16x128xf32>
    %cst_54 = arith.constant 1.000000e+00 : f32
    %129 = vector.broadcast %cst_54 : f32 to vector<16x128xf32>
    %130 = arith.addf %129, %128 : vector<16x128xf32>
    %cst_55 = arith.constant 1.000000e+00 : f32
    %131 = vector.broadcast %cst_55 : f32 to vector<16x128xf32>
    %132 = arith.divf %131, %130 : vector<16x128xf32>
    %133 = arith.mulf %122, %89 : vector<16x128xf32>
    %134 = arith.mulf %114, %124 : vector<16x128xf32>
    %135 = arith.addf %133, %134 : vector<16x128xf32>
    %136 = math.tanh %135 : vector<16x128xf32>
    %137 = arith.mulf %132, %136 : vector<16x128xf32>
    %138 = arith.truncf %137 : vector<16x128xf32> to vector<16x128xbf16>
    %c0_56 = arith.constant 0 : index
    %c0_57 = arith.constant 0 : index
    %139 = vector.load %arg10[%c0_56, %c0_57] : memref<128x128xbf16, #tpu.memory_space<vmem>>, vector<128x128xbf16>
    %cst_58 = arith.constant dense<0.000000e+00> : vector<16x128xf32>
    %140 = tpu.matmul %138, %139, %cst_58 {dimension_numbers = #tpu.dot_dimension_numbers<[1], [0], [0], [1], [0, 0, 1, 1], [], []>} : vector<16x128xbf16>, vector<128x128xbf16>, vector<16x128xf32> -> vector<16x128xf32>
    %c0_59 = arith.constant 0 : index
    %c0_60 = arith.constant 0 : index
    %141 = vector.load %arg11[%c0_59, %c0_60] : memref<1x128xf32, #tpu.memory_space<vmem>>, vector<1x128xf32>
    %142 = vector.broadcast %141 : vector<1x128xf32> to vector<16x128xf32>
    %143 = arith.addf %140, %142 : vector<16x128xf32>
    %c0_61 = arith.constant 0 : index
    %c0_62 = arith.constant 0 : index
    %144 = vector.load %arg12[%c0_61, %c0_62] : memref<16x896xf32, #tpu.memory_space<vmem>>, vector<16x128xf32>
    tpu.vector_store %arg12[%c0_61, %c0_62], %143 {strides = array<i32>} : memref<16x896xf32, #tpu.memory_space<vmem>>, vector<16x128xf32>,
    %cst_63 = arith.constant dense<0xFF800000> : vector<16xf32>
    %145 = vector.multi_reduction <maximumf>, %143, %cst_63 [1] : vector<16x128xf32> to vector<16xf32>
    %146 = vector.shape_cast %145 : vector<16xf32> to vector<16x1xf32>
    %147 = vector.broadcast %146 : vector<16x1xf32> to vector<16x128xf32>
    %148 = arith.cmpf oeq, %143, %147 : vector<16x128xf32>
    %cst_64 = arith.constant 1.280000e+02 : f32
    %149 = vector.broadcast %cst_64 : f32 to vector<16x128xf32>
    %150 = arith.select %148, %93, %149 : vector<16x128xi1>, vector<16x128xf32>
    %cst_65 = arith.constant dense<0x7F800000> : vector<16xf32>
    %151 = vector.multi_reduction <minimumf>, %150, %cst_65 [1] : vector<16x128xf32> to vector<16xf32>
    %152 = vector.shape_cast %151 : vector<16xf32> to vector<16x1xf32>
    %153 = arith.fptosi %152 : vector<16x1xf32> to vector<16x1xi32>
    %c0_66 = arith.constant 0 : index
    %c0_67 = arith.constant 0 : index
    %154 = vector.load %arg13[%c0_66, %c0_67] : memref<16x7xi32, #tpu.memory_space<vmem>>, vector<16x1xi32>
    tpu.vector_store %arg13[%c0_66, %c0_67], %153 {strides = array<i32>} : memref<16x7xi32, #tpu.memory_space<vmem>>, vector<16x1xi32>,
    %155 = vector.broadcast %153 : vector<16x1xi32> to vector<16x128xi32>
    %156 = arith.cmpi eq, %92, %155 : vector<16x128xi32>
    %157 = arith.extui %156 : vector<16x128xi1> to vector<16x128xi32>
    %158 = arith.sitofp %157 : vector<16x128xi32> to vector<16x128xf32>
    %159 = arith.truncf %158 : vector<16x128xf32> to vector<16x128xbf16>
    %160 = arith.truncf %137 : vector<16x128xf32> to vector<16x128xbf16>
    %161 = tpu.concatenate %159, %160 in 1 : vector<16x128xbf16>, vector<16x128xbf16> -> vector<16x256xbf16>
    %c0_68 = arith.constant 0 : index
    %c0_69 = arith.constant 0 : index
    %162 = vector.load %arg8[%c0_68, %c0_69] : memref<256x512xbf16, #tpu.memory_space<vmem>>, vector<256x512xbf16>
    %cst_70 = arith.constant dense<0.000000e+00> : vector<16x512xf32>
    %163 = tpu.matmul %161, %162, %cst_70 {dimension_numbers = #tpu.dot_dimension_numbers<[1], [0], [0], [1], [0, 0, 1, 1], [], []>} : vector<16x256xbf16>, vector<256x512xbf16>, vector<16x512xf32> -> vector<16x512xf32>
    %c0_71 = arith.constant 0 : index
    %c0_72 = arith.constant 0 : index
    %164 = vector.load %arg9[%c0_71, %c0_72] : memref<1x512xf32, #tpu.memory_space<vmem>>, vector<1x512xf32>
    %165 = vector.broadcast %164 : vector<1x512xf32> to vector<16x512xf32>
    %166 = arith.addf %163, %165 : vector<16x512xf32>
    %167 = vector.extract_strided_slice %166 {offsets = [0, 0], sizes = [16, 128], strides = [1, 1]} : vector<16x512xf32> to vector<16x128xf32>
    %cst_73 = arith.constant 0.000000e+00 : f32
    %168 = vector.broadcast %cst_73 : f32 to vector<16x128xf32>
    %169 = arith.subf %168, %167 : vector<16x128xf32>
    %170 = math.exp %169 : vector<16x128xf32>
    %cst_74 = arith.constant 1.000000e+00 : f32
    %171 = vector.broadcast %cst_74 : f32 to vector<16x128xf32>
    %172 = arith.addf %171, %170 : vector<16x128xf32>
    %cst_75 = arith.constant 1.000000e+00 : f32
    %173 = vector.broadcast %cst_75 : f32 to vector<16x128xf32>
    %174 = arith.divf %173, %172 : vector<16x128xf32>
    %175 = vector.extract_strided_slice %166 {offsets = [0, 128], sizes = [16, 128], strides = [1, 1]} : vector<16x512xf32> to vector<16x128xf32>
    %cst_76 = arith.constant 0.000000e+00 : f32
    %176 = vector.broadcast %cst_76 : f32 to vector<16x128xf32>
    %177 = arith.subf %176, %175 : vector<16x128xf32>
    %178 = math.exp %177 : vector<16x128xf32>
    %cst_77 = arith.constant 1.000000e+00 : f32
    %179 = vector.broadcast %cst_77 : f32 to vector<16x128xf32>
    %180 = arith.addf %179, %178 : vector<16x128xf32>
    %cst_78 = arith.constant 1.000000e+00 : f32
    %181 = vector.broadcast %cst_78 : f32 to vector<16x128xf32>
    %182 = arith.divf %181, %180 : vector<16x128xf32>
    %183 = vector.extract_strided_slice %166 {offsets = [0, 256], sizes = [16, 128], strides = [1, 1]} : vector<16x512xf32> to vector<16x128xf32>
    %184 = math.tanh %183 : vector<16x128xf32>
    %185 = vector.extract_strided_slice %166 {offsets = [0, 384], sizes = [16, 128], strides = [1, 1]} : vector<16x512xf32> to vector<16x128xf32>
    %cst_79 = arith.constant 0.000000e+00 : f32
    %186 = vector.broadcast %cst_79 : f32 to vector<16x128xf32>
    %187 = arith.subf %186, %185 : vector<16x128xf32>
    %188 = math.exp %187 : vector<16x128xf32>
    %cst_80 = arith.constant 1.000000e+00 : f32
    %189 = vector.broadcast %cst_80 : f32 to vector<16x128xf32>
    %190 = arith.addf %189, %188 : vector<16x128xf32>
    %cst_81 = arith.constant 1.000000e+00 : f32
    %191 = vector.broadcast %cst_81 : f32 to vector<16x128xf32>
    %192 = arith.divf %191, %190 : vector<16x128xf32>
    %193 = arith.mulf %182, %135 : vector<16x128xf32>
    %194 = arith.mulf %174, %184 : vector<16x128xf32>
    %195 = arith.addf %193, %194 : vector<16x128xf32>
    %196 = math.tanh %195 : vector<16x128xf32>
    %197 = arith.mulf %192, %196 : vector<16x128xf32>
    %198 = arith.truncf %197 : vector<16x128xf32> to vector<16x128xbf16>
    %c0_82 = arith.constant 0 : index
    %c0_83 = arith.constant 0 : index
    %199 = vector.load %arg10[%c0_82, %c0_83] : memref<128x128xbf16, #tpu.memory_space<vmem>>, vector<128x128xbf16>
    %cst_84 = arith.constant dense<0.000000e+00> : vector<16x128xf32>
    %200 = tpu.matmul %198, %199, %cst_84 {dimension_numbers = #tpu.dot_dimension_numbers<[1], [0], [0], [1], [0, 0, 1, 1], [], []>} : vector<16x128xbf16>, vector<128x128xbf16>, vector<16x128xf32> -> vector<16x128xf32>
    %c0_85 = arith.constant 0 : index
    %c0_86 = arith.constant 0 : index
    %201 = vector.load %arg11[%c0_85, %c0_86] : memref<1x128xf32, #tpu.memory_space<vmem>>, vector<1x128xf32>
    %202 = vector.broadcast %201 : vector<1x128xf32> to vector<16x128xf32>
    %203 = arith.addf %200, %202 : vector<16x128xf32>
    %c0_87 = arith.constant 0 : index
    %c128 = arith.constant 128 : index
    %204 = vector.load %arg12[%c0_87, %c128] : memref<16x896xf32, #tpu.memory_space<vmem>>, vector<16x128xf32>
    tpu.vector_store %arg12[%c0_87, %c128], %203 {strides = array<i32>} : memref<16x896xf32, #tpu.memory_space<vmem>>, vector<16x128xf32>,
    %cst_88 = arith.constant dense<0xFF800000> : vector<16xf32>
    %205 = vector.multi_reduction <maximumf>, %203, %cst_88 [1] : vector<16x128xf32> to vector<16xf32>
    %206 = vector.shape_cast %205 : vector<16xf32> to vector<16x1xf32>
    %207 = vector.broadcast %206 : vector<16x1xf32> to vector<16x128xf32>
    %208 = arith.cmpf oeq, %203, %207 : vector<16x128xf32>
    %cst_89 = arith.constant 1.280000e+02 : f32
    %209 = vector.broadcast %cst_89 : f32 to vector<16x128xf32>
    %210 = arith.select %208, %93, %209 : vector<16x128xi1>, vector<16x128xf32>
    %cst_90 = arith.constant dense<0x7F800000> : vector<16xf32>
    %211 = vector.multi_reduction <minimumf>, %210, %cst_90 [1] : vector<16x128xf32> to vector<16xf32>
    %212 = vector.shape_cast %211 : vector<16xf32> to vector<16x1xf32>
    %213 = arith.fptosi %212 : vector<16x1xf32> to vector<16x1xi32>
    %c0_91 = arith.constant 0 : index
    %c1 = arith.constant 1 : index
    %214 = vector.load %arg13[%c0_91, %c1] : memref<16x7xi32, #tpu.memory_space<vmem>>, vector<16x1xi32>
    tpu.vector_store %arg13[%c0_91, %c1], %213 {strides = array<i32>} : memref<16x7xi32, #tpu.memory_space<vmem>>, vector<16x1xi32>,
    %215 = vector.broadcast %213 : vector<16x1xi32> to vector<16x128xi32>
    %216 = arith.cmpi eq, %92, %215 : vector<16x128xi32>
    %217 = arith.extui %216 : vector<16x128xi1> to vector<16x128xi32>
    %218 = arith.sitofp %217 : vector<16x128xi32> to vector<16x128xf32>
    %219 = arith.truncf %218 : vector<16x128xf32> to vector<16x128xbf16>
    %220 = arith.truncf %197 : vector<16x128xf32> to vector<16x128xbf16>
    %221 = tpu.concatenate %219, %220 in 1 : vector<16x128xbf16>, vector<16x128xbf16> -> vector<16x256xbf16>
    %c0_92 = arith.constant 0 : index
    %c0_93 = arith.constant 0 : index
    %222 = vector.load %arg8[%c0_92, %c0_93] : memref<256x512xbf16, #tpu.memory_space<vmem>>, vector<256x512xbf16>
    %cst_94 = arith.constant dense<0.000000e+00> : vector<16x512xf32>
    %223 = tpu.matmul %221, %222, %cst_94 {dimension_numbers = #tpu.dot_dimension_numbers<[1], [0], [0], [1], [0, 0, 1, 1], [], []>} : vector<16x256xbf16>, vector<256x512xbf16>, vector<16x512xf32> -> vector<16x512xf32>
    %c0_95 = arith.constant 0 : index
    %c0_96 = arith.constant 0 : index
    %224 = vector.load %arg9[%c0_95, %c0_96] : memref<1x512xf32, #tpu.memory_space<vmem>>, vector<1x512xf32>
    %225 = vector.broadcast %224 : vector<1x512xf32> to vector<16x512xf32>
    %226 = arith.addf %223, %225 : vector<16x512xf32>
    %227 = vector.extract_strided_slice %226 {offsets = [0, 0], sizes = [16, 128], strides = [1, 1]} : vector<16x512xf32> to vector<16x128xf32>
    %cst_97 = arith.constant 0.000000e+00 : f32
    %228 = vector.broadcast %cst_97 : f32 to vector<16x128xf32>
    %229 = arith.subf %228, %227 : vector<16x128xf32>
    %230 = math.exp %229 : vector<16x128xf32>
    %cst_98 = arith.constant 1.000000e+00 : f32
    %231 = vector.broadcast %cst_98 : f32 to vector<16x128xf32>
    %232 = arith.addf %231, %230 : vector<16x128xf32>
    %cst_99 = arith.constant 1.000000e+00 : f32
    %233 = vector.broadcast %cst_99 : f32 to vector<16x128xf32>
    %234 = arith.divf %233, %232 : vector<16x128xf32>
    %235 = vector.extract_strided_slice %226 {offsets = [0, 128], sizes = [16, 128], strides = [1, 1]} : vector<16x512xf32> to vector<16x128xf32>
    %cst_100 = arith.constant 0.000000e+00 : f32
    %236 = vector.broadcast %cst_100 : f32 to vector<16x128xf32>
    %237 = arith.subf %236, %235 : vector<16x128xf32>
    %238 = math.exp %237 : vector<16x128xf32>
    %cst_101 = arith.constant 1.000000e+00 : f32
    %239 = vector.broadcast %cst_101 : f32 to vector<16x128xf32>
    %240 = arith.addf %239, %238 : vector<16x128xf32>
    %cst_102 = arith.constant 1.000000e+00 : f32
    %241 = vector.broadcast %cst_102 : f32 to vector<16x128xf32>
    %242 = arith.divf %241, %240 : vector<16x128xf32>
    %243 = vector.extract_strided_slice %226 {offsets = [0, 256], sizes = [16, 128], strides = [1, 1]} : vector<16x512xf32> to vector<16x128xf32>
    %244 = math.tanh %243 : vector<16x128xf32>
    %245 = vector.extract_strided_slice %226 {offsets = [0, 384], sizes = [16, 128], strides = [1, 1]} : vector<16x512xf32> to vector<16x128xf32>
    %cst_103 = arith.constant 0.000000e+00 : f32
    %246 = vector.broadcast %cst_103 : f32 to vector<16x128xf32>
    %247 = arith.subf %246, %245 : vector<16x128xf32>
    %248 = math.exp %247 : vector<16x128xf32>
    %cst_104 = arith.constant 1.000000e+00 : f32
    %249 = vector.broadcast %cst_104 : f32 to vector<16x128xf32>
    %250 = arith.addf %249, %248 : vector<16x128xf32>
    %cst_105 = arith.constant 1.000000e+00 : f32
    %251 = vector.broadcast %cst_105 : f32 to vector<16x128xf32>
    %252 = arith.divf %251, %250 : vector<16x128xf32>
    %253 = arith.mulf %242, %195 : vector<16x128xf32>
    %254 = arith.mulf %234, %244 : vector<16x128xf32>
    %255 = arith.addf %253, %254 : vector<16x128xf32>
    %256 = math.tanh %255 : vector<16x128xf32>
    %257 = arith.mulf %252, %256 : vector<16x128xf32>
    %258 = arith.truncf %257 : vector<16x128xf32> to vector<16x128xbf16>
    %c0_106 = arith.constant 0 : index
    %c0_107 = arith.constant 0 : index
    %259 = vector.load %arg10[%c0_106, %c0_107] : memref<128x128xbf16, #tpu.memory_space<vmem>>, vector<128x128xbf16>
    %cst_108 = arith.constant dense<0.000000e+00> : vector<16x128xf32>
    %260 = tpu.matmul %258, %259, %cst_108 {dimension_numbers = #tpu.dot_dimension_numbers<[1], [0], [0], [1], [0, 0, 1, 1], [], []>} : vector<16x128xbf16>, vector<128x128xbf16>, vector<16x128xf32> -> vector<16x128xf32>
    %c0_109 = arith.constant 0 : index
    %c0_110 = arith.constant 0 : index
    %261 = vector.load %arg11[%c0_109, %c0_110] : memref<1x128xf32, #tpu.memory_space<vmem>>, vector<1x128xf32>
    %262 = vector.broadcast %261 : vector<1x128xf32> to vector<16x128xf32>
    %263 = arith.addf %260, %262 : vector<16x128xf32>
    %c0_111 = arith.constant 0 : index
    %c256 = arith.constant 256 : index
    %264 = vector.load %arg12[%c0_111, %c256] : memref<16x896xf32, #tpu.memory_space<vmem>>, vector<16x128xf32>
    tpu.vector_store %arg12[%c0_111, %c256], %263 {strides = array<i32>} : memref<16x896xf32, #tpu.memory_space<vmem>>, vector<16x128xf32>,
    %cst_112 = arith.constant dense<0xFF800000> : vector<16xf32>
    %265 = vector.multi_reduction <maximumf>, %263, %cst_112 [1] : vector<16x128xf32> to vector<16xf32>
    %266 = vector.shape_cast %265 : vector<16xf32> to vector<16x1xf32>
    %267 = vector.broadcast %266 : vector<16x1xf32> to vector<16x128xf32>
    %268 = arith.cmpf oeq, %263, %267 : vector<16x128xf32>
    %cst_113 = arith.constant 1.280000e+02 : f32
    %269 = vector.broadcast %cst_113 : f32 to vector<16x128xf32>
    %270 = arith.select %268, %93, %269 : vector<16x128xi1>, vector<16x128xf32>
    %cst_114 = arith.constant dense<0x7F800000> : vector<16xf32>
    %271 = vector.multi_reduction <minimumf>, %270, %cst_114 [1] : vector<16x128xf32> to vector<16xf32>
    %272 = vector.shape_cast %271 : vector<16xf32> to vector<16x1xf32>
    %273 = arith.fptosi %272 : vector<16x1xf32> to vector<16x1xi32>
    %c0_115 = arith.constant 0 : index
    %c2 = arith.constant 2 : index
    %274 = vector.load %arg13[%c0_115, %c2] : memref<16x7xi32, #tpu.memory_space<vmem>>, vector<16x1xi32>
    tpu.vector_store %arg13[%c0_115, %c2], %273 {strides = array<i32>} : memref<16x7xi32, #tpu.memory_space<vmem>>, vector<16x1xi32>,
    %275 = vector.broadcast %273 : vector<16x1xi32> to vector<16x128xi32>
    %276 = arith.cmpi eq, %92, %275 : vector<16x128xi32>
    %277 = arith.extui %276 : vector<16x128xi1> to vector<16x128xi32>
    %278 = arith.sitofp %277 : vector<16x128xi32> to vector<16x128xf32>
    %279 = arith.truncf %278 : vector<16x128xf32> to vector<16x128xbf16>
    %280 = arith.truncf %257 : vector<16x128xf32> to vector<16x128xbf16>
    %281 = tpu.concatenate %279, %280 in 1 : vector<16x128xbf16>, vector<16x128xbf16> -> vector<16x256xbf16>
    %c0_116 = arith.constant 0 : index
    %c0_117 = arith.constant 0 : index
    %282 = vector.load %arg8[%c0_116, %c0_117] : memref<256x512xbf16, #tpu.memory_space<vmem>>, vector<256x512xbf16>
    %cst_118 = arith.constant dense<0.000000e+00> : vector<16x512xf32>
    %283 = tpu.matmul %281, %282, %cst_118 {dimension_numbers = #tpu.dot_dimension_numbers<[1], [0], [0], [1], [0, 0, 1, 1], [], []>} : vector<16x256xbf16>, vector<256x512xbf16>, vector<16x512xf32> -> vector<16x512xf32>
    %c0_119 = arith.constant 0 : index
    %c0_120 = arith.constant 0 : index
    %284 = vector.load %arg9[%c0_119, %c0_120] : memref<1x512xf32, #tpu.memory_space<vmem>>, vector<1x512xf32>
    %285 = vector.broadcast %284 : vector<1x512xf32> to vector<16x512xf32>
    %286 = arith.addf %283, %285 : vector<16x512xf32>
    %287 = vector.extract_strided_slice %286 {offsets = [0, 0], sizes = [16, 128], strides = [1, 1]} : vector<16x512xf32> to vector<16x128xf32>
    %cst_121 = arith.constant 0.000000e+00 : f32
    %288 = vector.broadcast %cst_121 : f32 to vector<16x128xf32>
    %289 = arith.subf %288, %287 : vector<16x128xf32>
    %290 = math.exp %289 : vector<16x128xf32>
    %cst_122 = arith.constant 1.000000e+00 : f32
    %291 = vector.broadcast %cst_122 : f32 to vector<16x128xf32>
    %292 = arith.addf %291, %290 : vector<16x128xf32>
    %cst_123 = arith.constant 1.000000e+00 : f32
    %293 = vector.broadcast %cst_123 : f32 to vector<16x128xf32>
    %294 = arith.divf %293, %292 : vector<16x128xf32>
    %295 = vector.extract_strided_slice %286 {offsets = [0, 128], sizes = [16, 128], strides = [1, 1]} : vector<16x512xf32> to vector<16x128xf32>
    %cst_124 = arith.constant 0.000000e+00 : f32
    %296 = vector.broadcast %cst_124 : f32 to vector<16x128xf32>
    %297 = arith.subf %296, %295 : vector<16x128xf32>
    %298 = math.exp %297 : vector<16x128xf32>
    %cst_125 = arith.constant 1.000000e+00 : f32
    %299 = vector.broadcast %cst_125 : f32 to vector<16x128xf32>
    %300 = arith.addf %299, %298 : vector<16x128xf32>
    %cst_126 = arith.constant 1.000000e+00 : f32
    %301 = vector.broadcast %cst_126 : f32 to vector<16x128xf32>
    %302 = arith.divf %301, %300 : vector<16x128xf32>
    %303 = vector.extract_strided_slice %286 {offsets = [0, 256], sizes = [16, 128], strides = [1, 1]} : vector<16x512xf32> to vector<16x128xf32>
    %304 = math.tanh %303 : vector<16x128xf32>
    %305 = vector.extract_strided_slice %286 {offsets = [0, 384], sizes = [16, 128], strides = [1, 1]} : vector<16x512xf32> to vector<16x128xf32>
    %cst_127 = arith.constant 0.000000e+00 : f32
    %306 = vector.broadcast %cst_127 : f32 to vector<16x128xf32>
    %307 = arith.subf %306, %305 : vector<16x128xf32>
    %308 = math.exp %307 : vector<16x128xf32>
    %cst_128 = arith.constant 1.000000e+00 : f32
    %309 = vector.broadcast %cst_128 : f32 to vector<16x128xf32>
    %310 = arith.addf %309, %308 : vector<16x128xf32>
    %cst_129 = arith.constant 1.000000e+00 : f32
    %311 = vector.broadcast %cst_129 : f32 to vector<16x128xf32>
    %312 = arith.divf %311, %310 : vector<16x128xf32>
    %313 = arith.mulf %302, %255 : vector<16x128xf32>
    %314 = arith.mulf %294, %304 : vector<16x128xf32>
    %315 = arith.addf %313, %314 : vector<16x128xf32>
    %316 = math.tanh %315 : vector<16x128xf32>
    %317 = arith.mulf %312, %316 : vector<16x128xf32>
    %318 = arith.truncf %317 : vector<16x128xf32> to vector<16x128xbf16>
    %c0_130 = arith.constant 0 : index
    %c0_131 = arith.constant 0 : index
    %319 = vector.load %arg10[%c0_130, %c0_131] : memref<128x128xbf16, #tpu.memory_space<vmem>>, vector<128x128xbf16>
    %cst_132 = arith.constant dense<0.000000e+00> : vector<16x128xf32>
    %320 = tpu.matmul %318, %319, %cst_132 {dimension_numbers = #tpu.dot_dimension_numbers<[1], [0], [0], [1], [0, 0, 1, 1], [], []>} : vector<16x128xbf16>, vector<128x128xbf16>, vector<16x128xf32> -> vector<16x128xf32>
    %c0_133 = arith.constant 0 : index
    %c0_134 = arith.constant 0 : index
    %321 = vector.load %arg11[%c0_133, %c0_134] : memref<1x128xf32, #tpu.memory_space<vmem>>, vector<1x128xf32>
    %322 = vector.broadcast %321 : vector<1x128xf32> to vector<16x128xf32>
    %323 = arith.addf %320, %322 : vector<16x128xf32>
    %c0_135 = arith.constant 0 : index
    %c384 = arith.constant 384 : index
    %324 = vector.load %arg12[%c0_135, %c384] : memref<16x896xf32, #tpu.memory_space<vmem>>, vector<16x128xf32>
    tpu.vector_store %arg12[%c0_135, %c384], %323 {strides = array<i32>} : memref<16x896xf32, #tpu.memory_space<vmem>>, vector<16x128xf32>,
    %cst_136 = arith.constant dense<0xFF800000> : vector<16xf32>
    %325 = vector.multi_reduction <maximumf>, %323, %cst_136 [1] : vector<16x128xf32> to vector<16xf32>
    %326 = vector.shape_cast %325 : vector<16xf32> to vector<16x1xf32>
    %327 = vector.broadcast %326 : vector<16x1xf32> to vector<16x128xf32>
    %328 = arith.cmpf oeq, %323, %327 : vector<16x128xf32>
    %cst_137 = arith.constant 1.280000e+02 : f32
    %329 = vector.broadcast %cst_137 : f32 to vector<16x128xf32>
    %330 = arith.select %328, %93, %329 : vector<16x128xi1>, vector<16x128xf32>
    %cst_138 = arith.constant dense<0x7F800000> : vector<16xf32>
    %331 = vector.multi_reduction <minimumf>, %330, %cst_138 [1] : vector<16x128xf32> to vector<16xf32>
    %332 = vector.shape_cast %331 : vector<16xf32> to vector<16x1xf32>
    %333 = arith.fptosi %332 : vector<16x1xf32> to vector<16x1xi32>
    %c0_139 = arith.constant 0 : index
    %c3 = arith.constant 3 : index
    %334 = vector.load %arg13[%c0_139, %c3] : memref<16x7xi32, #tpu.memory_space<vmem>>, vector<16x1xi32>
    tpu.vector_store %arg13[%c0_139, %c3], %333 {strides = array<i32>} : memref<16x7xi32, #tpu.memory_space<vmem>>, vector<16x1xi32>,
    %335 = vector.broadcast %333 : vector<16x1xi32> to vector<16x128xi32>
    %336 = arith.cmpi eq, %92, %335 : vector<16x128xi32>
    %337 = arith.extui %336 : vector<16x128xi1> to vector<16x128xi32>
    %338 = arith.sitofp %337 : vector<16x128xi32> to vector<16x128xf32>
    %339 = arith.truncf %338 : vector<16x128xf32> to vector<16x128xbf16>
    %340 = arith.truncf %317 : vector<16x128xf32> to vector<16x128xbf16>
    %341 = tpu.concatenate %339, %340 in 1 : vector<16x128xbf16>, vector<16x128xbf16> -> vector<16x256xbf16>
    %c0_140 = arith.constant 0 : index
    %c0_141 = arith.constant 0 : index
    %342 = vector.load %arg8[%c0_140, %c0_141] : memref<256x512xbf16, #tpu.memory_space<vmem>>, vector<256x512xbf16>
    %cst_142 = arith.constant dense<0.000000e+00> : vector<16x512xf32>
    %343 = tpu.matmul %341, %342, %cst_142 {dimension_numbers = #tpu.dot_dimension_numbers<[1], [0], [0], [1], [0, 0, 1, 1], [], []>} : vector<16x256xbf16>, vector<256x512xbf16>, vector<16x512xf32> -> vector<16x512xf32>
    %c0_143 = arith.constant 0 : index
    %c0_144 = arith.constant 0 : index
    %344 = vector.load %arg9[%c0_143, %c0_144] : memref<1x512xf32, #tpu.memory_space<vmem>>, vector<1x512xf32>
    %345 = vector.broadcast %344 : vector<1x512xf32> to vector<16x512xf32>
    %346 = arith.addf %343, %345 : vector<16x512xf32>
    %347 = vector.extract_strided_slice %346 {offsets = [0, 0], sizes = [16, 128], strides = [1, 1]} : vector<16x512xf32> to vector<16x128xf32>
    %cst_145 = arith.constant 0.000000e+00 : f32
    %348 = vector.broadcast %cst_145 : f32 to vector<16x128xf32>
    %349 = arith.subf %348, %347 : vector<16x128xf32>
    %350 = math.exp %349 : vector<16x128xf32>
    %cst_146 = arith.constant 1.000000e+00 : f32
    %351 = vector.broadcast %cst_146 : f32 to vector<16x128xf32>
    %352 = arith.addf %351, %350 : vector<16x128xf32>
    %cst_147 = arith.constant 1.000000e+00 : f32
    %353 = vector.broadcast %cst_147 : f32 to vector<16x128xf32>
    %354 = arith.divf %353, %352 : vector<16x128xf32>
    %355 = vector.extract_strided_slice %346 {offsets = [0, 128], sizes = [16, 128], strides = [1, 1]} : vector<16x512xf32> to vector<16x128xf32>
    %cst_148 = arith.constant 0.000000e+00 : f32
    %356 = vector.broadcast %cst_148 : f32 to vector<16x128xf32>
    %357 = arith.subf %356, %355 : vector<16x128xf32>
    %358 = math.exp %357 : vector<16x128xf32>
    %cst_149 = arith.constant 1.000000e+00 : f32
    %359 = vector.broadcast %cst_149 : f32 to vector<16x128xf32>
    %360 = arith.addf %359, %358 : vector<16x128xf32>
    %cst_150 = arith.constant 1.000000e+00 : f32
    %361 = vector.broadcast %cst_150 : f32 to vector<16x128xf32>
    %362 = arith.divf %361, %360 : vector<16x128xf32>
    %363 = vector.extract_strided_slice %346 {offsets = [0, 256], sizes = [16, 128], strides = [1, 1]} : vector<16x512xf32> to vector<16x128xf32>
    %364 = math.tanh %363 : vector<16x128xf32>
    %365 = vector.extract_strided_slice %346 {offsets = [0, 384], sizes = [16, 128], strides = [1, 1]} : vector<16x512xf32> to vector<16x128xf32>
    %cst_151 = arith.constant 0.000000e+00 : f32
    %366 = vector.broadcast %cst_151 : f32 to vector<16x128xf32>
    %367 = arith.subf %366, %365 : vector<16x128xf32>
    %368 = math.exp %367 : vector<16x128xf32>
    %cst_152 = arith.constant 1.000000e+00 : f32
    %369 = vector.broadcast %cst_152 : f32 to vector<16x128xf32>
    %370 = arith.addf %369, %368 : vector<16x128xf32>
    %cst_153 = arith.constant 1.000000e+00 : f32
    %371 = vector.broadcast %cst_153 : f32 to vector<16x128xf32>
    %372 = arith.divf %371, %370 : vector<16x128xf32>
    %373 = arith.mulf %362, %315 : vector<16x128xf32>
    %374 = arith.mulf %354, %364 : vector<16x128xf32>
    %375 = arith.addf %373, %374 : vector<16x128xf32>
    %376 = math.tanh %375 : vector<16x128xf32>
    %377 = arith.mulf %372, %376 : vector<16x128xf32>
    %378 = arith.truncf %377 : vector<16x128xf32> to vector<16x128xbf16>
    %c0_154 = arith.constant 0 : index
    %c0_155 = arith.constant 0 : index
    %379 = vector.load %arg10[%c0_154, %c0_155] : memref<128x128xbf16, #tpu.memory_space<vmem>>, vector<128x128xbf16>
    %cst_156 = arith.constant dense<0.000000e+00> : vector<16x128xf32>
    %380 = tpu.matmul %378, %379, %cst_156 {dimension_numbers = #tpu.dot_dimension_numbers<[1], [0], [0], [1], [0, 0, 1, 1], [], []>} : vector<16x128xbf16>, vector<128x128xbf16>, vector<16x128xf32> -> vector<16x128xf32>
    %c0_157 = arith.constant 0 : index
    %c0_158 = arith.constant 0 : index
    %381 = vector.load %arg11[%c0_157, %c0_158] : memref<1x128xf32, #tpu.memory_space<vmem>>, vector<1x128xf32>
    %382 = vector.broadcast %381 : vector<1x128xf32> to vector<16x128xf32>
    %383 = arith.addf %380, %382 : vector<16x128xf32>
    %c0_159 = arith.constant 0 : index
    %c512 = arith.constant 512 : index
    %384 = vector.load %arg12[%c0_159, %c512] : memref<16x896xf32, #tpu.memory_space<vmem>>, vector<16x128xf32>
    tpu.vector_store %arg12[%c0_159, %c512], %383 {strides = array<i32>} : memref<16x896xf32, #tpu.memory_space<vmem>>, vector<16x128xf32>,
    %cst_160 = arith.constant dense<0xFF800000> : vector<16xf32>
    %385 = vector.multi_reduction <maximumf>, %383, %cst_160 [1] : vector<16x128xf32> to vector<16xf32>
    %386 = vector.shape_cast %385 : vector<16xf32> to vector<16x1xf32>
    %387 = vector.broadcast %386 : vector<16x1xf32> to vector<16x128xf32>
    %388 = arith.cmpf oeq, %383, %387 : vector<16x128xf32>
    %cst_161 = arith.constant 1.280000e+02 : f32
    %389 = vector.broadcast %cst_161 : f32 to vector<16x128xf32>
    %390 = arith.select %388, %93, %389 : vector<16x128xi1>, vector<16x128xf32>
    %cst_162 = arith.constant dense<0x7F800000> : vector<16xf32>
    %391 = vector.multi_reduction <minimumf>, %390, %cst_162 [1] : vector<16x128xf32> to vector<16xf32>
    %392 = vector.shape_cast %391 : vector<16xf32> to vector<16x1xf32>
    %393 = arith.fptosi %392 : vector<16x1xf32> to vector<16x1xi32>
    %c0_163 = arith.constant 0 : index
    %c4 = arith.constant 4 : index
    %394 = vector.load %arg13[%c0_163, %c4] : memref<16x7xi32, #tpu.memory_space<vmem>>, vector<16x1xi32>
    tpu.vector_store %arg13[%c0_163, %c4], %393 {strides = array<i32>} : memref<16x7xi32, #tpu.memory_space<vmem>>, vector<16x1xi32>,
    %395 = vector.broadcast %393 : vector<16x1xi32> to vector<16x128xi32>
    %396 = arith.cmpi eq, %92, %395 : vector<16x128xi32>
    %397 = arith.extui %396 : vector<16x128xi1> to vector<16x128xi32>
    %398 = arith.sitofp %397 : vector<16x128xi32> to vector<16x128xf32>
    %399 = arith.truncf %398 : vector<16x128xf32> to vector<16x128xbf16>
    %400 = arith.truncf %377 : vector<16x128xf32> to vector<16x128xbf16>
    %401 = tpu.concatenate %399, %400 in 1 : vector<16x128xbf16>, vector<16x128xbf16> -> vector<16x256xbf16>
    %c0_164 = arith.constant 0 : index
    %c0_165 = arith.constant 0 : index
    %402 = vector.load %arg8[%c0_164, %c0_165] : memref<256x512xbf16, #tpu.memory_space<vmem>>, vector<256x512xbf16>
    %cst_166 = arith.constant dense<0.000000e+00> : vector<16x512xf32>
    %403 = tpu.matmul %401, %402, %cst_166 {dimension_numbers = #tpu.dot_dimension_numbers<[1], [0], [0], [1], [0, 0, 1, 1], [], []>} : vector<16x256xbf16>, vector<256x512xbf16>, vector<16x512xf32> -> vector<16x512xf32>
    %c0_167 = arith.constant 0 : index
    %c0_168 = arith.constant 0 : index
    %404 = vector.load %arg9[%c0_167, %c0_168] : memref<1x512xf32, #tpu.memory_space<vmem>>, vector<1x512xf32>
    %405 = vector.broadcast %404 : vector<1x512xf32> to vector<16x512xf32>
    %406 = arith.addf %403, %405 : vector<16x512xf32>
    %407 = vector.extract_strided_slice %406 {offsets = [0, 0], sizes = [16, 128], strides = [1, 1]} : vector<16x512xf32> to vector<16x128xf32>
    %cst_169 = arith.constant 0.000000e+00 : f32
    %408 = vector.broadcast %cst_169 : f32 to vector<16x128xf32>
    %409 = arith.subf %408, %407 : vector<16x128xf32>
    %410 = math.exp %409 : vector<16x128xf32>
    %cst_170 = arith.constant 1.000000e+00 : f32
    %411 = vector.broadcast %cst_170 : f32 to vector<16x128xf32>
    %412 = arith.addf %411, %410 : vector<16x128xf32>
    %cst_171 = arith.constant 1.000000e+00 : f32
    %413 = vector.broadcast %cst_171 : f32 to vector<16x128xf32>
    %414 = arith.divf %413, %412 : vector<16x128xf32>
    %415 = vector.extract_strided_slice %406 {offsets = [0, 128], sizes = [16, 128], strides = [1, 1]} : vector<16x512xf32> to vector<16x128xf32>
    %cst_172 = arith.constant 0.000000e+00 : f32
    %416 = vector.broadcast %cst_172 : f32 to vector<16x128xf32>
    %417 = arith.subf %416, %415 : vector<16x128xf32>
    %418 = math.exp %417 : vector<16x128xf32>
    %cst_173 = arith.constant 1.000000e+00 : f32
    %419 = vector.broadcast %cst_173 : f32 to vector<16x128xf32>
    %420 = arith.addf %419, %418 : vector<16x128xf32>
    %cst_174 = arith.constant 1.000000e+00 : f32
    %421 = vector.broadcast %cst_174 : f32 to vector<16x128xf32>
    %422 = arith.divf %421, %420 : vector<16x128xf32>
    %423 = vector.extract_strided_slice %406 {offsets = [0, 256], sizes = [16, 128], strides = [1, 1]} : vector<16x512xf32> to vector<16x128xf32>
    %424 = math.tanh %423 : vector<16x128xf32>
    %425 = vector.extract_strided_slice %406 {offsets = [0, 384], sizes = [16, 128], strides = [1, 1]} : vector<16x512xf32> to vector<16x128xf32>
    %cst_175 = arith.constant 0.000000e+00 : f32
    %426 = vector.broadcast %cst_175 : f32 to vector<16x128xf32>
    %427 = arith.subf %426, %425 : vector<16x128xf32>
    %428 = math.exp %427 : vector<16x128xf32>
    %cst_176 = arith.constant 1.000000e+00 : f32
    %429 = vector.broadcast %cst_176 : f32 to vector<16x128xf32>
    %430 = arith.addf %429, %428 : vector<16x128xf32>
    %cst_177 = arith.constant 1.000000e+00 : f32
    %431 = vector.broadcast %cst_177 : f32 to vector<16x128xf32>
    %432 = arith.divf %431, %430 : vector<16x128xf32>
    %433 = arith.mulf %422, %375 : vector<16x128xf32>
    %434 = arith.mulf %414, %424 : vector<16x128xf32>
    %435 = arith.addf %433, %434 : vector<16x128xf32>
    %436 = math.tanh %435 : vector<16x128xf32>
    %437 = arith.mulf %432, %436 : vector<16x128xf32>
    %438 = arith.truncf %437 : vector<16x128xf32> to vector<16x128xbf16>
    %c0_178 = arith.constant 0 : index
    %c0_179 = arith.constant 0 : index
    %439 = vector.load %arg10[%c0_178, %c0_179] : memref<128x128xbf16, #tpu.memory_space<vmem>>, vector<128x128xbf16>
    %cst_180 = arith.constant dense<0.000000e+00> : vector<16x128xf32>
    %440 = tpu.matmul %438, %439, %cst_180 {dimension_numbers = #tpu.dot_dimension_numbers<[1], [0], [0], [1], [0, 0, 1, 1], [], []>} : vector<16x128xbf16>, vector<128x128xbf16>, vector<16x128xf32> -> vector<16x128xf32>
    %c0_181 = arith.constant 0 : index
    %c0_182 = arith.constant 0 : index
    %441 = vector.load %arg11[%c0_181, %c0_182] : memref<1x128xf32, #tpu.memory_space<vmem>>, vector<1x128xf32>
    %442 = vector.broadcast %441 : vector<1x128xf32> to vector<16x128xf32>
    %443 = arith.addf %440, %442 : vector<16x128xf32>
    %c0_183 = arith.constant 0 : index
    %c640 = arith.constant 640 : index
    %444 = vector.load %arg12[%c0_183, %c640] : memref<16x896xf32, #tpu.memory_space<vmem>>, vector<16x128xf32>
    tpu.vector_store %arg12[%c0_183, %c640], %443 {strides = array<i32>} : memref<16x896xf32, #tpu.memory_space<vmem>>, vector<16x128xf32>,
    %cst_184 = arith.constant dense<0xFF800000> : vector<16xf32>
    %445 = vector.multi_reduction <maximumf>, %443, %cst_184 [1] : vector<16x128xf32> to vector<16xf32>
    %446 = vector.shape_cast %445 : vector<16xf32> to vector<16x1xf32>
    %447 = vector.broadcast %446 : vector<16x1xf32> to vector<16x128xf32>
    %448 = arith.cmpf oeq, %443, %447 : vector<16x128xf32>
    %cst_185 = arith.constant 1.280000e+02 : f32
    %449 = vector.broadcast %cst_185 : f32 to vector<16x128xf32>
    %450 = arith.select %448, %93, %449 : vector<16x128xi1>, vector<16x128xf32>
    %cst_186 = arith.constant dense<0x7F800000> : vector<16xf32>
    %451 = vector.multi_reduction <minimumf>, %450, %cst_186 [1] : vector<16x128xf32> to vector<16xf32>
    %452 = vector.shape_cast %451 : vector<16xf32> to vector<16x1xf32>
    %453 = arith.fptosi %452 : vector<16x1xf32> to vector<16x1xi32>
    %c0_187 = arith.constant 0 : index
    %c5 = arith.constant 5 : index
    %454 = vector.load %arg13[%c0_187, %c5] : memref<16x7xi32, #tpu.memory_space<vmem>>, vector<16x1xi32>
    tpu.vector_store %arg13[%c0_187, %c5], %453 {strides = array<i32>} : memref<16x7xi32, #tpu.memory_space<vmem>>, vector<16x1xi32>,
    %455 = vector.broadcast %453 : vector<16x1xi32> to vector<16x128xi32>
    %456 = arith.cmpi eq, %92, %455 : vector<16x128xi32>
    %457 = arith.extui %456 : vector<16x128xi1> to vector<16x128xi32>
    %458 = arith.sitofp %457 : vector<16x128xi32> to vector<16x128xf32>
    %459 = arith.truncf %458 : vector<16x128xf32> to vector<16x128xbf16>
    %460 = arith.truncf %437 : vector<16x128xf32> to vector<16x128xbf16>
    %461 = tpu.concatenate %459, %460 in 1 : vector<16x128xbf16>, vector<16x128xbf16> -> vector<16x256xbf16>
    %c0_188 = arith.constant 0 : index
    %c0_189 = arith.constant 0 : index
    %462 = vector.load %arg8[%c0_188, %c0_189] : memref<256x512xbf16, #tpu.memory_space<vmem>>, vector<256x512xbf16>
    %cst_190 = arith.constant dense<0.000000e+00> : vector<16x512xf32>
    %463 = tpu.matmul %461, %462, %cst_190 {dimension_numbers = #tpu.dot_dimension_numbers<[1], [0], [0], [1], [0, 0, 1, 1], [], []>} : vector<16x256xbf16>, vector<256x512xbf16>, vector<16x512xf32> -> vector<16x512xf32>
    %c0_191 = arith.constant 0 : index
    %c0_192 = arith.constant 0 : index
    %464 = vector.load %arg9[%c0_191, %c0_192] : memref<1x512xf32, #tpu.memory_space<vmem>>, vector<1x512xf32>
    %465 = vector.broadcast %464 : vector<1x512xf32> to vector<16x512xf32>
    %466 = arith.addf %463, %465 : vector<16x512xf32>
    %467 = vector.extract_strided_slice %466 {offsets = [0, 0], sizes = [16, 128], strides = [1, 1]} : vector<16x512xf32> to vector<16x128xf32>
    %cst_193 = arith.constant 0.000000e+00 : f32
    %468 = vector.broadcast %cst_193 : f32 to vector<16x128xf32>
    %469 = arith.subf %468, %467 : vector<16x128xf32>
    %470 = math.exp %469 : vector<16x128xf32>
    %cst_194 = arith.constant 1.000000e+00 : f32
    %471 = vector.broadcast %cst_194 : f32 to vector<16x128xf32>
    %472 = arith.addf %471, %470 : vector<16x128xf32>
    %cst_195 = arith.constant 1.000000e+00 : f32
    %473 = vector.broadcast %cst_195 : f32 to vector<16x128xf32>
    %474 = arith.divf %473, %472 : vector<16x128xf32>
    %475 = vector.extract_strided_slice %466 {offsets = [0, 128], sizes = [16, 128], strides = [1, 1]} : vector<16x512xf32> to vector<16x128xf32>
    %cst_196 = arith.constant 0.000000e+00 : f32
    %476 = vector.broadcast %cst_196 : f32 to vector<16x128xf32>
    %477 = arith.subf %476, %475 : vector<16x128xf32>
    %478 = math.exp %477 : vector<16x128xf32>
    %cst_197 = arith.constant 1.000000e+00 : f32
    %479 = vector.broadcast %cst_197 : f32 to vector<16x128xf32>
    %480 = arith.addf %479, %478 : vector<16x128xf32>
    %cst_198 = arith.constant 1.000000e+00 : f32
    %481 = vector.broadcast %cst_198 : f32 to vector<16x128xf32>
    %482 = arith.divf %481, %480 : vector<16x128xf32>
    %483 = vector.extract_strided_slice %466 {offsets = [0, 256], sizes = [16, 128], strides = [1, 1]} : vector<16x512xf32> to vector<16x128xf32>
    %484 = math.tanh %483 : vector<16x128xf32>
    %485 = vector.extract_strided_slice %466 {offsets = [0, 384], sizes = [16, 128], strides = [1, 1]} : vector<16x512xf32> to vector<16x128xf32>
    %cst_199 = arith.constant 0.000000e+00 : f32
    %486 = vector.broadcast %cst_199 : f32 to vector<16x128xf32>
    %487 = arith.subf %486, %485 : vector<16x128xf32>
    %488 = math.exp %487 : vector<16x128xf32>
    %cst_200 = arith.constant 1.000000e+00 : f32
    %489 = vector.broadcast %cst_200 : f32 to vector<16x128xf32>
    %490 = arith.addf %489, %488 : vector<16x128xf32>
    %cst_201 = arith.constant 1.000000e+00 : f32
    %491 = vector.broadcast %cst_201 : f32 to vector<16x128xf32>
    %492 = arith.divf %491, %490 : vector<16x128xf32>
    %493 = arith.mulf %482, %435 : vector<16x128xf32>
    %494 = arith.mulf %474, %484 : vector<16x128xf32>
    %495 = arith.addf %493, %494 : vector<16x128xf32>
    %496 = math.tanh %495 : vector<16x128xf32>
    %497 = arith.mulf %492, %496 : vector<16x128xf32>
    %498 = arith.truncf %497 : vector<16x128xf32> to vector<16x128xbf16>
    %c0_202 = arith.constant 0 : index
    %c0_203 = arith.constant 0 : index
    %499 = vector.load %arg10[%c0_202, %c0_203] : memref<128x128xbf16, #tpu.memory_space<vmem>>, vector<128x128xbf16>
    %cst_204 = arith.constant dense<0.000000e+00> : vector<16x128xf32>
    %500 = tpu.matmul %498, %499, %cst_204 {dimension_numbers = #tpu.dot_dimension_numbers<[1], [0], [0], [1], [0, 0, 1, 1], [], []>} : vector<16x128xbf16>, vector<128x128xbf16>, vector<16x128xf32> -> vector<16x128xf32>
    %c0_205 = arith.constant 0 : index
    %c0_206 = arith.constant 0 : index
    %501 = vector.load %arg11[%c0_205, %c0_206] : memref<1x128xf32, #tpu.memory_space<vmem>>, vector<1x128xf32>
    %502 = vector.broadcast %501 : vector<1x128xf32> to vector<16x128xf32>
    %503 = arith.addf %500, %502 : vector<16x128xf32>
    %c0_207 = arith.constant 0 : index
    %c768 = arith.constant 768 : index
    %504 = vector.load %arg12[%c0_207, %c768] : memref<16x896xf32, #tpu.memory_space<vmem>>, vector<16x128xf32>
    tpu.vector_store %arg12[%c0_207, %c768], %503 {strides = array<i32>} : memref<16x896xf32, #tpu.memory_space<vmem>>, vector<16x128xf32>,
    %cst_208 = arith.constant dense<0xFF800000> : vector<16xf32>
    %505 = vector.multi_reduction <maximumf>, %503, %cst_208 [1] : vector<16x128xf32> to vector<16xf32>
    %506 = vector.shape_cast %505 : vector<16xf32> to vector<16x1xf32>
    %507 = vector.broadcast %506 : vector<16x1xf32> to vector<16x128xf32>
    %508 = arith.cmpf oeq, %503, %507 : vector<16x128xf32>
    %cst_209 = arith.constant 1.280000e+02 : f32
    %509 = vector.broadcast %cst_209 : f32 to vector<16x128xf32>
    %510 = arith.select %508, %93, %509 : vector<16x128xi1>, vector<16x128xf32>
    %cst_210 = arith.constant dense<0x7F800000> : vector<16xf32>
    %511 = vector.multi_reduction <minimumf>, %510, %cst_210 [1] : vector<16x128xf32> to vector<16xf32>
    %512 = vector.shape_cast %511 : vector<16xf32> to vector<16x1xf32>
    %513 = arith.fptosi %512 : vector<16x1xf32> to vector<16x1xi32>
    %c0_211 = arith.constant 0 : index
    %c6 = arith.constant 6 : index
    %514 = vector.load %arg13[%c0_211, %c6] : memref<16x7xi32, #tpu.memory_space<vmem>>, vector<16x1xi32>
    tpu.vector_store %arg13[%c0_211, %c6], %513 {strides = array<i32>} : memref<16x7xi32, #tpu.memory_space<vmem>>, vector<16x1xi32>,
    return
  }
  func.func @transform_0(%arg0: i32) -> (i32, i32) {
    %c0_i32 = arith.constant 0 : i32
    %c0_i32_0 = arith.constant 0 : i32
    return %arg0, %c0_i32 : i32, i32
  }
  func.func @transform_1(%arg0: i32) -> (i32, i32) {
    %c0_i32 = arith.constant 0 : i32
    %c0_i32_0 = arith.constant 0 : i32
    return %arg0, %c0_i32 : i32, i32
  }
  func.func @transform_2(%arg0: i32) -> (i32, i32) {
    %c0_i32 = arith.constant 0 : i32
    %c0_i32_0 = arith.constant 0 : i32
    %c0_i32_1 = arith.constant 0 : i32
    return %c0_i32, %c0_i32_0 : i32, i32
  }
  func.func @transform_3(%arg0: i32) -> (i32, i32) {
    %c0_i32 = arith.constant 0 : i32
    %c0_i32_0 = arith.constant 0 : i32
    %c0_i32_1 = arith.constant 0 : i32
    return %c0_i32, %c0_i32_0 : i32, i32
  }
  func.func @transform_4(%arg0: i32) -> (i32, i32) {
    %c0_i32 = arith.constant 0 : i32
    %c0_i32_0 = arith.constant 0 : i32
    %c0_i32_1 = arith.constant 0 : i32
    return %c0_i32, %c0_i32_0 : i32, i32
  }
  func.func @transform_5(%arg0: i32) -> (i32, i32) {
    %c0_i32 = arith.constant 0 : i32
    %c0_i32_0 = arith.constant 0 : i32
    %c0_i32_1 = arith.constant 0 : i32
    return %c0_i32, %c0_i32_0 : i32, i32
  }
  func.func @transform_6(%arg0: i32) -> (i32, i32) {
    %c0_i32 = arith.constant 0 : i32
    %c0_i32_0 = arith.constant 0 : i32
    %c0_i32_1 = arith.constant 0 : i32
    return %c0_i32, %c0_i32_0 : i32, i32
  }
  func.func @transform_7(%arg0: i32) -> (i32, i32) {
    %c0_i32 = arith.constant 0 : i32
    %c0_i32_0 = arith.constant 0 : i32
    %c0_i32_1 = arith.constant 0 : i32
    return %c0_i32, %c0_i32_0 : i32, i32
  }
  func.func @transform_8(%arg0: i32) -> (i32, i32) {
    %c0_i32 = arith.constant 0 : i32
    %c0_i32_0 = arith.constant 0 : i32
    %c0_i32_1 = arith.constant 0 : i32
    return %c0_i32, %c0_i32_0 : i32, i32
  }
  func.func @transform_9(%arg0: i32) -> (i32, i32) {
    %c0_i32 = arith.constant 0 : i32
    %c0_i32_0 = arith.constant 0 : i32
    %c0_i32_1 = arith.constant 0 : i32
    return %c0_i32, %c0_i32_0 : i32, i32
  }
  func.func @transform_10(%arg0: i32) -> (i32, i32) {
    %c0_i32 = arith.constant 0 : i32
    %c0_i32_0 = arith.constant 0 : i32
    %c0_i32_1 = arith.constant 0 : i32
    return %c0_i32, %c0_i32_0 : i32, i32
  }
  func.func @transform_11(%arg0: i32) -> (i32, i32) {
    %c0_i32 = arith.constant 0 : i32
    %c0_i32_0 = arith.constant 0 : i32
    return %arg0, %c0_i32 : i32, i32
  }
  func.func @transform_12(%arg0: i32) -> (i32, i32) {
    %c0_i32 = arith.constant 0 : i32
    %c0_i32_0 = arith.constant 0 : i32
    return %arg0, %c0_i32 : i32, i32
  }
}

</mosaic_0001>

<llo_original>
// kernel: tpu_custom_call.1
$region0: #{tpu_custom_call.1}
  #allocation0 [shape = 'u32[]', space=smem, size = 0x4, offset = 0x4, fixed_abs, tag = 'smem constant byte address 0x4 - core index']
  #allocation1 [shape = 'u32[144,128]{1,0:T(1,128)}', space=vmem, size = 0x12000, scoped, tag = 'internal scratch']
  %s0 = inlined_call_operand.hbm [shape: bf16[16,128], index: 0, kind: input, shape index: {}]
  %s1 = inlined_call_operand.hbm [shape: bf16[16,128], index: 1, kind: input, shape index: {}]
  %s2 = inlined_call_operand.hbm [shape: bf16[128,128], index: 2, kind: input, shape index: {}]
  %s3 = inlined_call_operand.vmem [shape: f32[1,128], index: 3, kind: input, shape index: {}]
  %s4 = inlined_call_operand.hbm [shape: bf16[128,128], index: 4, kind: input, shape index: {}]
  %s5 = inlined_call_operand.vmem [shape: f32[1,128], index: 5, kind: input, shape index: {}]
  %s6 = inlined_call_operand.hbm [shape: bf16[256,512], index: 6, kind: input, shape index: {}]
  %s7 = inlined_call_operand.hbm [shape: bf16[256,512], index: 7, kind: input, shape index: {}]
  %s8 = inlined_call_operand.vmem [shape: f32[1,512], index: 8, kind: input, shape index: {}]
  %s9 = inlined_call_operand.hbm [shape: bf16[128,128], index: 9, kind: input, shape index: {}]
  %s10 = inlined_call_operand.vmem [shape: f32[1,128], index: 10, kind: input, shape index: {}]
  %s11 = inlined_call_operand.hbm [shape: f32[16,896], index: 11, kind: output, shape index: {0}]
  %s12 = inlined_call_operand.vmem [shape: s32[16,7], index: 12, kind: output, shape index: {1}]
  %13 = xla_tuple %s11, %s12
  %s14 = sld [smem:[#allocation0]]
  $region90: #{tpu_custom_call.1} parent=0
    _
  %s16 = ssub.s32 1, %s14
  %s17 = scalar_select 0, %s16, %s14
  $region1: #{tpu_custom_call.1} parent=0
    #allocation2 [shape = 'u8[4096]{0}', space=vmem, size = 0x1000, scoped, tag = 'input window, operand 0, single buffered']
    #allocation3 [shape = 's32[1]{0}', space=sflag, size = 0x4, scoped, tag = 'scoped memory for tpu_custom_call.1']
    #allocation4 [shape = 's32[1]{0}', space=sflag, size = 0x4, scoped, tag = 'scoped memory for tpu_custom_call.1']
    #allocation5 [shape = 'u8[4096]{0}', space=vmem, size = 0x1000, scoped, tag = 'input window, operand 1, single buffered']
    #allocation6 [shape = 's32[1]{0}', space=sflag, size = 0x4, scoped, tag = 'scoped memory for tpu_custom_call.1']
    #allocation7 [shape = 'u8[32768]{0}', space=vmem, size = 0x8000, scoped, tag = 'input window, operand 2, single buffered']
    #allocation8 [shape = 'u8[32768]{0}', space=vmem, size = 0x8000, scoped, tag = 'input window, operand 4, single buffered']
    #allocation9 [shape = 's32[1]{0}', space=sflag, size = 0x4, scoped, tag = 'scoped memory for tpu_custom_call.1']
    #allocation10 [shape = 'u8[262144]{0}', space=vmem, size = 0x40000, scoped, tag = 'input window, operand 6, single buffered']
    #allocation11 [shape = 'u8[262144]{0}', space=vmem, size = 0x40000, scoped, tag = 'input window, operand 7, single buffered']
    #allocation12 [shape = 's32[1]{0}', space=sflag, size = 0x4, scoped, tag = 'scoped memory for tpu_custom_call.1']
    #allocation13 [shape = 'u8[32768]{0}', space=vmem, size = 0x8000, scoped, tag = 'input window, operand 9, single buffered']
    #allocation14 [shape = 'u8[57344]{0}', space=vmem, size = 0xe000, scoped, tag = 'output window, operand 0, single buffered']
    %18 = vsyncpa [#allocation3], 0
    %19 = vsyncpa [#allocation6], 0
    %20 = vsyncpa [#allocation9], 0
    %21 = vsyncpa [#allocation12], 0
    %22 = vsyncpa [#allocation4], 0
    // Predicated region
    $region2: #{tpu_custom_call.1} parent=1 // pred_check
      _
    $region3: #{tpu_custom_call.1} parent=1 // pred_check_branch
      %24 = sbr.rel (0) target = $region5
    $region4: #{tpu_custom_call.1} parent=1 // pred_region
      %s26 = ssub.s32 128, 128
      %27 = vsyncadd [#allocation3], %s26
      %s28 = sshll.u32 [#allocation2], 4
      %s29 = int_to_ptr.vmem [resolvable:$true] %s28
      %34 = dma.hbm_to_vmem [thread:$0]  %s0, 128, %s29, [#allocation3], 64, 64, 4
    $region5: #{tpu_custom_call.1} parent=1 // pred_fallthru
      _
    // Predicated region
    $region6: #{tpu_custom_call.1} parent=1 // pred_check
      _
    $region7: #{tpu_custom_call.1} parent=1 // pred_check_branch
      %36 = sbr.rel (0) target = $region9
    $region8: #{tpu_custom_call.1} parent=1 // pred_region
      %s38 = ssub.s32 128, 128
      %39 = vsyncadd [#allocation6], %s38
      %s40 = sshll.u32 [#allocation5], 4
      %s41 = int_to_ptr.vmem [resolvable:$true] %s40
      %46 = dma.hbm_to_vmem [thread:$0]  %s1, 128, %s41, [#allocation6], 64, 64, 4
    $region9: #{tpu_custom_call.1} parent=1 // pred_fallthru
      _
    // Predicated region
    $region10: #{tpu_custom_call.1} parent=1 // pred_check
      _
    $region11: #{tpu_custom_call.1} parent=1 // pred_check_branch
      %48 = sbr.rel (0) target = $region13
    $region12: #{tpu_custom_call.1} parent=1 // pred_region
      %s50 = ssub.s32 1024, 1024
      %51 = vsyncadd [#allocation6], %s50
      %s52 = sshll.u32 [#allocation7], 4
      %s53 = int_to_ptr.vmem [resolvable:$true] %s52
      %58 = dma.hbm_to_vmem [thread:$0]  %s2, 1024, %s53, [#allocation6], 64, 64, 4
    $region13: #{tpu_custom_call.1} parent=1 // pred_fallthru
      _
    // Predicated region
    $region14: #{tpu_custom_call.1} parent=1 // pred_check
      _
    $region15: #{tpu_custom_call.1} parent=1 // pred_check_branch
      %60 = sbr.rel (0) target = $region17
    $region16: #{tpu_custom_call.1} parent=1 // pred_region
      _
    $region17: #{tpu_custom_call.1} parent=1 // pred_fallthru
      _
    // Predicated region
    $region18: #{tpu_custom_call.1} parent=1 // pred_check
      _
    $region19: #{tpu_custom_call.1} parent=1 // pred_check_branch
      %62 = sbr.rel (0) target = $region21
    $region20: #{tpu_custom_call.1} parent=1 // pred_region
      %s64 = ssub.s32 1024, 1024
      %65 = vsyncadd [#allocation9], %s64
      %s66 = sshll.u32 [#allocation8], 4
      %s67 = int_to_ptr.vmem [resolvable:$true] %s66
      %72 = dma.hbm_to_vmem [thread:$0]  %s4, 1024, %s67, [#allocation9], 64, 64, 4
    $region21: #{tpu_custom_call.1} parent=1 // pred_fallthru
      _
    // Predicated region
    $region22: #{tpu_custom_call.1} parent=1 // pred_check
      _
    $region23: #{tpu_custom_call.1} parent=1 // pred_check_branch
      %74 = sbr.rel (0) target = $region25
    $region24: #{tpu_custom_call.1} parent=1 // pred_region
      _
    $region25: #{tpu_custom_call.1} parent=1 // pred_fallthru
      _
    // Predicated region
    $region26: #{tpu_custom_call.1} parent=1 // pred_check
      _
    $region27: #{tpu_custom_call.1} parent=1 // pred_check_branch
      %76 = sbr.rel (0) target = $region29
    $region28: #{tpu_custom_call.1} parent=1 // pred_region
      %s78 = ssub.s32 8192, 8192
      %79 = vsyncadd [#allocation9], %s78
      %s80 = sshll.u32 [#allocation10], 4
      %s81 = int_to_ptr.vmem [resolvable:$true] %s80
      %86 = dma.hbm_to_vmem [thread:$0]  %s6, 8192, %s81, [#allocation9], 256, 256, 16
    $region29: #{tpu_custom_call.1} parent=1 // pred_fallthru
      _
    // Predicated region
    $region30: #{tpu_custom_call.1} parent=1 // pred_check
      _
    $region31: #{tpu_custom_call.1} parent=1 // pred_check_branch
      %88 = sbr.rel (0) target = $region33
    $region32: #{tpu_custom_call.1} parent=1 // pred_region
      %s90 = ssub.s32 8192, 8192
      %91 = vsyncadd [#allocation12], %s90
      %s92 = sshll.u32 [#allocation11], 4
      %s93 = int_to_ptr.vmem [resolvable:$true] %s92
      %98 = dma.hbm_to_vmem [thread:$0]  %s7, 8192, %s93, [#allocation12], 256, 256, 16
    $region33: #{tpu_custom_call.1} parent=1 // pred_fallthru
      _
    // Predicated region
    $region34: #{tpu_custom_call.1} parent=1 // pred_check
      _
    $region35: #{tpu_custom_call.1} parent=1 // pred_check_branch
      %100 = sbr.rel (0) target = $region37
    $region36: #{tpu_custom_call.1} parent=1 // pred_region
      _
    $region37: #{tpu_custom_call.1} parent=1 // pred_fallthru
      _
    // Predicated region
    $region38: #{tpu_custom_call.1} parent=1 // pred_check
      _
    $region39: #{tpu_custom_call.1} parent=1 // pred_check_branch
      %102 = sbr.rel (0) target = $region41
    $region40: #{tpu_custom_call.1} parent=1 // pred_region
      %s104 = ssub.s32 1024, 1024
      %105 = vsyncadd [#allocation12], %s104
      %s106 = sshll.u32 [#allocation13], 4
      %s107 = int_to_ptr.vmem [resolvable:$true] %s106
      %112 = dma.hbm_to_vmem [thread:$0]  %s9, 1024, %s107, [#allocation12], 64, 64, 4
    $region41: #{tpu_custom_call.1} parent=1 // pred_fallthru
      _
    // Predicated region
    $region42: #{tpu_custom_call.1} parent=1 // pred_check
      _
    $region43: #{tpu_custom_call.1} parent=1 // pred_check_branch
      %114 = sbr.rel (0) target = $region45
    $region44: #{tpu_custom_call.1} parent=1 // pred_region
      _
    $region45: #{tpu_custom_call.1} parent=1 // pred_fallthru
      _
    // Predicated region
    $region46: #{tpu_custom_call.1} parent=1 // pred_check
      _
    $region47: #{tpu_custom_call.1} parent=1 // pred_check_branch
      %116 = sbr.rel (0) target = $region49
    $region48: #{tpu_custom_call.1} parent=1 // pred_region
      %117 = dma.done [#allocation3], 128
    $region49: #{tpu_custom_call.1} parent=1 // pred_fallthru
      _
    // Predicated region
    $region50: #{tpu_custom_call.1} parent=1 // pred_check
      _
    $region51: #{tpu_custom_call.1} parent=1 // pred_check_branch
      %119 = sbr.rel (0) target = $region53
    $region52: #{tpu_custom_call.1} parent=1 // pred_region
      %120 = dma.done [#allocation6], 128
    $region53: #{tpu_custom_call.1} parent=1 // pred_fallthru
      _
    // Predicated region
    $region54: #{tpu_custom_call.1} parent=1 // pred_check
      _
    $region55: #{tpu_custom_call.1} parent=1 // pred_check_branch
      %122 = sbr.rel (0) target = $region57
    $region56: #{tpu_custom_call.1} parent=1 // pred_region
      %123 = dma.done [#allocation6], 1024
    $region57: #{tpu_custom_call.1} parent=1 // pred_fallthru
      _
    // Predicated region
    $region58: #{tpu_custom_call.1} parent=1 // pred_check
      _
    $region59: #{tpu_custom_call.1} parent=1 // pred_check_branch
      %125 = sbr.rel (0) target = $region61
    $region60: #{tpu_custom_call.1} parent=1 // pred_region
      %126 = dma.done [#allocation9], 1024
    $region61: #{tpu_custom_call.1} parent=1 // pred_fallthru
      _
    // Predicated region
    $region62: #{tpu_custom_call.1} parent=1 // pred_check
      _
    $region63: #{tpu_custom_call.1} parent=1 // pred_check_branch
      %128 = sbr.rel (0) target = $region65
    $region64: #{tpu_custom_call.1} parent=1 // pred_region
      %129 = dma.done [#allocation9], 8192
    $region65: #{tpu_custom_call.1} parent=1 // pred_fallthru
      _
    // Predicated region
    $region66: #{tpu_custom_call.1} parent=1 // pred_check
      _
    $region67: #{tpu_custom_call.1} parent=1 // pred_check_branch
      %131 = sbr.rel (0) target = $region69
    $region68: #{tpu_custom_call.1} parent=1 // pred_region
      %132 = dma.done [#allocation12], 8192
    $region69: #{tpu_custom_call.1} parent=1 // pred_fallthru
      _
    // Predicated region
    $region70: #{tpu_custom_call.1} parent=1 // pred_check
      _
    $region71: #{tpu_custom_call.1} parent=1 // pred_check_branch
      %134 = sbr.rel (0) target = $region73
    $region72: #{tpu_custom_call.1} parent=1 // pred_region
      %135 = dma.done [#allocation12], 1024
    $region73: #{tpu_custom_call.1} parent=1 // pred_fallthru
      _
    %v137 = vld [vmem:[#allocation5] sm:$0xf]
    %v138 = vld [vmem:[#allocation5 + $0x4] sm:$0xf]
    %v139 = vld [vmem:[#allocation7] sm:$0xf]
    %v140 = vld [vmem:[#allocation7 + $0x4] sm:$0xf]
    %v141 = vld [vmem:[#allocation7 + $0x8] sm:$0xf]
    %v142 = vld [vmem:[#allocation7 + $0xc] sm:$0xf]
    %v143 = vld [vmem:[#allocation7 + $0x10] sm:$0xf]
    %v144 = vld [vmem:[#allocation7 + $0x14] sm:$0xf]
    %v145 = vld [vmem:[#allocation7 + $0x18] sm:$0xf]
    %v146 = vld [vmem:[#allocation7 + $0x1c] sm:$0xf]
    %v147 = vld [vmem:[#allocation7 + $0x20] sm:$0xf]
    %v148 = vld [vmem:[#allocation7 + $0x24] sm:$0xf]
    %v149 = vld [vmem:[#allocation7 + $0x28] sm:$0xf]
    %v150 = vld [vmem:[#allocation7 + $0x2c] sm:$0xf]
    %v151 = vld [vmem:[#allocation7 + $0x30] sm:$0xf]
    %v152 = vld [vmem:[#allocation7 + $0x34] sm:$0xf]
    %v153 = vld [vmem:[#allocation7 + $0x38] sm:$0xf]
    %v154 = vld [vmem:[#allocation7 + $0x3c] sm:$0xf]
    %v155 = vld [vmem:[%s3] sm:$0x1]
    %v157 = vlaneseq
    %v158 = vshrl.u32 %v157, 7
    %v159 = vsub.s32 0, %v158
    %v160 = vrot.slane %v155, %v159
    %v164 = vunpack.c.l.b16 %v137
    %v165 = vunpack.c.l.b16 %v138
    %v166 = vpack.c.b16 %v165, %v164
    %v184 = vunpack.c.l.b16 %v139
    %v185 = vunpack.c.l.b16 %v140
    %v186 = vunpack.c.l.b16 %v141
    %v187 = vunpack.c.l.b16 %v142
    %v188 = vunpack.c.l.b16 %v143
    %v189 = vunpack.c.l.b16 %v144
    %v190 = vunpack.c.l.b16 %v145
    %v191 = vunpack.c.l.b16 %v146
    %v192 = vunpack.c.l.b16 %v147
    %v193 = vunpack.c.l.b16 %v148
    %v194 = vunpack.c.l.b16 %v149
    %v195 = vunpack.c.l.b16 %v150
    %v196 = vunpack.c.l.b16 %v151
    %v197 = vunpack.c.l.b16 %v152
    %v198 = vunpack.c.l.b16 %v153
    %v199 = vunpack.c.l.b16 %v154
    %v200 = vpack.c.b16 %v185, %v184
    %v201 = vpack.c.b16 %v187, %v186
    %v202 = vpack.c.b16 %v189, %v188
    %v203 = vpack.c.b16 %v191, %v190
    %v204 = vpack.c.b16 %v193, %v192
    %v205 = vpack.c.b16 %v195, %v194
    %v206 = vpack.c.b16 %v197, %v196
    %v207 = vpack.c.b16 %v199, %v198
    %216 = vmatprep.subr.bf16.mxu0 0
    %217 = vmatpush1.bf16.msra.mxu0 %v207
    %218 = vmatprep.subr.bf16.mxu0 0
    %219 = vmatpush1.bf16.msra.mxu0 %v206
    %220 = vmatprep.subr.bf16.mxu0 0
    %221 = vmatpush1.bf16.msra.mxu0 %v205
    %222 = vmatprep.subr.bf16.mxu0 0
    %223 = vmatpush1.bf16.msra.mxu0 %v204
    %224 = vmatprep.subr.bf16.mxu0 0
    %225 = vmatpush1.bf16.msra.mxu0 %v203
    %226 = vmatprep.subr.bf16.mxu0 0
    %227 = vmatpush1.bf16.msra.mxu0 %v202
    %228 = vmatprep.subr.bf16.mxu0 0
    %229 = vmatpush1.bf16.msra.mxu0 %v201
    %230 = vmatprep.subr.bf16.mxu0 0
    %231 = vmatpush1.bf16.msra.mxu0 %v200
    %232 = vmatprep.subr.bf16.mxu0 0
    %233 = vmatpush2.bf16.msra.mxu0 0
    %234 = vmatprep.subr.bf16.mxu0 0
    %235 = vmatpush2.bf16.msra.mxu0 0
    %236 = vmatprep.subr.bf16.mxu0 0
    %237 = vmatpush2.bf16.msra.mxu0 0
    %238 = vmatprep.subr.bf16.mxu0 0
    %239 = vmatpush2.bf16.msra.mxu0 0
    %240 = vmatprep.subr.bf16.mxu0 0
    %241 = vmatpush2.bf16.msra.mxu0 0
    %242 = vmatprep.subr.bf16.mxu0 0
    %243 = vmatpush2.bf16.msra.mxu0 0
    %244 = vmatprep.subr.bf16.mxu0 0
    %245 = vmatpush2.bf16.msra.mxu0 0
    %246 = vmatprep.subr.bf16.mxu0 0
    %247 = vmatpush2.bf16.msra.mxu0 0
    %248 = vmatprep.mubr.bf16.mxu0 0
    %249 = vmatmul.mubr.bf16.gmra.mxu0 %v166
    %v250 = vpop.f32.mrf.mxu0
    %v251 = vadd.f32 %v160, %v250
    %v252 = vpop.f32.mrf.mxu0
    %v253 = vpop.f32.mrf.mxu0
    %v254 = vadd.f32 %v160, %v253
    %v255 = vpop.f32.mrf.mxu0
    %256 = vdwg.mxu0
    %v257 = vpack.c.bf16 %v254, %v251
    %v258 = vld [vmem:[#allocation10] sm:$0xff]
    %v259 = vld [vmem:[#allocation10 + $0x8] sm:$0xff]
    %v260 = vld [vmem:[#allocation10 + $0x10] sm:$0xff]
    %v261 = vld [vmem:[#allocation10 + $0x18] sm:$0xff]
    %v262 = vld [vmem:[#allocation10 + $0x20] sm:$0xff]
    %v263 = vld [vmem:[#allocation10 + $0x28] sm:$0xff]
    %v264 = vld [vmem:[#allocation10 + $0x30] sm:$0xff]
    %v265 = vld [vmem:[#allocation10 + $0x38] sm:$0xff]
    %v266 = vld [vmem:[#allocation10 + $0x40] sm:$0xff]
    %v267 = vld [vmem:[#allocation10 + $0x48] sm:$0xff]
    %v268 = vld [vmem:[#allocation10 + $0x50] sm:$0xff]
    %v269 = vld [vmem:[#allocation10 + $0x58] sm:$0xff]
    %v270 = vld [vmem:[#allocation10 + $0x60] sm:$0xff]
    %v271 = vld [vmem:[#allocation10 + $0x68] sm:$0xff]
    %v272 = vld [vmem:[#allocation10 + $0x70] sm:$0xff]
    %v273 = vld [vmem:[#allocation10 + $0x78] sm:$0xff]
    %v274 = vld [vmem:[#allocation10 + $0x80] sm:$0xff]
    %v275 = vld [vmem:[#allocation10 + $0x88] sm:$0xff]
    %v276 = vld [vmem:[#allocation10 + $0x90] sm:$0xff]
    %v277 = vld [vmem:[#allocation10 + $0x98] sm:$0xff]
    %v278 = vld [vmem:[#allocation10 + $0xa0] sm:$0xff]
    %v279 = vld [vmem:[#allocation10 + $0xa8] sm:$0xff]
    %v280 = vld [vmem:[#allocation10 + $0xb0] sm:$0xff]
    %v281 = vld [vmem:[#allocation10 + $0xb8] sm:$0xff]
    %v282 = vld [vmem:[#allocation10 + $0xc0] sm:$0xff]
    %v283 = vld [vmem:[#allocation10 + $0xc8] sm:$0xff]
    %v284 = vld [vmem:[#allocation10 + $0xd0] sm:$0xff]
    %v285 = vld [vmem:[#allocation10 + $0xd8] sm:$0xff]
    %v286 = vld [vmem:[#allocation10 + $0xe0] sm:$0xff]
    %v287 = vld [vmem:[#allocation10 + $0xe8] sm:$0xff]
    %v288 = vld [vmem:[#allocation10 + $0xf0] sm:$0xff]
    %v289 = vld [vmem:[#allocation10 + $0xf8] sm:$0xff]
    %v290 = vld [vmem:[#allocation10 + $0x100] sm:$0xff]
    %v291 = vld [vmem:[#allocation10 + $0x108] sm:$0xff]
    %v292 = vld [vmem:[#allocation10 + $0x110] sm:$0xff]
    %v293 = vld [vmem:[#allocation10 + $0x118] sm:$0xff]
    %v294 = vld [vmem:[#allocation10 + $0x120] sm:$0xff]
    %v295 = vld [vmem:[#allocation10 + $0x128] sm:$0xff]
    %v296 = vld [vmem:[#allocation10 + $0x130] sm:$0xff]
    %v297 = vld [vmem:[#allocation10 + $0x138] sm:$0xff]
    %v298 = vld [vmem:[#allocation10 + $0x140] sm:$0xff]
    %v299 = vld [vmem:[#allocation10 + $0x148] sm:$0xff]
    %v300 = vld [vmem:[#allocation10 + $0x150] sm:$0xff]
    %v301 = vld [vmem:[#allocation10 + $0x158] sm:$0xff]
    %v302 = vld [vmem:[#allocation10 + $0x160] sm:$0xff]
    %v303 = vld [vmem:[#allocation10 + $0x168] sm:$0xff]
    %v304 = vld [vmem:[#allocation10 + $0x170] sm:$0xff]
    %v305 = vld [vmem:[#allocation10 + $0x178] sm:$0xff]
    %v306 = vld [vmem:[#allocation10 + $0x180] sm:$0xff]
    %v307 = vld [vmem:[#allocation10 + $0x188] sm:$0xff]
    %v308 = vld [vmem:[#allocation10 + $0x190] sm:$0xff]
    %v309 = vld [vmem:[#allocation10 + $0x198] sm:$0xff]
    %v310 = vld [vmem:[#allocation10 + $0x1a0] sm:$0xff]
    %v311 = vld [vmem:[#allocation10 + $0x1a8] sm:$0xff]
    %v312 = vld [vmem:[#allocation10 + $0x1b0] sm:$0xff]
    %v313 = vld [vmem:[#allocation10 + $0x1b8] sm:$0xff]
    %v314 = vld [vmem:[#allocation10 + $0x1c0] sm:$0xff]
    %v315 = vld [vmem:[#allocation10 + $0x1c8] sm:$0xff]
    %v316 = vld [vmem:[#allocation10 + $0x1d0] sm:$0xff]
    %v317 = vld [vmem:[#allocation10 + $0x1d8] sm:$0xff]
    %v318 = vld [vmem:[#allocation10 + $0x1e0] sm:$0xff]
    %v319 = vld [vmem:[#allocation10 + $0x1e8] sm:$0xff]
    %v320 = vld [vmem:[#allocation10 + $0x1f0] sm:$0xff]
    %v321 = vld [vmem:[#allocation10 + $0x1f8] sm:$0xff]
    %v322 = vld [vmem:[%s8] sm:$0xf]
    %v324 = vlaneseq
    %v325 = vshrl.u32 %v324, 7
    %v326 = vsub.s32 0, %v325
    %v327 = vrot.slane %v322, %v326
    %v328 = vlaneseq
    %v329 = vshrl.u32 %v328, 7
    %v330 = vsub.s32 1, %v329
    %v331 = vrot.slane %v322, %v330
    %v332 = vlaneseq
    %v333 = vshrl.u32 %v332, 7
    %v334 = vsub.s32 2, %v333
    %v335 = vrot.slane %v322, %v334
    %v336 = vlaneseq
    %v337 = vshrl.u32 %v336, 7
    %v338 = vsub.s32 3, %v337
    %v339 = vrot.slane %v322, %v338
    %v408 = vunpack.c.l.b16 %v258
    %v409 = vunpack.c.h.b16 %v258
    %v410 = vunpack.c.l.b16 %v259
    %v411 = vunpack.c.h.b16 %v259
    %v412 = vunpack.c.l.b16 %v260
    %v413 = vunpack.c.h.b16 %v260
    %v414 = vunpack.c.l.b16 %v261
    %v415 = vunpack.c.h.b16 %v261
    %v416 = vunpack.c.l.b16 %v262
    %v417 = vunpack.c.h.b16 %v262
    %v418 = vunpack.c.l.b16 %v263
    %v419 = vunpack.c.h.b16 %v263
    %v420 = vunpack.c.l.b16 %v264
    %v421 = vunpack.c.h.b16 %v264
    %v422 = vunpack.c.l.b16 %v265
    %v423 = vunpack.c.h.b16 %v265
    %v424 = vunpack.c.l.b16 %v266
    %v425 = vunpack.c.h.b16 %v266
    %v426 = vunpack.c.l.b16 %v267
    %v427 = vunpack.c.h.b16 %v267
    %v428 = vunpack.c.l.b16 %v268
    %v429 = vunpack.c.h.b16 %v268
    %v430 = vunpack.c.l.b16 %v269
    %v431 = vunpack.c.h.b16 %v269
    %v432 = vunpack.c.l.b16 %v270
    %v433 = vunpack.c.h.b16 %v270
    %v434 = vunpack.c.l.b16 %v271
    %v435 = vunpack.c.h.b16 %v271
    %v436 = vunpack.c.l.b16 %v272
    %v437 = vunpack.c.h.b16 %v272
    %v438 = vunpack.c.l.b16 %v273
    %v439 = vunpack.c.h.b16 %v273
    %v440 = vunpack.c.l.b16 %v274
    %v441 = vunpack.c.h.b16 %v274
    %v442 = vunpack.c.l.b16 %v275
    %v443 = vunpack.c.h.b16 %v275
    %v444 = vunpack.c.l.b16 %v276
    %v445 = vunpack.c.h.b16 %v276
    %v446 = vunpack.c.l.b16 %v277
    %v447 = vunpack.c.h.b16 %v277
    %v448 = vunpack.c.l.b16 %v278
    %v449 = vunpack.c.h.b16 %v278
    %v450 = vunpack.c.l.b16 %v279
    %v451 = vunpack.c.h.b16 %v279
    %v452 = vunpack.c.l.b16 %v280
    %v453 = vunpack.c.h.b16 %v280
    %v454 = vunpack.c.l.b16 %v281
    %v455 = vunpack.c.h.b16 %v281
    %v456 = vunpack.c.l.b16 %v282
    %v457 = vunpack.c.h.b16 %v282
    %v458 = vunpack.c.l.b16 %v283
    %v459 = vunpack.c.h.b16 %v283
    %v460 = vunpack.c.l.b16 %v284
    %v461 = vunpack.c.h.b16 %v284
    %v462 = vunpack.c.l.b16 %v285
    %v463 = vunpack.c.h.b16 %v285
    %v464 = vunpack.c.l.b16 %v286
    %v465 = vunpack.c.h.b16 %v286
    %v466 = vunpack.c.l.b16 %v287
    %v467 = vunpack.c.h.b16 %v287
    %v468 = vunpack.c.l.b16 %v288
    %v469 = vunpack.c.h.b16 %v288
    %v470 = vunpack.c.l.b16 %v289
    %v471 = vunpack.c.h.b16 %v289
    %v472 = vunpack.c.l.b16 %v290
    %v473 = vunpack.c.h.b16 %v290
    %v474 = vunpack.c.l.b16 %v291
    %v475 = vunpack.c.h.b16 %v291
    %v476 = vunpack.c.l.b16 %v292
    %v477 = vunpack.c.h.b16 %v292
    %v478 = vunpack.c.l.b16 %v293
    %v479 = vunpack.c.h.b16 %v293
    %v480 = vunpack.c.l.b16 %v294
    %v481 = vunpack.c.h.b16 %v294
    %v482 = vunpack.c.l.b16 %v295
    %v483 = vunpack.c.h.b16 %v295
    %v484 = vunpack.c.l.b16 %v296
    %v485 = vunpack.c.h.b16 %v296
    %v486 = vunpack.c.l.b16 %v297
    %v487 = vunpack.c.h.b16 %v297
    %v488 = vunpack.c.l.b16 %v298
    %v489 = vunpack.c.h.b16 %v298
    %v490 = vunpack.c.l.b16 %v299
    %v491 = vunpack.c.h.b16 %v299
    %v492 = vunpack.c.l.b16 %v300
    %v493 = vunpack.c.h.b16 %v300
    %v494 = vunpack.c.l.b16 %v301
    %v495 = vunpack.c.h.b16 %v301
    %v496 = vunpack.c.l.b16 %v302
    %v497 = vunpack.c.h.b16 %v302
    %v498 = vunpack.c.l.b16 %v303
    %v499 = vunpack.c.h.b16 %v303
    %v500 = vunpack.c.l.b16 %v304
    %v501 = vunpack.c.h.b16 %v304
    %v502 = vunpack.c.l.b16 %v305
    %v503 = vunpack.c.h.b16 %v305
    %v504 = vunpack.c.l.b16 %v306
    %v505 = vunpack.c.h.b16 %v306
    %v506 = vunpack.c.l.b16 %v307
    %v507 = vunpack.c.h.b16 %v307
    %v508 = vunpack.c.l.b16 %v308
    %v509 = vunpack.c.h.b16 %v308
    %v510 = vunpack.c.l.b16 %v309
    %v511 = vunpack.c.h.b16 %v309
    %v512 = vunpack.c.l.b16 %v310
    %v513 = vunpack.c.h.b16 %v310
    %v514 = vunpack.c.l.b16 %v311
    %v515 = vunpack.c.h.b16 %v311
    %v516 = vunpack.c.l.b16 %v312
    %v517 = vunpack.c.h.b16 %v312
    %v518 = vunpack.c.l.b16 %v313
    %v519 = vunpack.c.h.b16 %v313
    %v520 = vunpack.c.l.b16 %v314
    %v521 = vunpack.c.h.b16 %v314
    %v522 = vunpack.c.l.b16 %v315
    %v523 = vunpack.c.h.b16 %v315
    %v524 = vunpack.c.l.b16 %v316
    %v525 = vunpack.c.h.b16 %v316
    %v526 = vunpack.c.l.b16 %v317
    %v527 = vunpack.c.h.b16 %v317
    %v528 = vunpack.c.l.b16 %v318
    %v529 = vunpack.c.h.b16 %v318
    %v530 = vunpack.c.l.b16 %v319
    %v531 = vunpack.c.h.b16 %v319
    %v532 = vunpack.c.l.b16 %v320
    %v533 = vunpack.c.h.b16 %v320
    %v534 = vunpack.c.l.b16 %v321
    %v535 = vunpack.c.h.b16 %v321
    %v536 = vpack.c.b16 %v412, %v408
    %v537 = vpack.c.b16 %v413, %v409
    %v538 = vpack.c.b16 %v414, %v410
    %v539 = vpack.c.b16 %v415, %v411
    %v540 = vpack.c.b16 %v420, %v416
    %v541 = vpack.c.b16 %v421, %v417
    %v542 = vpack.c.b16 %v422, %v418
    %v543 = vpack.c.b16 %v423, %v419
    %v544 = vpack.c.b16 %v428, %v424
    %v545 = vpack.c.b16 %v429, %v425
    %v546 = vpack.c.b16 %v430, %v426
    %v547 = vpack.c.b16 %v431, %v427
    %v548 = vpack.c.b16 %v436, %v432
    %v549 = vpack.c.b16 %v437, %v433
    %v550 = vpack.c.b16 %v438, %v434
    %v551 = vpack.c.b16 %v439, %v435
    %v552 = vpack.c.b16 %v444, %v440
    %v553 = vpack.c.b16 %v445, %v441
    %v554 = vpack.c.b16 %v446, %v442
    %v555 = vpack.c.b16 %v447, %v443
    %v556 = vpack.c.b16 %v452, %v448
    %v557 = vpack.c.b16 %v453, %v449
    %v558 = vpack.c.b16 %v454, %v450
    %v559 = vpack.c.b16 %v455, %v451
    %v560 = vpack.c.b16 %v460, %v456
    %v561 = vpack.c.b16 %v461, %v457
    %v562 = vpack.c.b16 %v462, %v458
    %v563 = vpack.c.b16 %v463, %v459
    %v564 = vpack.c.b16 %v468, %v464
    %v565 = vpack.c.b16 %v469, %v465
    %v566 = vpack.c.b16 %v470, %v466
    %v567 = vpack.c.b16 %v471, %v467
    %v568 = vpack.c.b16 %v476, %v472
    %v569 = vpack.c.b16 %v477, %v473
    %v570 = vpack.c.b16 %v478, %v474
    %v571 = vpack.c.b16 %v479, %v475
    %v572 = vpack.c.b16 %v484, %v480
    %v573 = vpack.c.b16 %v485, %v481
    %v574 = vpack.c.b16 %v486, %v482
    %v575 = vpack.c.b16 %v487, %v483
    %v576 = vpack.c.b16 %v492, %v488
    %v577 = vpack.c.b16 %v493, %v489
    %v578 = vpack.c.b16 %v494, %v490
    %v579 = vpack.c.b16 %v495, %v491
    %v580 = vpack.c.b16 %v500, %v496
    %v581 = vpack.c.b16 %v501, %v497
    %v582 = vpack.c.b16 %v502, %v498
    %v583 = vpack.c.b16 %v503, %v499
    %v584 = vpack.c.b16 %v508, %v504
    %v585 = vpack.c.b16 %v509, %v505
    %v586 = vpack.c.b16 %v510, %v506
    %v587 = vpack.c.b16 %v511, %v507
    %v588 = vpack.c.b16 %v516, %v512
    %v589 = vpack.c.b16 %v517, %v513
    %v590 = vpack.c.b16 %v518, %v514
    %v591 = vpack.c.b16 %v519, %v515
    %v592 = vpack.c.b16 %v524, %v520
    %v593 = vpack.c.b16 %v525, %v521
    %v594 = vpack.c.b16 %v526, %v522
    %v595 = vpack.c.b16 %v527, %v523
    %v596 = vpack.c.b16 %v532, %v528
    %v597 = vpack.c.b16 %v533, %v529
    %v598 = vpack.c.b16 %v534, %v530
    %v599 = vpack.c.b16 %v535, %v531
    %664 = vmatprep.subr.bf16.mxu0 %v565
    %665 = vmatpush1.bf16.msra.mxu0 %v564
    %666 = vmatprep.subr.bf16.mxu0 %v561
    %667 = vmatpush1.bf16.msra.mxu0 %v560
    %668 = vmatprep.subr.bf16.mxu0 %v557
    %669 = vmatpush1.bf16.msra.mxu0 %v556
    %670 = vmatprep.subr.bf16.mxu0 %v553
    %671 = vmatpush1.bf16.msra.mxu0 %v552
    %672 = vmatprep.subr.bf16.mxu0 %v549
    %673 = vmatpush1.bf16.msra.mxu0 %v548
    %674 = vmatprep.subr.bf16.mxu0 %v545
    %675 = vmatpush1.bf16.msra.mxu0 %v544
    %676 = vmatprep.subr.bf16.mxu0 %v541
    %677 = vmatpush1.bf16.msra.mxu0 %v540
    %678 = vmatprep.subr.bf16.mxu0 %v537
    %679 = vmatpush1.bf16.msra.mxu0 %v536
    %680 = vmatprep.subr.bf16.mxu0 %v597
    %681 = vmatpush2.bf16.msra.mxu0 %v596
    %682 = vmatprep.subr.bf16.mxu0 %v593
    %683 = vmatpush2.bf16.msra.mxu0 %v592
    %684 = vmatprep.subr.bf16.mxu0 %v589
    %685 = vmatpush2.bf16.msra.mxu0 %v588
    %686 = vmatprep.subr.bf16.mxu0 %v585
    %687 = vmatpush2.bf16.msra.mxu0 %v584
    %688 = vmatprep.subr.bf16.mxu0 %v581
    %689 = vmatpush2.bf16.msra.mxu0 %v580
    %690 = vmatprep.subr.bf16.mxu0 %v577
    %691 = vmatpush2.bf16.msra.mxu0 %v576
    %692 = vmatprep.subr.bf16.mxu0 %v573
    %693 = vmatpush2.bf16.msra.mxu0 %v572
    %694 = vmatprep.subr.bf16.mxu0 %v569
    %695 = vmatpush2.bf16.msra.mxu0 %v568
    %696 = vmatprep.mubr.bf16.mxu0 0
    %697 = vmatmul.mubr.bf16.gmra.mxu0 %v257
    %v698 = vpop.f32.mrf.mxu0
    %v699 = vadd.f32 %v327, %v698
    %v700 = vpop.f32.mrf.mxu0
    %v701 = vadd.f32 %v331, %v700
    %v702 = vpop.f32.mrf.mxu0
    %v703 = vadd.f32 %v327, %v702
    %v704 = vpop.f32.mrf.mxu0
    %v705 = vadd.f32 %v331, %v704
    %706 = vdwg.mxu0
    %707 = vmatprep.subr.bf16.mxu0 %v567
    %708 = vmatpush1.bf16.msra.mxu0 %v566
    %709 = vmatprep.subr.bf16.mxu0 %v563
    %710 = vmatpush1.bf16.msra.mxu0 %v562
    %711 = vmatprep.subr.bf16.mxu0 %v559
    %712 = vmatpush1.bf16.msra.mxu0 %v558
    %713 = vmatprep.subr.bf16.mxu0 %v555
    %714 = vmatpush1.bf16.msra.mxu0 %v554
    %715 = vmatprep.subr.bf16.mxu0 %v551
    %716 = vmatpush1.bf16.msra.mxu0 %v550
    %717 = vmatprep.subr.bf16.mxu0 %v547
    %718 = vmatpush1.bf16.msra.mxu0 %v546
    %719 = vmatprep.subr.bf16.mxu0 %v543
    %720 = vmatpush1.bf16.msra.mxu0 %v542
    %721 = vmatprep.subr.bf16.mxu0 %v539
    %722 = vmatpush1.bf16.msra.mxu0 %v538
    %723 = vmatprep.subr.bf16.mxu0 %v599
    %724 = vmatpush2.bf16.msra.mxu0 %v598
    %725 = vmatprep.subr.bf16.mxu0 %v595
    %726 = vmatpush2.bf16.msra.mxu0 %v594
    %727 = vmatprep.subr.bf16.mxu0 %v591
    %728 = vmatpush2.bf16.msra.mxu0 %v590
    %729 = vmatprep.subr.bf16.mxu0 %v587
    %730 = vmatpush2.bf16.msra.mxu0 %v586
    %731 = vmatprep.subr.bf16.mxu0 %v583
    %732 = vmatpush2.bf16.msra.mxu0 %v582
    %733 = vmatprep.subr.bf16.mxu0 %v579
    %734 = vmatpush2.bf16.msra.mxu0 %v578
    %735 = vmatprep.subr.bf16.mxu0 %v575
    %736 = vmatpush2.bf16.msra.mxu0 %v574
    %737 = vmatprep.subr.bf16.mxu0 %v571
    %738 = vmatpush2.bf16.msra.mxu0 %v570
    %739 = vmatprep.mubr.bf16.mxu0 0
    %740 = vmatmul.mubr.bf16.gmra.mxu0 %v257
    %v741 = vpop.f32.mrf.mxu0
    %v742 = vadd.f32 %v335, %v741
    %v743 = vpop.f32.mrf.mxu0
    %v744 = vadd.f32 %v339, %v743
    %v745 = vpop.f32.mrf.mxu0
    %v746 = vadd.f32 %v335, %v745
    %v747 = vpop.f32.mrf.mxu0
    %v748 = vadd.f32 %v339, %v747
    %749 = vdwg.mxu0
    %v750 = vsub.f32 0.0, %v699
    %v751 = vsub.f32 0.0, %v703
    %v752 = vmul.f32 %v750, 1.442695
    %v753 = vpow.pop %v752
    %v754 = vmul.f32 %v751, 1.442695
    %v755 = vpow.pop %v754
    %v756 = vadd.f32 %v753, 1.0
    %v757 = vadd.f32 %v755, 1.0
    %v758 = vrcp.pop %v756
    %v759 = vmul.f32 1.0, %v758
    %v760 = vrcp.pop %v757
    %v761 = vmul.f32 1.0, %v760
    %v762 = vsub.f32 0.0, %v701
    %v763 = vsub.f32 0.0, %v705
    %v764 = vmul.f32 %v762, 1.442695
    %v765 = vpow.pop %v764
    %v766 = vmul.f32 %v763, 1.442695
    %v767 = vpow.pop %v766
    %v768 = vadd.f32 %v765, 1.0
    %v769 = vadd.f32 %v767, 1.0
    %v770 = vrcp.pop %v768
    %v771 = vmul.f32 1.0, %v770
    %v772 = vrcp.pop %v769
    %v773 = vmul.f32 1.0, %v772
    %v774 = vtanh.pop %v742
    %v775 = vtanh.pop %v746
    %v776 = vsub.f32 0.0, %v744
    %v777 = vsub.f32 0.0, %v748
    %v778 = vmul.f32 %v776, 1.442695
    %v779 = vpow.pop %v778
    %v780 = vmul.f32 %v777, 1.442695
    %v781 = vpow.pop %v780
    %v782 = vadd.f32 %v779, 1.0
    %v783 = vadd.f32 %v781, 1.0
    %v784 = vrcp.pop %v782
    %v785 = vmul.f32 1.0, %v784
    %v786 = vrcp.pop %v783
    %v787 = vmul.f32 1.0, %v786
    %v788 = vmul.f32 %v771, 0.0
    %v789 = vmul.f32 %v773, 0.0
    %v790 = vmul.f32 %v759, %v774
    %v791 = vmul.f32 %v761, %v775
    %v792 = vadd.f32 %v788, %v790
    %v793 = vadd.f32 %v789, %v791
    %v794 = vtanh.pop %v792
    %v795 = vtanh.pop %v793
    %v796 = vmul.f32 %v785, %v794
    %v797 = vmul.f32 %v787, %v795
    %v798 = vld [vmem:[#allocation2] sm:$0xf]
    %v799 = vld [vmem:[#allocation2 + $0x4] sm:$0xf]
    %v800 = vld [vmem:[#allocation8] sm:$0xf]
    %v801 = vld [vmem:[#allocation8 + $0x4] sm:$0xf]
    %v802 = vld [vmem:[#allocation8 + $0x8] sm:$0xf]
    %v803 = vld [vmem:[#allocation8 + $0xc] sm:$0xf]
    %v804 = vld [vmem:[#allocation8 + $0x10] sm:$0xf]
    %v805 = vld [vmem:[#allocation8 + $0x14] sm:$0xf]
    %v806 = vld [vmem:[#allocation8 + $0x18] sm:$0xf]
    %v807 = vld [vmem:[#allocation8 + $0x1c] sm:$0xf]
    %v808 = vld [vmem:[#allocation8 + $0x20] sm:$0xf]
    %v809 = vld [vmem:[#allocation8 + $0x24] sm:$0xf]
    %v810 = vld [vmem:[#allocation8 + $0x28] sm:$0xf]
    %v811 = vld [vmem:[#allocation8 + $0x2c] sm:$0xf]
    %v812 = vld [vmem:[#allocation8 + $0x30] sm:$0xf]
    %v813 = vld [vmem:[#allocation8 + $0x34] sm:$0xf]
    %v814 = vld [vmem:[#allocation8 + $0x38] sm:$0xf]
    %v815 = vld [vmem:[#allocation8 + $0x3c] sm:$0xf]
    %v816 = vld [vmem:[%s5] sm:$0x1]
    %v818 = vlaneseq
    %v819 = vshrl.u32 %v818, 7
    %v820 = vsub.s32 0, %v819
    %v821 = vrot.slane %v816, %v820
    %v825 = vunpack.c.l.b16 %v798
    %v826 = vunpack.c.l.b16 %v799
    %v827 = vpack.c.b16 %v826, %v825
    %v845 = vunpack.c.l.b16 %v800
    %v846 = vunpack.c.l.b16 %v801
    %v847 = vunpack.c.l.b16 %v802
    %v848 = vunpack.c.l.b16 %v803
    %v849 = vunpack.c.l.b16 %v804
    %v850 = vunpack.c.l.b16 %v805
    %v851 = vunpack.c.l.b16 %v806
    %v852 = vunpack.c.l.b16 %v807
    %v853 = vunpack.c.l.b16 %v808
    %v854 = vunpack.c.l.b16 %v809
    %v855 = vunpack.c.l.b16 %v810
    %v856 = vunpack.c.l.b16 %v811
    %v857 = vunpack.c.l.b16 %v812
    %v858 = vunpack.c.l.b16 %v813
    %v859 = vunpack.c.l.b16 %v814
    %v860 = vunpack.c.l.b16 %v815
    %v861 = vpack.c.b16 %v846, %v845
    %v862 = vpack.c.b16 %v848, %v847
    %v863 = vpack.c.b16 %v850, %v849
    %v864 = vpack.c.b16 %v852, %v851
    %v865 = vpack.c.b16 %v854, %v853
    %v866 = vpack.c.b16 %v856, %v855
    %v867 = vpack.c.b16 %v858, %v857
    %v868 = vpack.c.b16 %v860, %v859
    %877 = vmatprep.subr.bf16.mxu0 0
    %878 = vmatpush1.bf16.msra.mxu0 %v868
    %879 = vmatprep.subr.bf16.mxu0 0
    %880 = vmatpush1.bf16.msra.mxu0 %v867
    %881 = vmatprep.subr.bf16.mxu0 0
    %882 = vmatpush1.bf16.msra.mxu0 %v866
    %883 = vmatprep.subr.bf16.mxu0 0
    %884 = vmatpush1.bf16.msra.mxu0 %v865
    %885 = vmatprep.subr.bf16.mxu0 0
    %886 = vmatpush1.bf16.msra.mxu0 %v864
    %887 = vmatprep.subr.bf16.mxu0 0
    %888 = vmatpush1.bf16.msra.mxu0 %v863
    %889 = vmatprep.subr.bf16.mxu0 0
    %890 = vmatpush1.bf16.msra.mxu0 %v862
    %891 = vmatprep.subr.bf16.mxu0 0
    %892 = vmatpush1.bf16.msra.mxu0 %v861
    %893 = vmatprep.subr.bf16.mxu0 0
    %894 = vmatpush2.bf16.msra.mxu0 0
    %895 = vmatprep.subr.bf16.mxu0 0
    %896 = vmatpush2.bf16.msra.mxu0 0
    %897 = vmatprep.subr.bf16.mxu0 0
    %898 = vmatpush2.bf16.msra.mxu0 0
    %899 = vmatprep.subr.bf16.mxu0 0
    %900 = vmatpush2.bf16.msra.mxu0 0
    %901 = vmatprep.subr.bf16.mxu0 0
    %902 = vmatpush2.bf16.msra.mxu0 0
    %903 = vmatprep.subr.bf16.mxu0 0
    %904 = vmatpush2.bf16.msra.mxu0 0
    %905 = vmatprep.subr.bf16.mxu0 0
    %906 = vmatpush2.bf16.msra.mxu0 0
    %907 = vmatprep.subr.bf16.mxu0 0
    %908 = vmatpush2.bf16.msra.mxu0 0
    %909 = vmatprep.mubr.bf16.mxu0 0
    %910 = vmatmul.mubr.bf16.gmra.mxu0 %v827
    %v911 = vpop.f32.mrf.mxu0
    %v912 = vadd.f32 %v821, %v911
    %v913 = vpop.f32.mrf.mxu0
    %v914 = vpop.f32.mrf.mxu0
    %v915 = vadd.f32 %v821, %v914
    %v916 = vpop.f32.mrf.mxu0
    %917 = vdwg.mxu0
    %v918 = vpack.c.bf16 %v915, %v912
    %v919 = vpack.c.bf16 %v797, %v796
    %920 = vmatprep.subr.bf16.mxu0 %v565
    %921 = vmatpush1.bf16.msra.mxu0 %v564
    %922 = vmatprep.subr.bf16.mxu0 %v561
    %923 = vmatpush1.bf16.msra.mxu0 %v560
    %924 = vmatprep.subr.bf16.mxu0 %v557
    %925 = vmatpush1.bf16.msra.mxu0 %v556
    %926 = vmatprep.subr.bf16.mxu0 %v553
    %927 = vmatpush1.bf16.msra.mxu0 %v552
    %928 = vmatprep.subr.bf16.mxu0 %v549
    %929 = vmatpush1.bf16.msra.mxu0 %v548
    %930 = vmatprep.subr.bf16.mxu0 %v545
    %931 = vmatpush1.bf16.msra.mxu0 %v544
    %932 = vmatprep.subr.bf16.mxu0 %v541
    %933 = vmatpush1.bf16.msra.mxu0 %v540
    %934 = vmatprep.subr.bf16.mxu0 %v537
    %935 = vmatpush1.bf16.msra.mxu0 %v536
    %936 = vmatprep.subr.bf16.mxu0 %v597
    %937 = vmatpush2.bf16.msra.mxu0 %v596
    %938 = vmatprep.subr.bf16.mxu0 %v593
    %939 = vmatpush2.bf16.msra.mxu0 %v592
    %940 = vmatprep.subr.bf16.mxu0 %v589
    %941 = vmatpush2.bf16.msra.mxu0 %v588
    %942 = vmatprep.subr.bf16.mxu0 %v585
    %943 = vmatpush2.bf16.msra.mxu0 %v584
    %944 = vmatprep.subr.bf16.mxu0 %v581
    %945 = vmatpush2.bf16.msra.mxu0 %v580
    %946 = vmatprep.subr.bf16.mxu0 %v577
    %947 = vmatpush2.bf16.msra.mxu0 %v576
    %948 = vmatprep.subr.bf16.mxu0 %v573
    %949 = vmatpush2.bf16.msra.mxu0 %v572
    %950 = vmatprep.subr.bf16.mxu0 %v569
    %951 = vmatpush2.bf16.msra.mxu0 %v568
    %952 = vmatprep.mubr.bf16.mxu0 %v919
    %953 = vmatmul.mubr.bf16.gmra.mxu0 %v918
    %v954 = vpop.f32.mrf.mxu0
    %v955 = vadd.f32 %v327, %v954
    %v956 = vpop.f32.mrf.mxu0
    %v957 = vadd.f32 %v331, %v956
    %v958 = vpop.f32.mrf.mxu0
    %v959 = vadd.f32 %v327, %v958
    %v960 = vpop.f32.mrf.mxu0
    %v961 = vadd.f32 %v331, %v960
    %962 = vdwg.mxu0
    %963 = vmatprep.subr.bf16.mxu0 %v567
    %964 = vmatpush1.bf16.msra.mxu0 %v566
    %965 = vmatprep.subr.bf16.mxu0 %v563
    %966 = vmatpush1.bf16.msra.mxu0 %v562
    %967 = vmatprep.subr.bf16.mxu0 %v559
    %968 = vmatpush1.bf16.msra.mxu0 %v558
    %969 = vmatprep.subr.bf16.mxu0 %v555
    %970 = vmatpush1.bf16.msra.mxu0 %v554
    %971 = vmatprep.subr.bf16.mxu0 %v551
    %972 = vmatpush1.bf16.msra.mxu0 %v550
    %973 = vmatprep.subr.bf16.mxu0 %v547
    %974 = vmatpush1.bf16.msra.mxu0 %v546
    %975 = vmatprep.subr.bf16.mxu0 %v543
    %976 = vmatpush1.bf16.msra.mxu0 %v542
    %977 = vmatprep.subr.bf16.mxu0 %v539
    %978 = vmatpush1.bf16.msra.mxu0 %v538
    %979 = vmatprep.subr.bf16.mxu0 %v599
    %980 = vmatpush2.bf16.msra.mxu0 %v598
    %981 = vmatprep.subr.bf16.mxu0 %v595
    %982 = vmatpush2.bf16.msra.mxu0 %v594
    %983 = vmatprep.subr.bf16.mxu0 %v591
    %984 = vmatpush2.bf16.msra.mxu0 %v590
    %985 = vmatprep.subr.bf16.mxu0 %v587
    %986 = vmatpush2.bf16.msra.mxu0 %v586
    %987 = vmatprep.subr.bf16.mxu0 %v583
    %988 = vmatpush2.bf16.msra.mxu0 %v582
    %989 = vmatprep.subr.bf16.mxu0 %v579
    %990 = vmatpush2.bf16.msra.mxu0 %v578
    %991 = vmatprep.subr.bf16.mxu0 %v575
    %992 = vmatpush2.bf16.msra.mxu0 %v574
    %993 = vmatprep.subr.bf16.mxu0 %v571
    %994 = vmatpush2.bf16.msra.mxu0 %v570
    %995 = vmatprep.mubr.bf16.mxu0 %v919
    %996 = vmatmul.mubr.bf16.gmra.mxu0 %v918
    %v997 = vpop.f32.mrf.mxu0
    %v998 = vadd.f32 %v335, %v997
    %v999 = vpop.f32.mrf.mxu0
    %v1000 = vadd.f32 %v339, %v999
    %v1001 = vpop.f32.mrf.mxu0
    %v1002 = vadd.f32 %v335, %v1001
    %v1003 = vpop.f32.mrf.mxu0
    %v1004 = vadd.f32 %v339, %v1003
    %1005 = vdwg.mxu0
    %v1006 = vsub.f32 0.0, %v955
    %v1007 = vsub.f32 0.0, %v959
    %v1008 = vmul.f32 %v1006, 1.442695
    %v1009 = vpow.pop %v1008
    %v1010 = vmul.f32 %v1007, 1.442695
    %v1011 = vpow.pop %v1010
    %v1012 = vadd.f32 %v1009, 1.0
    %v1013 = vadd.f32 %v1011, 1.0
    %v1014 = vrcp.pop %v1012
    %v1015 = vmul.f32 1.0, %v1014
    %v1016 = vrcp.pop %v1013
    %v1017 = vmul.f32 1.0, %v1016
    %v1018 = vsub.f32 0.0, %v957
    %v1019 = vsub.f32 0.0, %v961
    %v1020 = vmul.f32 %v1018, 1.442695
    %v1021 = vpow.pop %v1020
    %v1022 = vmul.f32 %v1019, 1.442695
    %v1023 = vpow.pop %v1022
    %v1024 = vadd.f32 %v1021, 1.0
    %v1025 = vadd.f32 %v1023, 1.0
    %v1026 = vrcp.pop %v1024
    %v1027 = vmul.f32 1.0, %v1026
    %v1028 = vrcp.pop %v1025
    %v1029 = vmul.f32 1.0, %v1028
    %v1030 = vtanh.pop %v998
    %v1031 = vtanh.pop %v1002
    %v1032 = vsub.f32 0.0, %v1000
    %v1033 = vsub.f32 0.0, %v1004
    %v1034 = vmul.f32 %v1032, 1.442695
    %v1035 = vpow.pop %v1034
    %v1036 = vmul.f32 %v1033, 1.442695
    %v1037 = vpow.pop %v1036
    %v1038 = vadd.f32 %v1035, 1.0
    %v1039 = vadd.f32 %v1037, 1.0
    %v1040 = vrcp.pop %v1038
    %v1041 = vmul.f32 1.0, %v1040
    %v1042 = vrcp.pop %v1039
    %v1043 = vmul.f32 1.0, %v1042
    %v1044 = vmul.f32 %v1027, %v792
    %v1045 = vmul.f32 %v1029, %v793
    %v1046 = vmul.f32 %v1015, %v1030
    %v1047 = vmul.f32 %v1017, %v1031
    %v1048 = vadd.f32 %v1044, %v1046
    %v1049 = vadd.f32 %v1045, %v1047
    %v1050 = vtanh.pop %v1048
    %v1051 = vtanh.pop %v1049
    %v1052 = vmul.f32 %v1041, %v1050
    %v1053 = vmul.f32 %v1043, %v1051
    %v1054 = vlaneseq
    %v1055 = vand.u32 %v1054, 127
    %v1056 = vcvt.s32.f32 %v1055
    %vm1057 = vcmp.eq.s32.totalorder %v1055, 1
    %v1058 = vsel %vm1057, 1, 0
    %v1059 = vcvt.s32.f32 %v1058
    %v1060 = vpack.c.bf16 %v1059, %v1059
    %v1061 = vpack.c.bf16 %v1053, %v1052
    %v1062 = vld [vmem:[#allocation11] sm:$0xff]
    %v1063 = vld [vmem:[#allocation11 + $0x8] sm:$0xff]
    %v1064 = vld [vmem:[#allocation11 + $0x10] sm:$0xff]
    %v1065 = vld [vmem:[#allocation11 + $0x18] sm:$0xff]
    %v1066 = vld [vmem:[#allocation11 + $0x20] sm:$0xff]
    %v1067 = vld [vmem:[#allocation11 + $0x28] sm:$0xff]
    %v1068 = vld [vmem:[#allocation11 + $0x30] sm:$0xff]
    %v1069 = vld [vmem:[#allocation11 + $0x38] sm:$0xff]
    %v1070 = vld [vmem:[#allocation11 + $0x40] sm:$0xff]
    %v1071 = vld [vmem:[#allocation11 + $0x48] sm:$0xff]
    %v1072 = vld [vmem:[#allocation11 + $0x50] sm:$0xff]
    %v1073 = vld [vmem:[#allocation11 + $0x58] sm:$0xff]
    %v1074 = vld [vmem:[#allocation11 + $0x60] sm:$0xff]
    %v1075 = vld [vmem:[#allocation11 + $0x68] sm:$0xff]
    %v1076 = vld [vmem:[#allocation11 + $0x70] sm:$0xff]
    %v1077 = vld [vmem:[#allocation11 + $0x78] sm:$0xff]
    %v1078 = vld [vmem:[#allocation11 + $0x80] sm:$0xff]
    %v1079 = vld [vmem:[#allocation11 + $0x88] sm:$0xff]
    %v1080 = vld [vmem:[#allocation11 + $0x90] sm:$0xff]
    %v1081 = vld [vmem:[#allocation11 + $0x98] sm:$0xff]
    %v1082 = vld [vmem:[#allocation11 + $0xa0] sm:$0xff]
    %v1083 = vld [vmem:[#allocation11 + $0xa8] sm:$0xff]
    %v1084 = vld [vmem:[#allocation11 + $0xb0] sm:$0xff]
    %v1085 = vld [vmem:[#allocation11 + $0xb8] sm:$0xff]
    %v1086 = vld [vmem:[#allocation11 + $0xc0] sm:$0xff]
    %v1087 = vld [vmem:[#allocation11 + $0xc8] sm:$0xff]
    %v1088 = vld [vmem:[#allocation11 + $0xd0] sm:$0xff]
    %v1089 = vld [vmem:[#allocation11 + $0xd8] sm:$0xff]
    %v1090 = vld [vmem:[#allocation11 + $0xe0] sm:$0xff]
    %v1091 = vld [vmem:[#allocation11 + $0xe8] sm:$0xff]
    %v1092 = vld [vmem:[#allocation11 + $0xf0] sm:$0xff]
    %v1093 = vld [vmem:[#allocation11 + $0xf8] sm:$0xff]
    %v1094 = vld [vmem:[#allocation11 + $0x100] sm:$0xff]
    %v1095 = vld [vmem:[#allocation11 + $0x108] sm:$0xff]
    %v1096 = vld [vmem:[#allocation11 + $0x110] sm:$0xff]
    %v1097 = vld [vmem:[#allocation11 + $0x118] sm:$0xff]
    %v1098 = vld [vmem:[#allocation11 + $0x120] sm:$0xff]
    %v1099 = vld [vmem:[#allocation11 + $0x128] sm:$0xff]
    %v1100 = vld [vmem:[#allocation11 + $0x130] sm:$0xff]
    %v1101 = vld [vmem:[#allocation11 + $0x138] sm:$0xff]
    %v1102 = vld [vmem:[#allocation11 + $0x140] sm:$0xff]
    %v1103 = vld [vmem:[#allocation11 + $0x148] sm:$0xff]
    %v1104 = vld [vmem:[#allocation11 + $0x150] sm:$0xff]
    %v1105 = vld [vmem:[#allocation11 + $0x158] sm:$0xff]
    %v1106 = vld [vmem:[#allocation11 + $0x160] sm:$0xff]
    %v1107 = vld [vmem:[#allocation11 + $0x168] sm:$0xff]
    %v1108 = vld [vmem:[#allocation11 + $0x170] sm:$0xff]
    %v1109 = vld [vmem:[#allocation11 + $0x178] sm:$0xff]
    %v1110 = vld [vmem:[#allocation11 + $0x180] sm:$0xff]
    %v1111 = vld [vmem:[#allocation11 + $0x188] sm:$0xff]
    %v1112 = vld [vmem:[#allocation11 + $0x190] sm:$0xff]
    %v1113 = vld [vmem:[#allocation11 + $0x198] sm:$0xff]
    %v1114 = vld [vmem:[#allocation11 + $0x1a0] sm:$0xff]
    %v1115 = vld [vmem:[#allocation11 + $0x1a8] sm:$0xff]
    %v1116 = vld [vmem:[#allocation11 + $0x1b0] sm:$0xff]
    %v1117 = vld [vmem:[#allocation11 + $0x1b8] sm:$0xff]
    %v1118 = vld [vmem:[#allocation11 + $0x1c0] sm:$0xff]
    %v1119 = vld [vmem:[#allocation11 + $0x1c8] sm:$0xff]
    %v1120 = vld [vmem:[#allocation11 + $0x1d0] sm:$0xff]
    %v1121 = vld [vmem:[#allocation11 + $0x1d8] sm:$0xff]
    %v1122 = vld [vmem:[#allocation11 + $0x1e0] sm:$0xff]
    %v1123 = vld [vmem:[#allocation11 + $0x1e8] sm:$0xff]
    %v1124 = vld [vmem:[#allocation11 + $0x1f0] sm:$0xff]
    %v1125 = vld [vmem:[#allocation11 + $0x1f8] sm:$0xff]
    %v1190 = vunpack.c.l.b16 %v1062
    %v1191 = vunpack.c.h.b16 %v1062
    %v1192 = vunpack.c.l.b16 %v1063
    %v1193 = vunpack.c.h.b16 %v1063
    %v1194 = vunpack.c.l.b16 %v1064
    %v1195 = vunpack.c.h.b16 %v1064
    %v1196 = vunpack.c.l.b16 %v1065
    %v1197 = vunpack.c.h.b16 %v1065
    %v1198 = vunpack.c.l.b16 %v1066
    %v1199 = vunpack.c.h.b16 %v1066
    %v1200 = vunpack.c.l.b16 %v1067
    %v1201 = vunpack.c.h.b16 %v1067
    %v1202 = vunpack.c.l.b16 %v1068
    %v1203 = vunpack.c.h.b16 %v1068
    %v1204 = vunpack.c.l.b16 %v1069
    %v1205 = vunpack.c.h.b16 %v1069
    %v1206 = vunpack.c.l.b16 %v1070
    %v1207 = vunpack.c.h.b16 %v1070
    %v1208 = vunpack.c.l.b16 %v1071
    %v1209 = vunpack.c.h.b16 %v1071
    %v1210 = vunpack.c.l.b16 %v1072
    %v1211 = vunpack.c.h.b16 %v1072
    %v1212 = vunpack.c.l.b16 %v1073
    %v1213 = vunpack.c.h.b16 %v1073
    %v1214 = vunpack.c.l.b16 %v1074
    %v1215 = vunpack.c.h.b16 %v1074
    %v1216 = vunpack.c.l.b16 %v1075
    %v1217 = vunpack.c.h.b16 %v1075
    %v1218 = vunpack.c.l.b16 %v1076
    %v1219 = vunpack.c.h.b16 %v1076
    %v1220 = vunpack.c.l.b16 %v1077
    %v1221 = vunpack.c.h.b16 %v1077
    %v1222 = vunpack.c.l.b16 %v1078
    %v1223 = vunpack.c.h.b16 %v1078
    %v1224 = vunpack.c.l.b16 %v1079
    %v1225 = vunpack.c.h.b16 %v1079
    %v1226 = vunpack.c.l.b16 %v1080
    %v1227 = vunpack.c.h.b16 %v1080
    %v1228 = vunpack.c.l.b16 %v1081
    %v1229 = vunpack.c.h.b16 %v1081
    %v1230 = vunpack.c.l.b16 %v1082
    %v1231 = vunpack.c.h.b16 %v1082
    %v1232 = vunpack.c.l.b16 %v1083
    %v1233 = vunpack.c.h.b16 %v1083
    %v1234 = vunpack.c.l.b16 %v1084
    %v1235 = vunpack.c.h.b16 %v1084
    %v1236 = vunpack.c.l.b16 %v1085
    %v1237 = vunpack.c.h.b16 %v1085
    %v1238 = vunpack.c.l.b16 %v1086
    %v1239 = vunpack.c.h.b16 %v1086
    %v1240 = vunpack.c.l.b16 %v1087
    %v1241 = vunpack.c.h.b16 %v1087
    %v1242 = vunpack.c.l.b16 %v1088
    %v1243 = vunpack.c.h.b16 %v1088
    %v1244 = vunpack.c.l.b16 %v1089
    %v1245 = vunpack.c.h.b16 %v1089
    %v1246 = vunpack.c.l.b16 %v1090
    %v1247 = vunpack.c.h.b16 %v1090
    %v1248 = vunpack.c.l.b16 %v1091
    %v1249 = vunpack.c.h.b16 %v1091
    %v1250 = vunpack.c.l.b16 %v1092
    %v1251 = vunpack.c.h.b16 %v1092
    %v1252 = vunpack.c.l.b16 %v1093
    %v1253 = vunpack.c.h.b16 %v1093
    %v1254 = vunpack.c.l.b16 %v1094
    %v1255 = vunpack.c.h.b16 %v1094
    %v1256 = vunpack.c.l.b16 %v1095
    %v1257 = vunpack.c.h.b16 %v1095
    %v1258 = vunpack.c.l.b16 %v1096
    %v1259 = vunpack.c.h.b16 %v1096
    %v1260 = vunpack.c.l.b16 %v1097
    %v1261 = vunpack.c.h.b16 %v1097
    %v1262 = vunpack.c.l.b16 %v1098
    %v1263 = vunpack.c.h.b16 %v1098
    %v1264 = vunpack.c.l.b16 %v1099
    %v1265 = vunpack.c.h.b16 %v1099
    %v1266 = vunpack.c.l.b16 %v1100
    %v1267 = vunpack.c.h.b16 %v1100
    %v1268 = vunpack.c.l.b16 %v1101
    %v1269 = vunpack.c.h.b16 %v1101
    %v1270 = vunpack.c.l.b16 %v1102
    %v1271 = vunpack.c.h.b16 %v1102
    %v1272 = vunpack.c.l.b16 %v1103
    %v1273 = vunpack.c.h.b16 %v1103
    %v1274 = vunpack.c.l.b16 %v1104
    %v1275 = vunpack.c.h.b16 %v1104
    %v1276 = vunpack.c.l.b16 %v1105
    %v1277 = vunpack.c.h.b16 %v1105
    %v1278 = vunpack.c.l.b16 %v1106
    %v1279 = vunpack.c.h.b16 %v1106
    %v1280 = vunpack.c.l.b16 %v1107
    %v1281 = vunpack.c.h.b16 %v1107
    %v1282 = vunpack.c.l.b16 %v1108
    %v1283 = vunpack.c.h.b16 %v1108
    %v1284 = vunpack.c.l.b16 %v1109
    %v1285 = vunpack.c.h.b16 %v1109
    %v1286 = vunpack.c.l.b16 %v1110
    %v1287 = vunpack.c.h.b16 %v1110
    %v1288 = vunpack.c.l.b16 %v1111
    %v1289 = vunpack.c.h.b16 %v1111
    %v1290 = vunpack.c.l.b16 %v1112
    %v1291 = vunpack.c.h.b16 %v1112
    %v1292 = vunpack.c.l.b16 %v1113
    %v1293 = vunpack.c.h.b16 %v1113
    %v1294 = vunpack.c.l.b16 %v1114
    %v1295 = vunpack.c.h.b16 %v1114
    %v1296 = vunpack.c.l.b16 %v1115
    %v1297 = vunpack.c.h.b16 %v1115
    %v1298 = vunpack.c.l.b16 %v1116
    %v1299 = vunpack.c.h.b16 %v1116
    %v1300 = vunpack.c.l.b16 %v1117
    %v1301 = vunpack.c.h.b16 %v1117
    %v1302 = vunpack.c.l.b16 %v1118
    %v1303 = vunpack.c.h.b16 %v1118
    %v1304 = vunpack.c.l.b16 %v1119
    %v1305 = vunpack.c.h.b16 %v1119
    %v1306 = vunpack.c.l.b16 %v1120
    %v1307 = vunpack.c.h.b16 %v1120
    %v1308 = vunpack.c.l.b16 %v1121
    %v1309 = vunpack.c.h.b16 %v1121
    %v1310 = vunpack.c.l.b16 %v1122
    %v1311 = vunpack.c.h.b16 %v1122
    %v1312 = vunpack.c.l.b16 %v1123
    %v1313 = vunpack.c.h.b16 %v1123
    %v1314 = vunpack.c.l.b16 %v1124
    %v1315 = vunpack.c.h.b16 %v1124
    %v1316 = vunpack.c.l.b16 %v1125
    %v1317 = vunpack.c.h.b16 %v1125
    %v1318 = vpack.c.b16 %v1194, %v1190
    %v1319 = vpack.c.b16 %v1195, %v1191
    %v1320 = vpack.c.b16 %v1196, %v1192
    %v1321 = vpack.c.b16 %v1197, %v1193
    %v1322 = vpack.c.b16 %v1202, %v1198
    %v1323 = vpack.c.b16 %v1203, %v1199
    %v1324 = vpack.c.b16 %v1204, %v1200
    %v1325 = vpack.c.b16 %v1205, %v1201
    %v1326 = vpack.c.b16 %v1210, %v1206
    %v1327 = vpack.c.b16 %v1211, %v1207
    %v1328 = vpack.c.b16 %v1212, %v1208
    %v1329 = vpack.c.b16 %v1213, %v1209
    %v1330 = vpack.c.b16 %v1218, %v1214
    %v1331 = vpack.c.b16 %v1219, %v1215
    %v1332 = vpack.c.b16 %v1220, %v1216
    %v1333 = vpack.c.b16 %v1221, %v1217
    %v1334 = vpack.c.b16 %v1226, %v1222
    %v1335 = vpack.c.b16 %v1227, %v1223
    %v1336 = vpack.c.b16 %v1228, %v1224
    %v1337 = vpack.c.b16 %v1229, %v1225
    %v1338 = vpack.c.b16 %v1234, %v1230
    %v1339 = vpack.c.b16 %v1235, %v1231
    %v1340 = vpack.c.b16 %v1236, %v1232
    %v1341 = vpack.c.b16 %v1237, %v1233
    %v1342 = vpack.c.b16 %v1242, %v1238
    %v1343 = vpack.c.b16 %v1243, %v1239
    %v1344 = vpack.c.b16 %v1244, %v1240
    %v1345 = vpack.c.b16 %v1245, %v1241
    %v1346 = vpack.c.b16 %v1250, %v1246
    %v1347 = vpack.c.b16 %v1251, %v1247
    %v1348 = vpack.c.b16 %v1252, %v1248
    %v1349 = vpack.c.b16 %v1253, %v1249
    %v1350 = vpack.c.b16 %v1258, %v1254
    %v1351 = vpack.c.b16 %v1259, %v1255
    %v1352 = vpack.c.b16 %v1260, %v1256
    %v1353 = vpack.c.b16 %v1261, %v1257
    %v1354 = vpack.c.b16 %v1266, %v1262
    %v1355 = vpack.c.b16 %v1267, %v1263
    %v1356 = vpack.c.b16 %v1268, %v1264
    %v1357 = vpack.c.b16 %v1269, %v1265
    %v1358 = vpack.c.b16 %v1274, %v1270
    %v1359 = vpack.c.b16 %v1275, %v1271
    %v1360 = vpack.c.b16 %v1276, %v1272
    %v1361 = vpack.c.b16 %v1277, %v1273
    %v1362 = vpack.c.b16 %v1282, %v1278
    %v1363 = vpack.c.b16 %v1283, %v1279
    %v1364 = vpack.c.b16 %v1284, %v1280
    %v1365 = vpack.c.b16 %v1285, %v1281
    %v1366 = vpack.c.b16 %v1290, %v1286
    %v1367 = vpack.c.b16 %v1291, %v1287
    %v1368 = vpack.c.b16 %v1292, %v1288
    %v1369 = vpack.c.b16 %v1293, %v1289
    %v1370 = vpack.c.b16 %v1298, %v1294
    %v1371 = vpack.c.b16 %v1299, %v1295
    %v1372 = vpack.c.b16 %v1300, %v1296
    %v1373 = vpack.c.b16 %v1301, %v1297
    %v1374 = vpack.c.b16 %v1306, %v1302
    %v1375 = vpack.c.b16 %v1307, %v1303
    %v1376 = vpack.c.b16 %v1308, %v1304
    %v1377 = vpack.c.b16 %v1309, %v1305
    %v1378 = vpack.c.b16 %v1314, %v1310
    %v1379 = vpack.c.b16 %v1315, %v1311
    %v1380 = vpack.c.b16 %v1316, %v1312
    %v1381 = vpack.c.b16 %v1317, %v1313
    %1446 = vmatprep.subr.bf16.mxu0 %v1347
    %1447 = vmatpush1.bf16.msra.mxu0 %v1346
    %1448 = vmatprep.subr.bf16.mxu0 %v1343
    %1449 = vmatpush1.bf16.msra.mxu0 %v1342
    %1450 = vmatprep.subr.bf16.mxu0 %v1339
    %1451 = vmatpush1.bf16.msra.mxu0 %v1338
    %1452 = vmatprep.subr.bf16.mxu0 %v1335
    %1453 = vmatpush1.bf16.msra.mxu0 %v1334
    %1454 = vmatprep.subr.bf16.mxu0 %v1331
    %1455 = vmatpush1.bf16.msra.mxu0 %v1330
    %1456 = vmatprep.subr.bf16.mxu0 %v1327
    %1457 = vmatpush1.bf16.msra.mxu0 %v1326
    %1458 = vmatprep.subr.bf16.mxu0 %v1323
    %1459 = vmatpush1.bf16.msra.mxu0 %v1322
    %1460 = vmatprep.subr.bf16.mxu0 %v1319
    %1461 = vmatpush1.bf16.msra.mxu0 %v1318
    %1462 = vmatprep.subr.bf16.mxu0 %v1379
    %1463 = vmatpush2.bf16.msra.mxu0 %v1378
    %1464 = vmatprep.subr.bf16.mxu0 %v1375
    %1465 = vmatpush2.bf16.msra.mxu0 %v1374
    %1466 = vmatprep.subr.bf16.mxu0 %v1371
    %1467 = vmatpush2.bf16.msra.mxu0 %v1370
    %1468 = vmatprep.subr.bf16.mxu0 %v1367
    %1469 = vmatpush2.bf16.msra.mxu0 %v1366
    %1470 = vmatprep.subr.bf16.mxu0 %v1363
    %1471 = vmatpush2.bf16.msra.mxu0 %v1362
    %1472 = vmatprep.subr.bf16.mxu0 %v1359
    %1473 = vmatpush2.bf16.msra.mxu0 %v1358
    %1474 = vmatprep.subr.bf16.mxu0 %v1355
    %1475 = vmatpush2.bf16.msra.mxu0 %v1354
    %1476 = vmatprep.subr.bf16.mxu0 %v1351
    %1477 = vmatpush2.bf16.msra.mxu0 %v1350
    %1478 = vmatprep.mubr.bf16.mxu0 %v1061
    %1479 = vmatmul.mubr.bf16.gmra.mxu0 %v1060
    %v1480 = vpop.f32.mrf.mxu0
    %v1481 = vadd.f32 %v327, %v1480
    %v1482 = vpop.f32.mrf.mxu0
    %v1483 = vadd.f32 %v331, %v1482
    %v1484 = vpop.f32.mrf.mxu0
    %v1485 = vadd.f32 %v327, %v1484
    %v1486 = vpop.f32.mrf.mxu0
    %v1487 = vadd.f32 %v331, %v1486
    %1488 = vdwg.mxu0
    %1489 = vmatprep.subr.bf16.mxu0 %v1349
    %1490 = vmatpush1.bf16.msra.mxu0 %v1348
    %1491 = vmatprep.subr.bf16.mxu0 %v1345
    %1492 = vmatpush1.bf16.msra.mxu0 %v1344
    %1493 = vmatprep.subr.bf16.mxu0 %v1341
    %1494 = vmatpush1.bf16.msra.mxu0 %v1340
    %1495 = vmatprep.subr.bf16.mxu0 %v1337
    %1496 = vmatpush1.bf16.msra.mxu0 %v1336
    %1497 = vmatprep.subr.bf16.mxu0 %v1333
    %1498 = vmatpush1.bf16.msra.mxu0 %v1332
    %1499 = vmatprep.subr.bf16.mxu0 %v1329
    %1500 = vmatpush1.bf16.msra.mxu0 %v1328
    %1501 = vmatprep.subr.bf16.mxu0 %v1325
    %1502 = vmatpush1.bf16.msra.mxu0 %v1324
    %1503 = vmatprep.subr.bf16.mxu0 %v1321
    %1504 = vmatpush1.bf16.msra.mxu0 %v1320
    %1505 = vmatprep.subr.bf16.mxu0 %v1381
    %1506 = vmatpush2.bf16.msra.mxu0 %v1380
    %1507 = vmatprep.subr.bf16.mxu0 %v1377
    %1508 = vmatpush2.bf16.msra.mxu0 %v1376
    %1509 = vmatprep.subr.bf16.mxu0 %v1373
    %1510 = vmatpush2.bf16.msra.mxu0 %v1372
    %1511 = vmatprep.subr.bf16.mxu0 %v1369
    %1512 = vmatpush2.bf16.msra.mxu0 %v1368
    %1513 = vmatprep.subr.bf16.mxu0 %v1365
    %1514 = vmatpush2.bf16.msra.mxu0 %v1364
    %1515 = vmatprep.subr.bf16.mxu0 %v1361
    %1516 = vmatpush2.bf16.msra.mxu0 %v1360
    %1517 = vmatprep.subr.bf16.mxu0 %v1357
    %1518 = vmatpush2.bf16.msra.mxu0 %v1356
    %1519 = vmatprep.subr.bf16.mxu0 %v1353
    %1520 = vmatpush2.bf16.msra.mxu0 %v1352
    %1521 = vmatprep.mubr.bf16.mxu0 %v1061
    %1522 = vmatmul.mubr.bf16.gmra.mxu0 %v1060
    %v1523 = vpop.f32.mrf.mxu0
    %v1524 = vadd.f32 %v335, %v1523
    %v1525 = vpop.f32.mrf.mxu0
    %v1526 = vadd.f32 %v339, %v1525
    %v1527 = vpop.f32.mrf.mxu0
    %v1528 = vadd.f32 %v335, %v1527
    %v1529 = vpop.f32.mrf.mxu0
    %v1530 = vadd.f32 %v339, %v1529
    %1531 = vdwg.mxu0
    %v1532 = vsub.f32 0.0, %v1481
    %v1533 = vsub.f32 0.0, %v1485
    %v1534 = vmul.f32 %v1532, 1.442695
    %v1535 = vpow.pop %v1534
    %v1536 = vmul.f32 %v1533, 1.442695
    %v1537 = vpow.pop %v1536
    %v1538 = vadd.f32 %v1535, 1.0
    %v1539 = vadd.f32 %v1537, 1.0
    %v1540 = vrcp.pop %v1538
    %v1541 = vmul.f32 1.0, %v1540
    %v1542 = vrcp.pop %v1539
    %v1543 = vmul.f32 1.0, %v1542
    %v1544 = vsub.f32 0.0, %v1483
    %v1545 = vsub.f32 0.0, %v1487
    %v1546 = vmul.f32 %v1544, 1.442695
    %v1547 = vpow.pop %v1546
    %v1548 = vmul.f32 %v1545, 1.442695
    %v1549 = vpow.pop %v1548
    %v1550 = vadd.f32 %v1547, 1.0
    %v1551 = vadd.f32 %v1549, 1.0
    %v1552 = vrcp.pop %v1550
    %v1553 = vmul.f32 1.0, %v1552
    %v1554 = vrcp.pop %v1551
    %v1555 = vmul.f32 1.0, %v1554
    %v1556 = vtanh.pop %v1524
    %v1557 = vtanh.pop %v1528
    %v1558 = vsub.f32 0.0, %v1526
    %v1559 = vsub.f32 0.0, %v1530
    %v1560 = vmul.f32 %v1558, 1.442695
    %v1561 = vpow.pop %v1560
    %v1562 = vmul.f32 %v1559, 1.442695
    %v1563 = vpow.pop %v1562
    %v1564 = vadd.f32 %v1561, 1.0
    %v1565 = vadd.f32 %v1563, 1.0
    %v1566 = vrcp.pop %v1564
    %v1567 = vmul.f32 1.0, %v1566
    %v1568 = vrcp.pop %v1565
    %v1569 = vmul.f32 1.0, %v1568
    %v1570 = vmul.f32 %v1553, %v1048
    %v1571 = vmul.f32 %v1555, %v1049
    %v1572 = vmul.f32 %v1541, %v1556
    %v1573 = vmul.f32 %v1543, %v1557
    %v1574 = vadd.f32 %v1570, %v1572
    %v1575 = vadd.f32 %v1571, %v1573
    %v1576 = vtanh.pop %v1574
    %v1577 = vtanh.pop %v1575
    %v1578 = vmul.f32 %v1567, %v1576
    %v1579 = vmul.f32 %v1569, %v1577
    %v1580 = vpack.c.bf16 %v1579, %v1578
    %v1581 = vld [vmem:[#allocation13] sm:$0xf]
    %v1582 = vld [vmem:[#allocation13 + $0x4] sm:$0xf]
    %v1583 = vld [vmem:[#allocation13 + $0x8] sm:$0xf]
    %v1584 = vld [vmem:[#allocation13 + $0xc] sm:$0xf]
    %v1585 = vld [vmem:[#allocation13 + $0x10] sm:$0xf]
    %v1586 = vld [vmem:[#allocation13 + $0x14] sm:$0xf]
    %v1587 = vld [vmem:[#allocation13 + $0x18] sm:$0xf]
    %v1588 = vld [vmem:[#allocation13 + $0x1c] sm:$0xf]
    %v1589 = vld [vmem:[#allocation13 + $0x20] sm:$0xf]
    %v1590 = vld [vmem:[#allocation13 + $0x24] sm:$0xf]
    %v1591 = vld [vmem:[#allocation13 + $0x28] sm:$0xf]
    %v1592 = vld [vmem:[#allocation13 + $0x2c] sm:$0xf]
    %v1593 = vld [vmem:[#allocation13 + $0x30] sm:$0xf]
    %v1594 = vld [vmem:[#allocation13 + $0x34] sm:$0xf]
    %v1595 = vld [vmem:[#allocation13 + $0x38] sm:$0xf]
    %v1596 = vld [vmem:[#allocation13 + $0x3c] sm:$0xf]
    %v1597 = vld [vmem:[%s10] sm:$0x1]
    %v1599 = vlaneseq
    %v1600 = vshrl.u32 %v1599, 7
    %v1601 = vsub.s32 0, %v1600
    %v1602 = vrot.slane %v1597, %v1601
    %v1620 = vunpack.c.l.b16 %v1581
    %v1621 = vunpack.c.l.b16 %v1582
    %v1622 = vunpack.c.l.b16 %v1583
    %v1623 = vunpack.c.l.b16 %v1584
    %v1624 = vunpack.c.l.b16 %v1585
    %v1625 = vunpack.c.l.b16 %v1586
    %v1626 = vunpack.c.l.b16 %v1587
    %v1627 = vunpack.c.l.b16 %v1588
    %v1628 = vunpack.c.l.b16 %v1589
    %v1629 = vunpack.c.l.b16 %v1590
    %v1630 = vunpack.c.l.b16 %v1591
    %v1631 = vunpack.c.l.b16 %v1592
    %v1632 = vunpack.c.l.b16 %v1593
    %v1633 = vunpack.c.l.b16 %v1594
    %v1634 = vunpack.c.l.b16 %v1595
    %v1635 = vunpack.c.l.b16 %v1596
    %v1636 = vpack.c.b16 %v1621, %v1620
    %v1637 = vpack.c.b16 %v1623, %v1622
    %v1638 = vpack.c.b16 %v1625, %v1624
    %v1639 = vpack.c.b16 %v1627, %v1626
    %v1640 = vpack.c.b16 %v1629, %v1628
    %v1641 = vpack.c.b16 %v1631, %v1630
    %v1642 = vpack.c.b16 %v1633, %v1632
    %v1643 = vpack.c.b16 %v1635, %v1634
    %1652 = vmatprep.subr.bf16.mxu0 0
    %1653 = vmatpush1.bf16.msra.mxu0 %v1643
    %1654 = vmatprep.subr.bf16.mxu0 0
    %1655 = vmatpush1.bf16.msra.mxu0 %v1642
    %1656 = vmatprep.subr.bf16.mxu0 0
    %1657 = vmatpush1.bf16.msra.mxu0 %v1641
    %1658 = vmatprep.subr.bf16.mxu0 0
    %1659 = vmatpush1.bf16.msra.mxu0 %v1640
    %1660 = vmatprep.subr.bf16.mxu0 0
    %1661 = vmatpush1.bf16.msra.mxu0 %v1639
    %1662 = vmatprep.subr.bf16.mxu0 0
    %1663 = vmatpush1.bf16.msra.mxu0 %v1638
    %1664 = vmatprep.subr.bf16.mxu0 0
    %1665 = vmatpush1.bf16.msra.mxu0 %v1637
    %1666 = vmatprep.subr.bf16.mxu0 0
    %1667 = vmatpush1.bf16.msra.mxu0 %v1636
    %1668 = vmatprep.subr.bf16.mxu0 0
    %1669 = vmatpush2.bf16.msra.mxu0 0
    %1670 = vmatprep.subr.bf16.mxu0 0
    %1671 = vmatpush2.bf16.msra.mxu0 0
    %1672 = vmatprep.subr.bf16.mxu0 0
    %1673 = vmatpush2.bf16.msra.mxu0 0
    %1674 = vmatprep.subr.bf16.mxu0 0
    %1675 = vmatpush2.bf16.msra.mxu0 0
    %1676 = vmatprep.subr.bf16.mxu0 0
    %1677 = vmatpush2.bf16.msra.mxu0 0
    %1678 = vmatprep.subr.bf16.mxu0 0
    %1679 = vmatpush2.bf16.msra.mxu0 0
    %1680 = vmatprep.subr.bf16.mxu0 0
    %1681 = vmatpush2.bf16.msra.mxu0 0
    %1682 = vmatprep.subr.bf16.mxu0 0
    %1683 = vmatpush2.bf16.msra.mxu0 0
    %1684 = vmatprep.mubr.bf16.mxu0 0
    %1685 = vmatmul.mubr.bf16.gmra.mxu0 %v1580
    %v1686 = vpop.f32.mrf.mxu0
    %v1687 = vadd.f32 %v1602, %v1686
    %v1688 = vpop.f32.mrf.mxu0
    %v1689 = vpop.f32.mrf.mxu0
    %v1690 = vadd.f32 %v1602, %v1689
    %v1691 = vpop.f32.mrf.mxu0
    %1692 = vdwg.mxu0
    %1693 = vst [vmem:[#allocation14] sm:$0xff] %v1687
    %1694 = vst [vmem:[#allocation14 + $0x38] sm:$0xff] %v1690
    %1695 = vmax.xlane.f32.xlu0 %v1687
    %v1696 = vpop.xlane.xlu0 %1695
    %1697 = vmax.xlane.f32.xlu0 %v1690
    %v1698 = vpop.xlane.xlu0 %1697
    %vm1699 = vcmp.eq.f32.partialorder %v1687, %v1696
    %vm1700 = vcmp.eq.f32.partialorder %v1690, %v1698
    %v1701 = vsel %vm1699, %v1056, 128.0
    %v1702 = vsel %vm1700, %v1056, 128.0
    %1703 = vmin.xlane.f32.xlu0 %v1701
    %v1704 = vpop.xlane.xlu0 %1703
    %1705 = vmin.xlane.f32.xlu0 %v1702
    %v1706 = vpop.xlane.xlu0 %1705
    %v1707 = vcvt.f32.s32.to.zero.pseudo %v1704
    %v1708 = vcvt.f32.s32.to.zero.pseudo %v1706
    %vm1709 = vcmask 7168
    %1710 = vst.msk [vmem:[%s12] sm:$0xff] %vm1709, %v1707
    %1711 = vst.msk [vmem:[%s12 + $0x8] sm:$0xff] %vm1709, %v1708
    %vm1712 = vcmp.eq.s32.totalorder %v1055, %v1707
    %vm1713 = vcmp.eq.s32.totalorder %v1055, %v1708
    %v1714 = vsel %vm1712, 1, 0
    %v1715 = vsel %vm1713, 1, 0
    %v1716 = vcvt.s32.f32 %v1714
    %v1717 = vcvt.s32.f32 %v1715
    %v1718 = vpack.c.bf16 %v1717, %v1716
    %v1719 = vld [vmem:[#allocation11] sm:$0xff]
    %v1720 = vld [vmem:[#allocation11 + $0x8] sm:$0xff]
    %v1721 = vld [vmem:[#allocation11 + $0x10] sm:$0xff]
    %v1722 = vld [vmem:[#allocation11 + $0x18] sm:$0xff]
    %v1723 = vld [vmem:[#allocation11 + $0x20] sm:$0xff]
    %v1724 = vld [vmem:[#allocation11 + $0x28] sm:$0xff]
    %v1725 = vld [vmem:[#allocation11 + $0x30] sm:$0xff]
    %v1726 = vld [vmem:[#allocation11 + $0x38] sm:$0xff]
    %v1727 = vld [vmem:[#allocation11 + $0x40] sm:$0xff]
    %v1728 = vld [vmem:[#allocation11 + $0x48] sm:$0xff]
    %v1729 = vld [vmem:[#allocation11 + $0x50] sm:$0xff]
    %v1730 = vld [vmem:[#allocation11 + $0x58] sm:$0xff]
    %v1731 = vld [vmem:[#allocation11 + $0x60] sm:$0xff]
    %v1732 = vld [vmem:[#allocation11 + $0x68] sm:$0xff]
    %v1733 = vld [vmem:[#allocation11 + $0x70] sm:$0xff]
    %v1734 = vld [vmem:[#allocation11 + $0x78] sm:$0xff]
    %v1735 = vld [vmem:[#allocation11 + $0x80] sm:$0xff]
    %v1736 = vld [vmem:[#allocation11 + $0x88] sm:$0xff]
    %v1737 = vld [vmem:[#allocation11 + $0x90] sm:$0xff]
    %v1738 = vld [vmem:[#allocation11 + $0x98] sm:$0xff]
    %v1739 = vld [vmem:[#allocation11 + $0xa0] sm:$0xff]
    %v1740 = vld [vmem:[#allocation11 + $0xa8] sm:$0xff]
    %v1741 = vld [vmem:[#allocation11 + $0xb0] sm:$0xff]
    %v1742 = vld [vmem:[#allocation11 + $0xb8] sm:$0xff]
    %v1743 = vld [vmem:[#allocation11 + $0xc0] sm:$0xff]
    %v1744 = vld [vmem:[#allocation11 + $0xc8] sm:$0xff]
    %v1745 = vld [vmem:[#allocation11 + $0xd0] sm:$0xff]
    %v1746 = vld [vmem:[#allocation11 + $0xd8] sm:$0xff]
    %v1747 = vld [vmem:[#allocation11 + $0xe0] sm:$0xff]
    %v1748 = vld [vmem:[#allocation11 + $0xe8] sm:$0xff]
    %v1749 = vld [vmem:[#allocation11 + $0xf0] sm:$0xff]
    %v1750 = vld [vmem:[#allocation11 + $0xf8] sm:$0xff]
    %v1751 = vld [vmem:[#allocation11 + $0x100] sm:$0xff]
    %v1752 = vld [vmem:[#allocation11 + $0x108] sm:$0xff]
    %v1753 = vld [vmem:[#allocation11 + $0x110] sm:$0xff]
    %v1754 = vld [vmem:[#allocation11 + $0x118] sm:$0xff]
    %v1755 = vld [vmem:[#allocation11 + $0x120] sm:$0xff]
    %v1756 = vld [vmem:[#allocation11 + $0x128] sm:$0xff]
    %v1757 = vld [vmem:[#allocation11 + $0x130] sm:$0xff]
    %v1758 = vld [vmem:[#allocation11 + $0x138] sm:$0xff]
    %v1759 = vld [vmem:[#allocation11 + $0x140] sm:$0xff]
    %v1760 = vld [vmem:[#allocation11 + $0x148] sm:$0xff]
    %v1761 = vld [vmem:[#allocation11 + $0x150] sm:$0xff]
    %v1762 = vld [vmem:[#allocation11 + $0x158] sm:$0xff]
    %v1763 = vld [vmem:[#allocation11 + $0x160] sm:$0xff]
    %v1764 = vld [vmem:[#allocation11 + $0x168] sm:$0xff]
    %v1765 = vld [vmem:[#allocation11 + $0x170] sm:$0xff]
    %v1766 = vld [vmem:[#allocation11 + $0x178] sm:$0xff]
    %v1767 = vld [vmem:[#allocation11 + $0x180] sm:$0xff]
    %v1768 = vld [vmem:[#allocation11 + $0x188] sm:$0xff]
    %v1769 = vld [vmem:[#allocation11 + $0x190] sm:$0xff]
    %v1770 = vld [vmem:[#allocation11 + $0x198] sm:$0xff]
    %v1771 = vld [vmem:[#allocation11 + $0x1a0] sm:$0xff]
    %v1772 = vld [vmem:[#allocation11 + $0x1a8] sm:$0xff]
    %v1773 = vld [vmem:[#allocation11 + $0x1b0] sm:$0xff]
    %v1774 = vld [vmem:[#allocation11 + $0x1b8] sm:$0xff]
    %v1775 = vld [vmem:[#allocation11 + $0x1c0] sm:$0xff]
    %v1776 = vld [vmem:[#allocation11 + $0x1c8] sm:$0xff]
    %v1777 = vld [vmem:[#allocation11 + $0x1d0] sm:$0xff]
    %v1778 = vld [vmem:[#allocation11 + $0x1d8] sm:$0xff]
    %v1779 = vld [vmem:[#allocation11 + $0x1e0] sm:$0xff]
    %v1780 = vld [vmem:[#allocation11 + $0x1e8] sm:$0xff]
    %v1781 = vld [vmem:[#allocation11 + $0x1f0] sm:$0xff]
    %v1782 = vld [vmem:[#allocation11 + $0x1f8] sm:$0xff]
    %v1783 = vld [vmem:[%s8] sm:$0xf]
    %v1785 = vlaneseq
    %v1786 = vshrl.u32 %v1785, 7
    %v1787 = vsub.s32 0, %v1786
    %v1788 = vrot.slane %v1783, %v1787
    %v1789 = vlaneseq
    %v1790 = vshrl.u32 %v1789, 7
    %v1791 = vsub.s32 1, %v1790
    %v1792 = vrot.slane %v1783, %v1791
    %v1793 = vlaneseq
    %v1794 = vshrl.u32 %v1793, 7
    %v1795 = vsub.s32 2, %v1794
    %v1796 = vrot.slane %v1783, %v1795
    %v1797 = vlaneseq
    %v1798 = vshrl.u32 %v1797, 7
    %v1799 = vsub.s32 3, %v1798
    %v1800 = vrot.slane %v1783, %v1799
    %v1869 = vunpack.c.l.b16 %v1719
    %v1870 = vunpack.c.h.b16 %v1719
    %v1871 = vunpack.c.l.b16 %v1720
    %v1872 = vunpack.c.h.b16 %v1720
    %v1873 = vunpack.c.l.b16 %v1721
    %v1874 = vunpack.c.h.b16 %v1721
    %v1875 = vunpack.c.l.b16 %v1722
    %v1876 = vunpack.c.h.b16 %v1722
    %v1877 = vunpack.c.l.b16 %v1723
    %v1878 = vunpack.c.h.b16 %v1723
    %v1879 = vunpack.c.l.b16 %v1724
    %v1880 = vunpack.c.h.b16 %v1724
    %v1881 = vunpack.c.l.b16 %v1725
    %v1882 = vunpack.c.h.b16 %v1725
    %v1883 = vunpack.c.l.b16 %v1726
    %v1884 = vunpack.c.h.b16 %v1726
    %v1885 = vunpack.c.l.b16 %v1727
    %v1886 = vunpack.c.h.b16 %v1727
    %v1887 = vunpack.c.l.b16 %v1728
    %v1888 = vunpack.c.h.b16 %v1728
    %v1889 = vunpack.c.l.b16 %v1729
    %v1890 = vunpack.c.h.b16 %v1729
    %v1891 = vunpack.c.l.b16 %v1730
    %v1892 = vunpack.c.h.b16 %v1730
    %v1893 = vunpack.c.l.b16 %v1731
    %v1894 = vunpack.c.h.b16 %v1731
    %v1895 = vunpack.c.l.b16 %v1732
    %v1896 = vunpack.c.h.b16 %v1732
    %v1897 = vunpack.c.l.b16 %v1733
    %v1898 = vunpack.c.h.b16 %v1733
    %v1899 = vunpack.c.l.b16 %v1734
    %v1900 = vunpack.c.h.b16 %v1734
    %v1901 = vunpack.c.l.b16 %v1735
    %v1902 = vunpack.c.h.b16 %v1735
    %v1903 = vunpack.c.l.b16 %v1736
    %v1904 = vunpack.c.h.b16 %v1736
    %v1905 = vunpack.c.l.b16 %v1737
    %v1906 = vunpack.c.h.b16 %v1737
    %v1907 = vunpack.c.l.b16 %v1738
    %v1908 = vunpack.c.h.b16 %v1738
    %v1909 = vunpack.c.l.b16 %v1739
    %v1910 = vunpack.c.h.b16 %v1739
    %v1911 = vunpack.c.l.b16 %v1740
    %v1912 = vunpack.c.h.b16 %v1740
    %v1913 = vunpack.c.l.b16 %v1741
    %v1914 = vunpack.c.h.b16 %v1741
    %v1915 = vunpack.c.l.b16 %v1742
    %v1916 = vunpack.c.h.b16 %v1742
    %v1917 = vunpack.c.l.b16 %v1743
    %v1918 = vunpack.c.h.b16 %v1743
    %v1919 = vunpack.c.l.b16 %v1744
    %v1920 = vunpack.c.h.b16 %v1744
    %v1921 = vunpack.c.l.b16 %v1745
    %v1922 = vunpack.c.h.b16 %v1745
    %v1923 = vunpack.c.l.b16 %v1746
    %v1924 = vunpack.c.h.b16 %v1746
    %v1925 = vunpack.c.l.b16 %v1747
    %v1926 = vunpack.c.h.b16 %v1747
    %v1927 = vunpack.c.l.b16 %v1748
    %v1928 = vunpack.c.h.b16 %v1748
    %v1929 = vunpack.c.l.b16 %v1749
    %v1930 = vunpack.c.h.b16 %v1749
    %v1931 = vunpack.c.l.b16 %v1750
    %v1932 = vunpack.c.h.b16 %v1750
    %v1933 = vunpack.c.l.b16 %v1751
    %v1934 = vunpack.c.h.b16 %v1751
    %v1935 = vunpack.c.l.b16 %v1752
    %v1936 = vunpack.c.h.b16 %v1752
    %v1937 = vunpack.c.l.b16 %v1753
    %v1938 = vunpack.c.h.b16 %v1753
    %v1939 = vunpack.c.l.b16 %v1754
    %v1940 = vunpack.c.h.b16 %v1754
    %v1941 = vunpack.c.l.b16 %v1755
    %v1942 = vunpack.c.h.b16 %v1755
    %v1943 = vunpack.c.l.b16 %v1756
    %v1944 = vunpack.c.h.b16 %v1756
    %v1945 = vunpack.c.l.b16 %v1757
    %v1946 = vunpack.c.h.b16 %v1757
    %v1947 = vunpack.c.l.b16 %v1758
    %v1948 = vunpack.c.h.b16 %v1758
    %v1949 = vunpack.c.l.b16 %v1759
    %v1950 = vunpack.c.h.b16 %v1759
    %v1951 = vunpack.c.l.b16 %v1760
    %v1952 = vunpack.c.h.b16 %v1760
    %v1953 = vunpack.c.l.b16 %v1761
    %v1954 = vunpack.c.h.b16 %v1761
    %v1955 = vunpack.c.l.b16 %v1762
    %v1956 = vunpack.c.h.b16 %v1762
    %v1957 = vunpack.c.l.b16 %v1763
    %v1958 = vunpack.c.h.b16 %v1763
    %v1959 = vunpack.c.l.b16 %v1764
    %v1960 = vunpack.c.h.b16 %v1764
    %v1961 = vunpack.c.l.b16 %v1765
    %v1962 = vunpack.c.h.b16 %v1765
    %v1963 = vunpack.c.l.b16 %v1766
    %v1964 = vunpack.c.h.b16 %v1766
    %v1965 = vunpack.c.l.b16 %v1767
    %v1966 = vunpack.c.h.b16 %v1767
    %v1967 = vunpack.c.l.b16 %v1768
    %v1968 = vunpack.c.h.b16 %v1768
    %v1969 = vunpack.c.l.b16 %v1769
    %v1970 = vunpack.c.h.b16 %v1769
    %v1971 = vunpack.c.l.b16 %v1770
    %v1972 = vunpack.c.h.b16 %v1770
    %v1973 = vunpack.c.l.b16 %v1771
    %v1974 = vunpack.c.h.b16 %v1771
    %v1975 = vunpack.c.l.b16 %v1772
    %v1976 = vunpack.c.h.b16 %v1772
    %v1977 = vunpack.c.l.b16 %v1773
    %v1978 = vunpack.c.h.b16 %v1773
    %v1979 = vunpack.c.l.b16 %v1774
    %v1980 = vunpack.c.h.b16 %v1774
    %v1981 = vunpack.c.l.b16 %v1775
    %v1982 = vunpack.c.h.b16 %v1775
    %v1983 = vunpack.c.l.b16 %v1776
    %v1984 = vunpack.c.h.b16 %v1776
    %v1985 = vunpack.c.l.b16 %v1777
    %v1986 = vunpack.c.h.b16 %v1777
    %v1987 = vunpack.c.l.b16 %v1778
    %v1988 = vunpack.c.h.b16 %v1778
    %v1989 = vunpack.c.l.b16 %v1779
    %v1990 = vunpack.c.h.b16 %v1779
    %v1991 = vunpack.c.l.b16 %v1780
    %v1992 = vunpack.c.h.b16 %v1780
    %v1993 = vunpack.c.l.b16 %v1781
    %v1994 = vunpack.c.h.b16 %v1781
    %v1995 = vunpack.c.l.b16 %v1782
    %v1996 = vunpack.c.h.b16 %v1782
    %v1997 = vpack.c.b16 %v1873, %v1869
    %v1998 = vpack.c.b16 %v1874, %v1870
    %v1999 = vpack.c.b16 %v1875, %v1871
    %v2000 = vpack.c.b16 %v1876, %v1872
    %v2001 = vpack.c.b16 %v1881, %v1877
    %v2002 = vpack.c.b16 %v1882, %v1878
    %v2003 = vpack.c.b16 %v1883, %v1879
    %v2004 = vpack.c.b16 %v1884, %v1880
    %v2005 = vpack.c.b16 %v1889, %v1885
    %v2006 = vpack.c.b16 %v1890, %v1886
    %v2007 = vpack.c.b16 %v1891, %v1887
    %v2008 = vpack.c.b16 %v1892, %v1888
    %v2009 = vpack.c.b16 %v1897, %v1893
    %v2010 = vpack.c.b16 %v1898, %v1894
    %v2011 = vpack.c.b16 %v1899, %v1895
    %v2012 = vpack.c.b16 %v1900, %v1896
    %v2013 = vpack.c.b16 %v1905, %v1901
    %v2014 = vpack.c.b16 %v1906, %v1902
    %v2015 = vpack.c.b16 %v1907, %v1903
    %v2016 = vpack.c.b16 %v1908, %v1904
    %v2017 = vpack.c.b16 %v1913, %v1909
    %v2018 = vpack.c.b16 %v1914, %v1910
    %v2019 = vpack.c.b16 %v1915, %v1911
    %v2020 = vpack.c.b16 %v1916, %v1912
    %v2021 = vpack.c.b16 %v1921, %v1917
    %v2022 = vpack.c.b16 %v1922, %v1918
    %v2023 = vpack.c.b16 %v1923, %v1919
    %v2024 = vpack.c.b16 %v1924, %v1920
    %v2025 = vpack.c.b16 %v1929, %v1925
    %v2026 = vpack.c.b16 %v1930, %v1926
    %v2027 = vpack.c.b16 %v1931, %v1927
    %v2028 = vpack.c.b16 %v1932, %v1928
    %v2029 = vpack.c.b16 %v1937, %v1933
    %v2030 = vpack.c.b16 %v1938, %v1934
    %v2031 = vpack.c.b16 %v1939, %v1935
    %v2032 = vpack.c.b16 %v1940, %v1936
    %v2033 = vpack.c.b16 %v1945, %v1941
    %v2034 = vpack.c.b16 %v1946, %v1942
    %v2035 = vpack.c.b16 %v1947, %v1943
    %v2036 = vpack.c.b16 %v1948, %v1944
    %v2037 = vpack.c.b16 %v1953, %v1949
    %v2038 = vpack.c.b16 %v1954, %v1950
    %v2039 = vpack.c.b16 %v1955, %v1951
    %v2040 = vpack.c.b16 %v1956, %v1952
    %v2041 = vpack.c.b16 %v1961, %v1957
    %v2042 = vpack.c.b16 %v1962, %v1958
    %v2043 = vpack.c.b16 %v1963, %v1959
    %v2044 = vpack.c.b16 %v1964, %v1960
    %v2045 = vpack.c.b16 %v1969, %v1965
    %v2046 = vpack.c.b16 %v1970, %v1966
    %v2047 = vpack.c.b16 %v1971, %v1967
    %v2048 = vpack.c.b16 %v1972, %v1968
    %v2049 = vpack.c.b16 %v1977, %v1973
    %v2050 = vpack.c.b16 %v1978, %v1974
    %v2051 = vpack.c.b16 %v1979, %v1975
    %v2052 = vpack.c.b16 %v1980, %v1976
    %v2053 = vpack.c.b16 %v1985, %v1981
    %v2054 = vpack.c.b16 %v1986, %v1982
    %v2055 = vpack.c.b16 %v1987, %v1983
    %v2056 = vpack.c.b16 %v1988, %v1984
    %v2057 = vpack.c.b16 %v1993, %v1989
    %v2058 = vpack.c.b16 %v1994, %v1990
    %v2059 = vpack.c.b16 %v1995, %v1991
    %v2060 = vpack.c.b16 %v1996, %v1992
    %2125 = vmatprep.subr.bf16.mxu0 %v2026
    %2126 = vmatpush1.bf16.msra.mxu0 %v2025
    %2127 = vmatprep.subr.bf16.mxu0 %v2022
    %2128 = vmatpush1.bf16.msra.mxu0 %v2021
    %2129 = vmatprep.subr.bf16.mxu0 %v2018
    %2130 = vmatpush1.bf16.msra.mxu0 %v2017
    %2131 = vmatprep.subr.bf16.mxu0 %v2014
    %2132 = vmatpush1.bf16.msra.mxu0 %v2013
    %2133 = vmatprep.subr.bf16.mxu0 %v2010
    %2134 = vmatpush1.bf16.msra.mxu0 %v2009
    %2135 = vmatprep.subr.bf16.mxu0 %v2006
    %2136 = vmatpush1.bf16.msra.mxu0 %v2005
    %2137 = vmatprep.subr.bf16.mxu0 %v2002
    %2138 = vmatpush1.bf16.msra.mxu0 %v2001
    %2139 = vmatprep.subr.bf16.mxu0 %v1998
    %2140 = vmatpush1.bf16.msra.mxu0 %v1997
    %2141 = vmatprep.subr.bf16.mxu0 %v2058
    %2142 = vmatpush2.bf16.msra.mxu0 %v2057
    %2143 = vmatprep.subr.bf16.mxu0 %v2054
    %2144 = vmatpush2.bf16.msra.mxu0 %v2053
    %2145 = vmatprep.subr.bf16.mxu0 %v2050
    %2146 = vmatpush2.bf16.msra.mxu0 %v2049
    %2147 = vmatprep.subr.bf16.mxu0 %v2046
    %2148 = vmatpush2.bf16.msra.mxu0 %v2045
    %2149 = vmatprep.subr.bf16.mxu0 %v2042
    %2150 = vmatpush2.bf16.msra.mxu0 %v2041
    %2151 = vmatprep.subr.bf16.mxu0 %v2038
    %2152 = vmatpush2.bf16.msra.mxu0 %v2037
    %2153 = vmatprep.subr.bf16.mxu0 %v2034
    %2154 = vmatpush2.bf16.msra.mxu0 %v2033
    %2155 = vmatprep.subr.bf16.mxu0 %v2030
    %2156 = vmatpush2.bf16.msra.mxu0 %v2029
    %2157 = vmatprep.mubr.bf16.mxu0 %v1580
    %2158 = vmatmul.mubr.bf16.gmra.mxu0 %v1718
    %v2159 = vpop.f32.mrf.mxu0
    %v2160 = vadd.f32 %v1788, %v2159
    %v2161 = vpop.f32.mrf.mxu0
    %v2162 = vadd.f32 %v1792, %v2161
    %v2163 = vpop.f32.mrf.mxu0
    %v2164 = vadd.f32 %v1788, %v2163
    %v2165 = vpop.f32.mrf.mxu0
    %v2166 = vadd.f32 %v1792, %v2165
    %2167 = vdwg.mxu0
    %2168 = vmatprep.subr.bf16.mxu0 %v2028
    %2169 = vmatpush1.bf16.msra.mxu0 %v2027
    %2170 = vmatprep.subr.bf16.mxu0 %v2024
    %2171 = vmatpush1.bf16.msra.mxu0 %v2023
    %2172 = vmatprep.subr.bf16.mxu0 %v2020
    %2173 = vmatpush1.bf16.msra.mxu0 %v2019
    %2174 = vmatprep.subr.bf16.mxu0 %v2016
    %2175 = vmatpush1.bf16.msra.mxu0 %v2015
    %2176 = vmatprep.subr.bf16.mxu0 %v2012
    %2177 = vmatpush1.bf16.msra.mxu0 %v2011
    %2178 = vmatprep.subr.bf16.mxu0 %v2008
    %2179 = vmatpush1.bf16.msra.mxu0 %v2007
    %2180 = vmatprep.subr.bf16.mxu0 %v2004
    %2181 = vmatpush1.bf16.msra.mxu0 %v2003
    %2182 = vmatprep.subr.bf16.mxu0 %v2000
    %2183 = vmatpush1.bf16.msra.mxu0 %v1999
    %2184 = vmatprep.subr.bf16.mxu0 %v2060
    %2185 = vmatpush2.bf16.msra.mxu0 %v2059
    %2186 = vmatprep.subr.bf16.mxu0 %v2056
    %2187 = vmatpush2.bf16.msra.mxu0 %v2055
    %2188 = vmatprep.subr.bf16.mxu0 %v2052
    %2189 = vmatpush2.bf16.msra.mxu0 %v2051
    %2190 = vmatprep.subr.bf16.mxu0 %v2048
    %2191 = vmatpush2.bf16.msra.mxu0 %v2047
    %2192 = vmatprep.subr.bf16.mxu0 %v2044
    %2193 = vmatpush2.bf16.msra.mxu0 %v2043
    %2194 = vmatprep.subr.bf16.mxu0 %v2040
    %2195 = vmatpush2.bf16.msra.mxu0 %v2039
    %2196 = vmatprep.subr.bf16.mxu0 %v2036
    %2197 = vmatpush2.bf16.msra.mxu0 %v2035
    %2198 = vmatprep.subr.bf16.mxu0 %v2032
    %2199 = vmatpush2.bf16.msra.mxu0 %v2031
    %2200 = vmatprep.mubr.bf16.mxu0 %v1580
    %2201 = vmatmul.mubr.bf16.gmra.mxu0 %v1718
    %v2202 = vpop.f32.mrf.mxu0
    %v2203 = vadd.f32 %v1796, %v2202
    %v2204 = vpop.f32.mrf.mxu0
    %v2205 = vadd.f32 %v1800, %v2204
    %v2206 = vpop.f32.mrf.mxu0
    %v2207 = vadd.f32 %v1796, %v2206
    %v2208 = vpop.f32.mrf.mxu0
    %v2209 = vadd.f32 %v1800, %v2208
    %2210 = vdwg.mxu0
    %v2211 = vsub.f32 0.0, %v2160
    %v2212 = vsub.f32 0.0, %v2164
    %v2213 = vmul.f32 %v2211, 1.442695
    %v2214 = vpow.pop %v2213
    %v2215 = vmul.f32 %v2212, 1.442695
    %v2216 = vpow.pop %v2215
    %v2217 = vadd.f32 %v2214, 1.0
    %v2218 = vadd.f32 %v2216, 1.0
    %v2219 = vrcp.pop %v2217
    %v2220 = vmul.f32 1.0, %v2219
    %v2221 = vrcp.pop %v2218
    %v2222 = vmul.f32 1.0, %v2221
    %v2223 = vsub.f32 0.0, %v2162
    %v2224 = vsub.f32 0.0, %v2166
    %v2225 = vmul.f32 %v2223, 1.442695
    %v2226 = vpow.pop %v2225
    %v2227 = vmul.f32 %v2224, 1.442695
    %v2228 = vpow.pop %v2227
    %v2229 = vadd.f32 %v2226, 1.0
    %v2230 = vadd.f32 %v2228, 1.0
    %v2231 = vrcp.pop %v2229
    %v2232 = vmul.f32 1.0, %v2231
    %v2233 = vrcp.pop %v2230
    %v2234 = vmul.f32 1.0, %v2233
    %v2235 = vtanh.pop %v2203
    %v2236 = vtanh.pop %v2207
    %v2237 = vsub.f32 0.0, %v2205
    %v2238 = vsub.f32 0.0, %v2209
    %v2239 = vmul.f32 %v2237, 1.442695
    %v2240 = vpow.pop %v2239
    %v2241 = vmul.f32 %v2238, 1.442695
    %v2242 = vpow.pop %v2241
    %v2243 = vadd.f32 %v2240, 1.0
    %v2244 = vadd.f32 %v2242, 1.0
    %v2245 = vrcp.pop %v2243
    %v2246 = vmul.f32 1.0, %v2245
    %v2247 = vrcp.pop %v2244
    %v2248 = vmul.f32 1.0, %v2247
    %v2249 = vmul.f32 %v2232, %v1574
    %v2250 = vmul.f32 %v2234, %v1575
    %v2251 = vmul.f32 %v2220, %v2235
    %v2252 = vmul.f32 %v2222, %v2236
    %v2253 = vadd.f32 %v2249, %v2251
    %v2254 = vadd.f32 %v2250, %v2252
    %v2255 = vtanh.pop %v2253
    %v2256 = vtanh.pop %v2254
    %v2257 = vmul.f32 %v2246, %v2255
    %v2258 = vmul.f32 %v2248, %v2256
    %v2259 = vpack.c.bf16 %v2258, %v2257
    %v2260 = vld [vmem:[#allocation13] sm:$0xf]
    %v2261 = vld [vmem:[#allocation13 + $0x4] sm:$0xf]
    %v2262 = vld [vmem:[#allocation13 + $0x8] sm:$0xf]
    %v2263 = vld [vmem:[#allocation13 + $0xc] sm:$0xf]
    %v2264 = vld [vmem:[#allocation13 + $0x10] sm:$0xf]
    %v2265 = vld [vmem:[#allocation13 + $0x14] sm:$0xf]
    %v2266 = vld [vmem:[#allocation13 + $0x18] sm:$0xf]
    %v2267 = vld [vmem:[#allocation13 + $0x1c] sm:$0xf]
    %v2268 = vld [vmem:[#allocation13 + $0x20] sm:$0xf]
    %v2269 = vld [vmem:[#allocation13 + $0x24] sm:$0xf]
    %v2270 = vld [vmem:[#allocation13 + $0x28] sm:$0xf]
    %v2271 = vld [vmem:[#allocation13 + $0x2c] sm:$0xf]
    %v2272 = vld [vmem:[#allocation13 + $0x30] sm:$0xf]
    %v2273 = vld [vmem:[#allocation13 + $0x34] sm:$0xf]
    %v2274 = vld [vmem:[#allocation13 + $0x38] sm:$0xf]
    %v2275 = vld [vmem:[#allocation13 + $0x3c] sm:$0xf]
    %v2276 = vld [vmem:[%s10] sm:$0x1]
    %v2278 = vlaneseq
    %v2279 = vshrl.u32 %v2278, 7
    %v2280 = vsub.s32 0, %v2279
    %v2281 = vrot.slane %v2276, %v2280
    %v2299 = vunpack.c.l.b16 %v2260
    %v2300 = vunpack.c.l.b16 %v2261
    %v2301 = vunpack.c.l.b16 %v2262
    %v2302 = vunpack.c.l.b16 %v2263
    %v2303 = vunpack.c.l.b16 %v2264
    %v2304 = vunpack.c.l.b16 %v2265
    %v2305 = vunpack.c.l.b16 %v2266
    %v2306 = vunpack.c.l.b16 %v2267
    %v2307 = vunpack.c.l.b16 %v2268
    %v2308 = vunpack.c.l.b16 %v2269
    %v2309 = vunpack.c.l.b16 %v2270
    %v2310 = vunpack.c.l.b16 %v2271
    %v2311 = vunpack.c.l.b16 %v2272
    %v2312 = vunpack.c.l.b16 %v2273
    %v2313 = vunpack.c.l.b16 %v2274
    %v2314 = vunpack.c.l.b16 %v2275
    %v2315 = vpack.c.b16 %v2300, %v2299
    %v2316 = vpack.c.b16 %v2302, %v2301
    %v2317 = vpack.c.b16 %v2304, %v2303
    %v2318 = vpack.c.b16 %v2306, %v2305
    %v2319 = vpack.c.b16 %v2308, %v2307
    %v2320 = vpack.c.b16 %v2310, %v2309
    %v2321 = vpack.c.b16 %v2312, %v2311
    %v2322 = vpack.c.b16 %v2314, %v2313
    %2331 = vmatprep.subr.bf16.mxu0 0
    %2332 = vmatpush1.bf16.msra.mxu0 %v2322
    %2333 = vmatprep.subr.bf16.mxu0 0
    %2334 = vmatpush1.bf16.msra.mxu0 %v2321
    %2335 = vmatprep.subr.bf16.mxu0 0
    %2336 = vmatpush1.bf16.msra.mxu0 %v2320
    %2337 = vmatprep.subr.bf16.mxu0 0
    %2338 = vmatpush1.bf16.msra.mxu0 %v2319
    %2339 = vmatprep.subr.bf16.mxu0 0
    %2340 = vmatpush1.bf16.msra.mxu0 %v2318
    %2341 = vmatprep.subr.bf16.mxu0 0
    %2342 = vmatpush1.bf16.msra.mxu0 %v2317
    %2343 = vmatprep.subr.bf16.mxu0 0
    %2344 = vmatpush1.bf16.msra.mxu0 %v2316
    %2345 = vmatprep.subr.bf16.mxu0 0
    %2346 = vmatpush1.bf16.msra.mxu0 %v2315
    %2347 = vmatprep.subr.bf16.mxu0 0
    %2348 = vmatpush2.bf16.msra.mxu0 0
    %2349 = vmatprep.subr.bf16.mxu0 0
    %2350 = vmatpush2.bf16.msra.mxu0 0
    %2351 = vmatprep.subr.bf16.mxu0 0
    %2352 = vmatpush2.bf16.msra.mxu0 0
    %2353 = vmatprep.subr.bf16.mxu0 0
    %2354 = vmatpush2.bf16.msra.mxu0 0
    %2355 = vmatprep.subr.bf16.mxu0 0
    %2356 = vmatpush2.bf16.msra.mxu0 0
    %2357 = vmatprep.subr.bf16.mxu0 0
    %2358 = vmatpush2.bf16.msra.mxu0 0
    %2359 = vmatprep.subr.bf16.mxu0 0
    %2360 = vmatpush2.bf16.msra.mxu0 0
    %2361 = vmatprep.subr.bf16.mxu0 0
    %2362 = vmatpush2.bf16.msra.mxu0 0
    %2363 = vmatprep.mubr.bf16.mxu0 0
    %2364 = vmatmul.mubr.bf16.gmra.mxu0 %v2259
    %v2365 = vpop.f32.mrf.mxu0
    %v2366 = vadd.f32 %v2281, %v2365
    %v2367 = vpop.f32.mrf.mxu0
    %v2368 = vpop.f32.mrf.mxu0
    %v2369 = vadd.f32 %v2281, %v2368
    %v2370 = vpop.f32.mrf.mxu0
    %2371 = vdwg.mxu0
    %2372 = vst [vmem:[#allocation14 + $0x8] sm:$0xff] %v2366
    %2373 = vst [vmem:[#allocation14 + $0x40] sm:$0xff] %v2369
    %2374 = vmax.xlane.f32.xlu0 %v2366
    %v2375 = vpop.xlane.xlu0 %2374
    %2376 = vmax.xlane.f32.xlu0 %v2369
    %v2377 = vpop.xlane.xlu0 %2376
    %vm2378 = vcmp.eq.f32.partialorder %v2366, %v2375
    %vm2379 = vcmp.eq.f32.partialorder %v2369, %v2377
    %v2380 = vsel %vm2378, %v1056, 128.0
    %v2381 = vsel %vm2379, %v1056, 128.0
    %2382 = vmin.xlane.f32.xlu0 %v2380
    %v2383 = vpop.xlane.xlu0 %2382
    %2384 = vmin.xlane.f32.xlu0 %v2381
    %v2385 = vpop.xlane.xlu0 %2384
    %v2386 = vcvt.f32.s32.to.zero.pseudo %v2383
    %v2387 = vcvt.f32.s32.to.zero.pseudo %v2385
    %vm2388 = vcmask 15368
    %2389 = vst.msk [vmem:[%s12] sm:$0xff] %vm2388, %v2386
    %2390 = vst.msk [vmem:[%s12 + $0x8] sm:$0xff] %vm2388, %v2387
    %vm2391 = vcmp.eq.s32.totalorder %v1055, %v2386
    %vm2392 = vcmp.eq.s32.totalorder %v1055, %v2387
    %v2393 = vsel %vm2391, 1, 0
    %v2394 = vsel %vm2392, 1, 0
    %v2395 = vcvt.s32.f32 %v2393
    %v2396 = vcvt.s32.f32 %v2394
    %v2397 = vpack.c.bf16 %v2396, %v2395
    %v2398 = vld [vmem:[#allocation11] sm:$0xff]
    %v2399 = vld [vmem:[#allocation11 + $0x8] sm:$0xff]
    %v2400 = vld [vmem:[#allocation11 + $0x10] sm:$0xff]
    %v2401 = vld [vmem:[#allocation11 + $0x18] sm:$0xff]
    %v2402 = vld [vmem:[#allocation11 + $0x20] sm:$0xff]
    %v2403 = vld [vmem:[#allocation11 + $0x28] sm:$0xff]
    %v2404 = vld [vmem:[#allocation11 + $0x30] sm:$0xff]
    %v2405 = vld [vmem:[#allocation11 + $0x38] sm:$0xff]
    %v2406 = vld [vmem:[#allocation11 + $0x40] sm:$0xff]
    %v2407 = vld [vmem:[#allocation11 + $0x48] sm:$0xff]
    %v2408 = vld [vmem:[#allocation11 + $0x50] sm:$0xff]
    %v2409 = vld [vmem:[#allocation11 + $0x58] sm:$0xff]
    %v2410 = vld [vmem:[#allocation11 + $0x60] sm:$0xff]
    %v2411 = vld [vmem:[#allocation11 + $0x68] sm:$0xff]
    %v2412 = vld [vmem:[#allocation11 + $0x70] sm:$0xff]
    %v2413 = vld [vmem:[#allocation11 + $0x78] sm:$0xff]
    %v2414 = vld [vmem:[#allocation11 + $0x80] sm:$0xff]
    %v2415 = vld [vmem:[#allocation11 + $0x88] sm:$0xff]
    %v2416 = vld [vmem:[#allocation11 + $0x90] sm:$0xff]
    %v2417 = vld [vmem:[#allocation11 + $0x98] sm:$0xff]
    %v2418 = vld [vmem:[#allocation11 + $0xa0] sm:$0xff]
    %v2419 = vld [vmem:[#allocation11 + $0xa8] sm:$0xff]
    %v2420 = vld [vmem:[#allocation11 + $0xb0] sm:$0xff]
    %v2421 = vld [vmem:[#allocation11 + $0xb8] sm:$0xff]
    %v2422 = vld [vmem:[#allocation11 + $0xc0] sm:$0xff]
    %v2423 = vld [vmem:[#allocation11 + $0xc8] sm:$0xff]
    %v2424 = vld [vmem:[#allocation11 + $0xd0] sm:$0xff]
    %v2425 = vld [vmem:[#allocation11 + $0xd8] sm:$0xff]
    %v2426 = vld [vmem:[#allocation11 + $0xe0] sm:$0xff]
    %v2427 = vld [vmem:[#allocation11 + $0xe8] sm:$0xff]
    %v2428 = vld [vmem:[#allocation11 + $0xf0] sm:$0xff]
    %v2429 = vld [vmem:[#allocation11 + $0xf8] sm:$0xff]
    %v2430 = vld [vmem:[#allocation11 + $0x100] sm:$0xff]
    %v2431 = vld [vmem:[#allocation11 + $0x108] sm:$0xff]
    %v2432 = vld [vmem:[#allocation11 + $0x110] sm:$0xff]
    %v2433 = vld [vmem:[#allocation11 + $0x118] sm:$0xff]
    %v2434 = vld [vmem:[#allocation11 + $0x120] sm:$0xff]
    %v2435 = vld [vmem:[#allocation11 + $0x128] sm:$0xff]
    %v2436 = vld [vmem:[#allocation11 + $0x130] sm:$0xff]
    %v2437 = vld [vmem:[#allocation11 + $0x138] sm:$0xff]
    %v2438 = vld [vmem:[#allocation11 + $0x140] sm:$0xff]
    %v2439 = vld [vmem:[#allocation11 + $0x148] sm:$0xff]
    %v2440 = vld [vmem:[#allocation11 + $0x150] sm:$0xff]
    %v2441 = vld [vmem:[#allocation11 + $0x158] sm:$0xff]
    %v2442 = vld [vmem:[#allocation11 + $0x160] sm:$0xff]
    %v2443 = vld [vmem:[#allocation11 + $0x168] sm:$0xff]
    %v2444 = vld [vmem:[#allocation11 + $0x170] sm:$0xff]
    %v2445 = vld [vmem:[#allocation11 + $0x178] sm:$0xff]
    %v2446 = vld [vmem:[#allocation11 + $0x180] sm:$0xff]
    %v2447 = vld [vmem:[#allocation11 + $0x188] sm:$0xff]
    %v2448 = vld [vmem:[#allocation11 + $0x190] sm:$0xff]
    %v2449 = vld [vmem:[#allocation11 + $0x198] sm:$0xff]
    %v2450 = vld [vmem:[#allocation11 + $0x1a0] sm:$0xff]
    %v2451 = vld [vmem:[#allocation11 + $0x1a8] sm:$0xff]
    %v2452 = vld [vmem:[#allocation11 + $0x1b0] sm:$0xff]
    %v2453 = vld [vmem:[#allocation11 + $0x1b8] sm:$0xff]
    %v2454 = vld [vmem:[#allocation11 + $0x1c0] sm:$0xff]
    %v2455 = vld [vmem:[#allocation11 + $0x1c8] sm:$0xff]
    %v2456 = vld [vmem:[#allocation11 + $0x1d0] sm:$0xff]
    %v2457 = vld [vmem:[#allocation11 + $0x1d8] sm:$0xff]
    %v2458 = vld [vmem:[#allocation11 + $0x1e0] sm:$0xff]
    %v2459 = vld [vmem:[#allocation11 + $0x1e8] sm:$0xff]
    %v2460 = vld [vmem:[#allocation11 + $0x1f0] sm:$0xff]
    %v2461 = vld [vmem:[#allocation11 + $0x1f8] sm:$0xff]
    %v2462 = vld [vmem:[%s8] sm:$0xf]
    %v2464 = vlaneseq
    %v2465 = vshrl.u32 %v2464, 7
    %v2466 = vsub.s32 0, %v2465
    %v2467 = vrot.slane %v2462, %v2466
    %v2468 = vlaneseq
    %v2469 = vshrl.u32 %v2468, 7
    %v2470 = vsub.s32 1, %v2469
    %v2471 = vrot.slane %v2462, %v2470
    %v2472 = vlaneseq
    %v2473 = vshrl.u32 %v2472, 7
    %v2474 = vsub.s32 2, %v2473
    %v2475 = vrot.slane %v2462, %v2474
    %v2476 = vlaneseq
    %v2477 = vshrl.u32 %v2476, 7
    %v2478 = vsub.s32 3, %v2477
    %v2479 = vrot.slane %v2462, %v2478
    %v2548 = vunpack.c.l.b16 %v2398
    %v2549 = vunpack.c.h.b16 %v2398
    %v2550 = vunpack.c.l.b16 %v2399
    %v2551 = vunpack.c.h.b16 %v2399
    %v2552 = vunpack.c.l.b16 %v2400
    %v2553 = vunpack.c.h.b16 %v2400
    %v2554 = vunpack.c.l.b16 %v2401
    %v2555 = vunpack.c.h.b16 %v2401
    %v2556 = vunpack.c.l.b16 %v2402
    %v2557 = vunpack.c.h.b16 %v2402
    %v2558 = vunpack.c.l.b16 %v2403
    %v2559 = vunpack.c.h.b16 %v2403
    %v2560 = vunpack.c.l.b16 %v2404
    %v2561 = vunpack.c.h.b16 %v2404
    %v2562 = vunpack.c.l.b16 %v2405
    %v2563 = vunpack.c.h.b16 %v2405
    %v2564 = vunpack.c.l.b16 %v2406
    %v2565 = vunpack.c.h.b16 %v2406
    %v2566 = vunpack.c.l.b16 %v2407
    %v2567 = vunpack.c.h.b16 %v2407
    %v2568 = vunpack.c.l.b16 %v2408
    %v2569 = vunpack.c.h.b16 %v2408
    %v2570 = vunpack.c.l.b16 %v2409
    %v2571 = vunpack.c.h.b16 %v2409
    %v2572 = vunpack.c.l.b16 %v2410
    %v2573 = vunpack.c.h.b16 %v2410
    %v2574 = vunpack.c.l.b16 %v2411
    %v2575 = vunpack.c.h.b16 %v2411
    %v2576 = vunpack.c.l.b16 %v2412
    %v2577 = vunpack.c.h.b16 %v2412
    %v2578 = vunpack.c.l.b16 %v2413
    %v2579 = vunpack.c.h.b16 %v2413
    %v2580 = vunpack.c.l.b16 %v2414
    %v2581 = vunpack.c.h.b16 %v2414
    %v2582 = vunpack.c.l.b16 %v2415
    %v2583 = vunpack.c.h.b16 %v2415
    %v2584 = vunpack.c.l.b16 %v2416
    %v2585 = vunpack.c.h.b16 %v2416
    %v2586 = vunpack.c.l.b16 %v2417
    %v2587 = vunpack.c.h.b16 %v2417
    %v2588 = vunpack.c.l.b16 %v2418
    %v2589 = vunpack.c.h.b16 %v2418
    %v2590 = vunpack.c.l.b16 %v2419
    %v2591 = vunpack.c.h.b16 %v2419
    %v2592 = vunpack.c.l.b16 %v2420
    %v2593 = vunpack.c.h.b16 %v2420
    %v2594 = vunpack.c.l.b16 %v2421
    %v2595 = vunpack.c.h.b16 %v2421
    %v2596 = vunpack.c.l.b16 %v2422
    %v2597 = vunpack.c.h.b16 %v2422
    %v2598 = vunpack.c.l.b16 %v2423
    %v2599 = vunpack.c.h.b16 %v2423
    %v2600 = vunpack.c.l.b16 %v2424
    %v2601 = vunpack.c.h.b16 %v2424
    %v2602 = vunpack.c.l.b16 %v2425
    %v2603 = vunpack.c.h.b16 %v2425
    %v2604 = vunpack.c.l.b16 %v2426
    %v2605 = vunpack.c.h.b16 %v2426
    %v2606 = vunpack.c.l.b16 %v2427
    %v2607 = vunpack.c.h.b16 %v2427
    %v2608 = vunpack.c.l.b16 %v2428
    %v2609 = vunpack.c.h.b16 %v2428
    %v2610 = vunpack.c.l.b16 %v2429
    %v2611 = vunpack.c.h.b16 %v2429
    %v2612 = vunpack.c.l.b16 %v2430
    %v2613 = vunpack.c.h.b16 %v2430
    %v2614 = vunpack.c.l.b16 %v2431
    %v2615 = vunpack.c.h.b16 %v2431
    %v2616 = vunpack.c.l.b16 %v2432
    %v2617 = vunpack.c.h.b16 %v2432
    %v2618 = vunpack.c.l.b16 %v2433
    %v2619 = vunpack.c.h.b16 %v2433
    %v2620 = vunpack.c.l.b16 %v2434
    %v2621 = vunpack.c.h.b16 %v2434
    %v2622 = vunpack.c.l.b16 %v2435
    %v2623 = vunpack.c.h.b16 %v2435
    %v2624 = vunpack.c.l.b16 %v2436
    %v2625 = vunpack.c.h.b16 %v2436
    %v2626 = vunpack.c.l.b16 %v2437
    %v2627 = vunpack.c.h.b16 %v2437
    %v2628 = vunpack.c.l.b16 %v2438
    %v2629 = vunpack.c.h.b16 %v2438
    %v2630 = vunpack.c.l.b16 %v2439
    %v2631 = vunpack.c.h.b16 %v2439
    %v2632 = vunpack.c.l.b16 %v2440
    %v2633 = vunpack.c.h.b16 %v2440
    %v2634 = vunpack.c.l.b16 %v2441
    %v2635 = vunpack.c.h.b16 %v2441
    %v2636 = vunpack.c.l.b16 %v2442
    %v2637 = vunpack.c.h.b16 %v2442
    %v2638 = vunpack.c.l.b16 %v2443
    %v2639 = vunpack.c.h.b16 %v2443
    %v2640 = vunpack.c.l.b16 %v2444
    %v2641 = vunpack.c.h.b16 %v2444
    %v2642 = vunpack.c.l.b16 %v2445
    %v2643 = vunpack.c.h.b16 %v2445
    %v2644 = vunpack.c.l.b16 %v2446
    %v2645 = vunpack.c.h.b16 %v2446
    %v2646 = vunpack.c.l.b16 %v2447
    %v2647 = vunpack.c.h.b16 %v2447
    %v2648 = vunpack.c.l.b16 %v2448
    %v2649 = vunpack.c.h.b16 %v2448
    %v2650 = vunpack.c.l.b16 %v2449
    %v2651 = vunpack.c.h.b16 %v2449
    %v2652 = vunpack.c.l.b16 %v2450
    %v2653 = vunpack.c.h.b16 %v2450
    %v2654 = vunpack.c.l.b16 %v2451
    %v2655 = vunpack.c.h.b16 %v2451
    %v2656 = vunpack.c.l.b16 %v2452
    %v2657 = vunpack.c.h.b16 %v2452
    %v2658 = vunpack.c.l.b16 %v2453
    %v2659 = vunpack.c.h.b16 %v2453
    %v2660 = vunpack.c.l.b16 %v2454
    %v2661 = vunpack.c.h.b16 %v2454
    %v2662 = vunpack.c.l.b16 %v2455
    %v2663 = vunpack.c.h.b16 %v2455
    %v2664 = vunpack.c.l.b16 %v2456
    %v2665 = vunpack.c.h.b16 %v2456
    %v2666 = vunpack.c.l.b16 %v2457
    %v2667 = vunpack.c.h.b16 %v2457
    %v2668 = vunpack.c.l.b16 %v2458
    %v2669 = vunpack.c.h.b16 %v2458
    %v2670 = vunpack.c.l.b16 %v2459
    %v2671 = vunpack.c.h.b16 %v2459
    %v2672 = vunpack.c.l.b16 %v2460
    %v2673 = vunpack.c.h.b16 %v2460
    %v2674 = vunpack.c.l.b16 %v2461
    %v2675 = vunpack.c.h.b16 %v2461
    %v2676 = vpack.c.b16 %v2552, %v2548
    %v2677 = vpack.c.b16 %v2553, %v2549
    %v2678 = vpack.c.b16 %v2554, %v2550
    %v2679 = vpack.c.b16 %v2555, %v2551
    %v2680 = vpack.c.b16 %v2560, %v2556
    %v2681 = vpack.c.b16 %v2561, %v2557
    %v2682 = vpack.c.b16 %v2562, %v2558
    %v2683 = vpack.c.b16 %v2563, %v2559
    %v2684 = vpack.c.b16 %v2568, %v2564
    %v2685 = vpack.c.b16 %v2569, %v2565
    %v2686 = vpack.c.b16 %v2570, %v2566
    %v2687 = vpack.c.b16 %v2571, %v2567
    %v2688 = vpack.c.b16 %v2576, %v2572
    %v2689 = vpack.c.b16 %v2577, %v2573
    %v2690 = vpack.c.b16 %v2578, %v2574
    %v2691 = vpack.c.b16 %v2579, %v2575
    %v2692 = vpack.c.b16 %v2584, %v2580
    %v2693 = vpack.c.b16 %v2585, %v2581
    %v2694 = vpack.c.b16 %v2586, %v2582
    %v2695 = vpack.c.b16 %v2587, %v2583
    %v2696 = vpack.c.b16 %v2592, %v2588
    %v2697 = vpack.c.b16 %v2593, %v2589
    %v2698 = vpack.c.b16 %v2594, %v2590
    %v2699 = vpack.c.b16 %v2595, %v2591
    %v2700 = vpack.c.b16 %v2600, %v2596
    %v2701 = vpack.c.b16 %v2601, %v2597
    %v2702 = vpack.c.b16 %v2602, %v2598
    %v2703 = vpack.c.b16 %v2603, %v2599
    %v2704 = vpack.c.b16 %v2608, %v2604
    %v2705 = vpack.c.b16 %v2609, %v2605
    %v2706 = vpack.c.b16 %v2610, %v2606
    %v2707 = vpack.c.b16 %v2611, %v2607
    %v2708 = vpack.c.b16 %v2616, %v2612
    %v2709 = vpack.c.b16 %v2617, %v2613
    %v2710 = vpack.c.b16 %v2618, %v2614
    %v2711 = vpack.c.b16 %v2619, %v2615
    %v2712 = vpack.c.b16 %v2624, %v2620
    %v2713 = vpack.c.b16 %v2625, %v2621
    %v2714 = vpack.c.b16 %v2626, %v2622
    %v2715 = vpack.c.b16 %v2627, %v2623
    %v2716 = vpack.c.b16 %v2632, %v2628
    %v2717 = vpack.c.b16 %v2633, %v2629
    %v2718 = vpack.c.b16 %v2634, %v2630
    %v2719 = vpack.c.b16 %v2635, %v2631
    %v2720 = vpack.c.b16 %v2640, %v2636
    %v2721 = vpack.c.b16 %v2641, %v2637
    %v2722 = vpack.c.b16 %v2642, %v2638
    %v2723 = vpack.c.b16 %v2643, %v2639
    %v2724 = vpack.c.b16 %v2648, %v2644
    %v2725 = vpack.c.b16 %v2649, %v2645
    %v2726 = vpack.c.b16 %v2650, %v2646
    %v2727 = vpack.c.b16 %v2651, %v2647
    %v2728 = vpack.c.b16 %v2656, %v2652
    %v2729 = vpack.c.b16 %v2657, %v2653
    %v2730 = vpack.c.b16 %v2658, %v2654
    %v2731 = vpack.c.b16 %v2659, %v2655
    %v2732 = vpack.c.b16 %v2664, %v2660
    %v2733 = vpack.c.b16 %v2665, %v2661
    %v2734 = vpack.c.b16 %v2666, %v2662
    %v2735 = vpack.c.b16 %v2667, %v2663
    %v2736 = vpack.c.b16 %v2672, %v2668
    %v2737 = vpack.c.b16 %v2673, %v2669
    %v2738 = vpack.c.b16 %v2674, %v2670
    %v2739 = vpack.c.b16 %v2675, %v2671
    %2804 = vmatprep.subr.bf16.mxu0 %v2705
    %2805 = vmatpush1.bf16.msra.mxu0 %v2704
    %2806 = vmatprep.subr.bf16.mxu0 %v2701
    %2807 = vmatpush1.bf16.msra.mxu0 %v2700
    %2808 = vmatprep.subr.bf16.mxu0 %v2697
    %2809 = vmatpush1.bf16.msra.mxu0 %v2696
    %2810 = vmatprep.subr.bf16.mxu0 %v2693
    %2811 = vmatpush1.bf16.msra.mxu0 %v2692
    %2812 = vmatprep.subr.bf16.mxu0 %v2689
    %2813 = vmatpush1.bf16.msra.mxu0 %v2688
    %2814 = vmatprep.subr.bf16.mxu0 %v2685
    %2815 = vmatpush1.bf16.msra.mxu0 %v2684
    %2816 = vmatprep.subr.bf16.mxu0 %v2681
    %2817 = vmatpush1.bf16.msra.mxu0 %v2680
    %2818 = vmatprep.subr.bf16.mxu0 %v2677
    %2819 = vmatpush1.bf16.msra.mxu0 %v2676
    %2820 = vmatprep.subr.bf16.mxu0 %v2737
    %2821 = vmatpush2.bf16.msra.mxu0 %v2736
    %2822 = vmatprep.subr.bf16.mxu0 %v2733
    %2823 = vmatpush2.bf16.msra.mxu0 %v2732
    %2824 = vmatprep.subr.bf16.mxu0 %v2729
    %2825 = vmatpush2.bf16.msra.mxu0 %v2728
    %2826 = vmatprep.subr.bf16.mxu0 %v2725
    %2827 = vmatpush2.bf16.msra.mxu0 %v2724
    %2828 = vmatprep.subr.bf16.mxu0 %v2721
    %2829 = vmatpush2.bf16.msra.mxu0 %v2720
    %2830 = vmatprep.subr.bf16.mxu0 %v2717
    %2831 = vmatpush2.bf16.msra.mxu0 %v2716
    %2832 = vmatprep.subr.bf16.mxu0 %v2713
    %2833 = vmatpush2.bf16.msra.mxu0 %v2712
    %2834 = vmatprep.subr.bf16.mxu0 %v2709
    %2835 = vmatpush2.bf16.msra.mxu0 %v2708
    %2836 = vmatprep.mubr.bf16.mxu0 %v2259
    %2837 = vmatmul.mubr.bf16.gmra.mxu0 %v2397
    %v2838 = vpop.f32.mrf.mxu0
    %v2839 = vadd.f32 %v2467, %v2838
    %v2840 = vpop.f32.mrf.mxu0
    %v2841 = vadd.f32 %v2471, %v2840
    %v2842 = vpop.f32.mrf.mxu0
    %v2843 = vadd.f32 %v2467, %v2842
    %v2844 = vpop.f32.mrf.mxu0
    %v2845 = vadd.f32 %v2471, %v2844
    %2846 = vdwg.mxu0
    %2847 = vmatprep.subr.bf16.mxu0 %v2707
    %2848 = vmatpush1.bf16.msra.mxu0 %v2706
    %2849 = vmatprep.subr.bf16.mxu0 %v2703
    %2850 = vmatpush1.bf16.msra.mxu0 %v2702
    %2851 = vmatprep.subr.bf16.mxu0 %v2699
    %2852 = vmatpush1.bf16.msra.mxu0 %v2698
    %2853 = vmatprep.subr.bf16.mxu0 %v2695
    %2854 = vmatpush1.bf16.msra.mxu0 %v2694
    %2855 = vmatprep.subr.bf16.mxu0 %v2691
    %2856 = vmatpush1.bf16.msra.mxu0 %v2690
    %2857 = vmatprep.subr.bf16.mxu0 %v2687
    %2858 = vmatpush1.bf16.msra.mxu0 %v2686
    %2859 = vmatprep.subr.bf16.mxu0 %v2683
    %2860 = vmatpush1.bf16.msra.mxu0 %v2682
    %2861 = vmatprep.subr.bf16.mxu0 %v2679
    %2862 = vmatpush1.bf16.msra.mxu0 %v2678
    %2863 = vmatprep.subr.bf16.mxu0 %v2739
    %2864 = vmatpush2.bf16.msra.mxu0 %v2738
    %2865 = vmatprep.subr.bf16.mxu0 %v2735
    %2866 = vmatpush2.bf16.msra.mxu0 %v2734
    %2867 = vmatprep.subr.bf16.mxu0 %v2731
    %2868 = vmatpush2.bf16.msra.mxu0 %v2730
    %2869 = vmatprep.subr.bf16.mxu0 %v2727
    %2870 = vmatpush2.bf16.msra.mxu0 %v2726
    %2871 = vmatprep.subr.bf16.mxu0 %v2723
    %2872 = vmatpush2.bf16.msra.mxu0 %v2722
    %2873 = vmatprep.subr.bf16.mxu0 %v2719
    %2874 = vmatpush2.bf16.msra.mxu0 %v2718
    %2875 = vmatprep.subr.bf16.mxu0 %v2715
    %2876 = vmatpush2.bf16.msra.mxu0 %v2714
    %2877 = vmatprep.subr.bf16.mxu0 %v2711
    %2878 = vmatpush2.bf16.msra.mxu0 %v2710
    %2879 = vmatprep.mubr.bf16.mxu0 %v2259
    %2880 = vmatmul.mubr.bf16.gmra.mxu0 %v2397
    %v2881 = vpop.f32.mrf.mxu0
    %v2882 = vadd.f32 %v2475, %v2881
    %v2883 = vpop.f32.mrf.mxu0
    %v2884 = vadd.f32 %v2479, %v2883
    %v2885 = vpop.f32.mrf.mxu0
    %v2886 = vadd.f32 %v2475, %v2885
    %v2887 = vpop.f32.mrf.mxu0
    %v2888 = vadd.f32 %v2479, %v2887
    %2889 = vdwg.mxu0
    %v2890 = vsub.f32 0.0, %v2839
    %v2891 = vsub.f32 0.0, %v2843
    %v2892 = vmul.f32 %v2890, 1.442695
    %v2893 = vpow.pop %v2892
    %v2894 = vmul.f32 %v2891, 1.442695
    %v2895 = vpow.pop %v2894
    %v2896 = vadd.f32 %v2893, 1.0
    %v2897 = vadd.f32 %v2895, 1.0
    %v2898 = vrcp.pop %v2896
    %v2899 = vmul.f32 1.0, %v2898
    %v2900 = vrcp.pop %v2897
    %v2901 = vmul.f32 1.0, %v2900
    %v2902 = vsub.f32 0.0, %v2841
    %v2903 = vsub.f32 0.0, %v2845
    %v2904 = vmul.f32 %v2902, 1.442695
    %v2905 = vpow.pop %v2904
    %v2906 = vmul.f32 %v2903, 1.442695
    %v2907 = vpow.pop %v2906
    %v2908 = vadd.f32 %v2905, 1.0
    %v2909 = vadd.f32 %v2907, 1.0
    %v2910 = vrcp.pop %v2908
    %v2911 = vmul.f32 1.0, %v2910
    %v2912 = vrcp.pop %v2909
    %v2913 = vmul.f32 1.0, %v2912
    %v2914 = vtanh.pop %v2882
    %v2915 = vtanh.pop %v2886
    %v2916 = vsub.f32 0.0, %v2884
    %v2917 = vsub.f32 0.0, %v2888
    %v2918 = vmul.f32 %v2916, 1.442695
    %v2919 = vpow.pop %v2918
    %v2920 = vmul.f32 %v2917, 1.442695
    %v2921 = vpow.pop %v2920
    %v2922 = vadd.f32 %v2919, 1.0
    %v2923 = vadd.f32 %v2921, 1.0
    %v2924 = vrcp.pop %v2922
    %v2925 = vmul.f32 1.0, %v2924
    %v2926 = vrcp.pop %v2923
    %v2927 = vmul.f32 1.0, %v2926
    %v2928 = vmul.f32 %v2911, %v2253
    %v2929 = vmul.f32 %v2913, %v2254
    %v2930 = vmul.f32 %v2899, %v2914
    %v2931 = vmul.f32 %v2901, %v2915
    %v2932 = vadd.f32 %v2928, %v2930
    %v2933 = vadd.f32 %v2929, %v2931
    %v2934 = vtanh.pop %v2932
    %v2935 = vtanh.pop %v2933
    %v2936 = vmul.f32 %v2925, %v2934
    %v2937 = vmul.f32 %v2927, %v2935
    %v2938 = vpack.c.bf16 %v2937, %v2936
    %v2939 = vld [vmem:[#allocation13] sm:$0xf]
    %v2940 = vld [vmem:[#allocation13 + $0x4] sm:$0xf]
    %v2941 = vld [vmem:[#allocation13 + $0x8] sm:$0xf]
    %v2942 = vld [vmem:[#allocation13 + $0xc] sm:$0xf]
    %v2943 = vld [vmem:[#allocation13 + $0x10] sm:$0xf]
    %v2944 = vld [vmem:[#allocation13 + $0x14] sm:$0xf]
    %v2945 = vld [vmem:[#allocation13 + $0x18] sm:$0xf]
    %v2946 = vld [vmem:[#allocation13 + $0x1c] sm:$0xf]
    %v2947 = vld [vmem:[#allocation13 + $0x20] sm:$0xf]
    %v2948 = vld [vmem:[#allocation13 + $0x24] sm:$0xf]
    %v2949 = vld [vmem:[#allocation13 + $0x28] sm:$0xf]
    %v2950 = vld [vmem:[#allocation13 + $0x2c] sm:$0xf]
    %v2951 = vld [vmem:[#allocation13 + $0x30] sm:$0xf]
    %v2952 = vld [vmem:[#allocation13 + $0x34] sm:$0xf]
    %v2953 = vld [vmem:[#allocation13 + $0x38] sm:$0xf]
    %v2954 = vld [vmem:[#allocation13 + $0x3c] sm:$0xf]
    %v2955 = vld [vmem:[%s10] sm:$0x1]
    %v2957 = vlaneseq
    %v2958 = vshrl.u32 %v2957, 7
    %v2959 = vsub.s32 0, %v2958
    %v2960 = vrot.slane %v2955, %v2959
    %v2978 = vunpack.c.l.b16 %v2939
    %v2979 = vunpack.c.l.b16 %v2940
    %v2980 = vunpack.c.l.b16 %v2941
    %v2981 = vunpack.c.l.b16 %v2942
    %v2982 = vunpack.c.l.b16 %v2943
    %v2983 = vunpack.c.l.b16 %v2944
    %v2984 = vunpack.c.l.b16 %v2945
    %v2985 = vunpack.c.l.b16 %v2946
    %v2986 = vunpack.c.l.b16 %v2947
    %v2987 = vunpack.c.l.b16 %v2948
    %v2988 = vunpack.c.l.b16 %v2949
    %v2989 = vunpack.c.l.b16 %v2950
    %v2990 = vunpack.c.l.b16 %v2951
    %v2991 = vunpack.c.l.b16 %v2952
    %v2992 = vunpack.c.l.b16 %v2953
    %v2993 = vunpack.c.l.b16 %v2954
    %v2994 = vpack.c.b16 %v2979, %v2978
    %v2995 = vpack.c.b16 %v2981, %v2980
    %v2996 = vpack.c.b16 %v2983, %v2982
    %v2997 = vpack.c.b16 %v2985, %v2984
    %v2998 = vpack.c.b16 %v2987, %v2986
    %v2999 = vpack.c.b16 %v2989, %v2988
    %v3000 = vpack.c.b16 %v2991, %v2990
    %v3001 = vpack.c.b16 %v2993, %v2992
    %3010 = vmatprep.subr.bf16.mxu0 0
    %3011 = vmatpush1.bf16.msra.mxu0 %v3001
    %3012 = vmatprep.subr.bf16.mxu0 0
    %3013 = vmatpush1.bf16.msra.mxu0 %v3000
    %3014 = vmatprep.subr.bf16.mxu0 0
    %3015 = vmatpush1.bf16.msra.mxu0 %v2999
    %3016 = vmatprep.subr.bf16.mxu0 0
    %3017 = vmatpush1.bf16.msra.mxu0 %v2998
    %3018 = vmatprep.subr.bf16.mxu0 0
    %3019 = vmatpush1.bf16.msra.mxu0 %v2997
    %3020 = vmatprep.subr.bf16.mxu0 0
    %3021 = vmatpush1.bf16.msra.mxu0 %v2996
    %3022 = vmatprep.subr.bf16.mxu0 0
    %3023 = vmatpush1.bf16.msra.mxu0 %v2995
    %3024 = vmatprep.subr.bf16.mxu0 0
    %3025 = vmatpush1.bf16.msra.mxu0 %v2994
    %3026 = vmatprep.subr.bf16.mxu0 0
    %3027 = vmatpush2.bf16.msra.mxu0 0
    %3028 = vmatprep.subr.bf16.mxu0 0
    %3029 = vmatpush2.bf16.msra.mxu0 0
    %3030 = vmatprep.subr.bf16.mxu0 0
    %3031 = vmatpush2.bf16.msra.mxu0 0
    %3032 = vmatprep.subr.bf16.mxu0 0
    %3033 = vmatpush2.bf16.msra.mxu0 0
    %3034 = vmatprep.subr.bf16.mxu0 0
    %3035 = vmatpush2.bf16.msra.mxu0 0
    %3036 = vmatprep.subr.bf16.mxu0 0
    %3037 = vmatpush2.bf16.msra.mxu0 0
    %3038 = vmatprep.subr.bf16.mxu0 0
    %3039 = vmatpush2.bf16.msra.mxu0 0
    %3040 = vmatprep.subr.bf16.mxu0 0
    %3041 = vmatpush2.bf16.msra.mxu0 0
    %3042 = vmatprep.mubr.bf16.mxu0 0
    %3043 = vmatmul.mubr.bf16.gmra.mxu0 %v2938
    %v3044 = vpop.f32.mrf.mxu0
    %v3045 = vadd.f32 %v2960, %v3044
    %v3046 = vpop.f32.mrf.mxu0
    %v3047 = vpop.f32.mrf.mxu0
    %v3048 = vadd.f32 %v2960, %v3047
    %v3049 = vpop.f32.mrf.mxu0
    %3050 = vdwg.mxu0
    %3051 = vst [vmem:[#allocation14 + $0x10] sm:$0xff] %v3045
    %3052 = vst [vmem:[#allocation14 + $0x48] sm:$0xff] %v3048
    %3053 = vmax.xlane.f32.xlu0 %v3045
    %v3054 = vpop.xlane.xlu0 %3053
    %3055 = vmax.xlane.f32.xlu0 %v3048
    %v3056 = vpop.xlane.xlu0 %3055
    %vm3057 = vcmp.eq.f32.partialorder %v3045, %v3054
    %vm3058 = vcmp.eq.f32.partialorder %v3048, %v3056
    %v3059 = vsel %vm3057, %v1056, 128.0
    %v3060 = vsel %vm3058, %v1056, 128.0
    %3061 = vmin.xlane.f32.xlu0 %v3059
    %v3062 = vpop.xlane.xlu0 %3061
    %3063 = vmin.xlane.f32.xlu0 %v3060
    %v3064 = vpop.xlane.xlu0 %3063
    %v3065 = vcvt.f32.s32.to.zero.pseudo %v3062
    %v3066 = vcvt.f32.s32.to.zero.pseudo %v3064
    %vm3067 = vcmask 23568
    %3068 = vst.msk [vmem:[%s12] sm:$0xff] %vm3067, %v3065
    %3069 = vst.msk [vmem:[%s12 + $0x8] sm:$0xff] %vm3067, %v3066
    %vm3070 = vcmp.eq.s32.totalorder %v1055, %v3065
    %vm3071 = vcmp.eq.s32.totalorder %v1055, %v3066
    %v3072 = vsel %vm3070, 1, 0
    %v3073 = vsel %vm3071, 1, 0
    %v3074 = vcvt.s32.f32 %v3072
    %v3075 = vcvt.s32.f32 %v3073
    %v3076 = vpack.c.bf16 %v3075, %v3074
    %v3077 = vld [vmem:[#allocation11] sm:$0xff]
    %v3078 = vld [vmem:[#allocation11 + $0x8] sm:$0xff]
    %v3079 = vld [vmem:[#allocation11 + $0x10] sm:$0xff]
    %v3080 = vld [vmem:[#allocation11 + $0x18] sm:$0xff]
    %v3081 = vld [vmem:[#allocation11 + $0x20] sm:$0xff]
    %v3082 = vld [vmem:[#allocation11 + $0x28] sm:$0xff]
    %v3083 = vld [vmem:[#allocation11 + $0x30] sm:$0xff]
    %v3084 = vld [vmem:[#allocation11 + $0x38] sm:$0xff]
    %v3085 = vld [vmem:[#allocation11 + $0x40] sm:$0xff]
    %v3086 = vld [vmem:[#allocation11 + $0x48] sm:$0xff]
    %v3087 = vld [vmem:[#allocation11 + $0x50] sm:$0xff]
    %v3088 = vld [vmem:[#allocation11 + $0x58] sm:$0xff]
    %v3089 = vld [vmem:[#allocation11 + $0x60] sm:$0xff]
    %v3090 = vld [vmem:[#allocation11 + $0x68] sm:$0xff]
    %v3091 = vld [vmem:[#allocation11 + $0x70] sm:$0xff]
    %v3092 = vld [vmem:[#allocation11 + $0x78] sm:$0xff]
    %v3093 = vld [vmem:[#allocation11 + $0x80] sm:$0xff]
    %v3094 = vld [vmem:[#allocation11 + $0x88] sm:$0xff]
    %v3095 = vld [vmem:[#allocation11 + $0x90] sm:$0xff]
    %v3096 = vld [vmem:[#allocation11 + $0x98] sm:$0xff]
    %v3097 = vld [vmem:[#allocation11 + $0xa0] sm:$0xff]
    %v3098 = vld [vmem:[#allocation11 + $0xa8] sm:$0xff]
    %v3099 = vld [vmem:[#allocation11 + $0xb0] sm:$0xff]
    %v3100 = vld [vmem:[#allocation11 + $0xb8] sm:$0xff]
    %v3101 = vld [vmem:[#allocation11 + $0xc0] sm:$0xff]
    %v3102 = vld [vmem:[#allocation11 + $0xc8] sm:$0xff]
    %v3103 = vld [vmem:[#allocation11 + $0xd0] sm:$0xff]
    %v3104 = vld [vmem:[#allocation11 + $0xd8] sm:$0xff]
    %v3105 = vld [vmem:[#allocation11 + $0xe0] sm:$0xff]
    %v3106 = vld [vmem:[#allocation11 + $0xe8] sm:$0xff]
    %v3107 = vld [vmem:[#allocation11 + $0xf0] sm:$0xff]
    %v3108 = vld [vmem:[#allocation11 + $0xf8] sm:$0xff]
    %v3109 = vld [vmem:[#allocation11 + $0x100] sm:$0xff]
    %v3110 = vld [vmem:[#allocation11 + $0x108] sm:$0xff]
    %v3111 = vld [vmem:[#allocation11 + $0x110] sm:$0xff]
    %v3112 = vld [vmem:[#allocation11 + $0x118] sm:$0xff]
    %v3113 = vld [vmem:[#allocation11 + $0x120] sm:$0xff]
    %v3114 = vld [vmem:[#allocation11 + $0x128] sm:$0xff]
    %v3115 = vld [vmem:[#allocation11 + $0x130] sm:$0xff]
    %v3116 = vld [vmem:[#allocation11 + $0x138] sm:$0xff]
    %v3117 = vld [vmem:[#allocation11 + $0x140] sm:$0xff]
    %v3118 = vld [vmem:[#allocation11 + $0x148] sm:$0xff]
    %v3119 = vld [vmem:[#allocation11 + $0x150] sm:$0xff]
    %v3120 = vld [vmem:[#allocation11 + $0x158] sm:$0xff]
    %v3121 = vld [vmem:[#allocation11 + $0x160] sm:$0xff]
    %v3122 = vld [vmem:[#allocation11 + $0x168] sm:$0xff]
    %v3123 = vld [vmem:[#allocation11 + $0x170] sm:$0xff]
    %v3124 = vld [vmem:[#allocation11 + $0x178] sm:$0xff]
    %v3125 = vld [vmem:[#allocation11 + $0x180] sm:$0xff]
    %v3126 = vld [vmem:[#allocation11 + $0x188] sm:$0xff]
    %v3127 = vld [vmem:[#allocation11 + $0x190] sm:$0xff]
    %v3128 = vld [vmem:[#allocation11 + $0x198] sm:$0xff]
    %v3129 = vld [vmem:[#allocation11 + $0x1a0] sm:$0xff]
    %v3130 = vld [vmem:[#allocation11 + $0x1a8] sm:$0xff]
    %v3131 = vld [vmem:[#allocation11 + $0x1b0] sm:$0xff]
    %v3132 = vld [vmem:[#allocation11 + $0x1b8] sm:$0xff]
    %v3133 = vld [vmem:[#allocation11 + $0x1c0] sm:$0xff]
    %v3134 = vld [vmem:[#allocation11 + $0x1c8] sm:$0xff]
    %v3135 = vld [vmem:[#allocation11 + $0x1d0] sm:$0xff]
    %v3136 = vld [vmem:[#allocation11 + $0x1d8] sm:$0xff]
    %v3137 = vld [vmem:[#allocation11 + $0x1e0] sm:$0xff]
    %v3138 = vld [vmem:[#allocation11 + $0x1e8] sm:$0xff]
    %v3139 = vld [vmem:[#allocation11 + $0x1f0] sm:$0xff]
    %v3140 = vld [vmem:[#allocation11 + $0x1f8] sm:$0xff]
    %v3141 = vld [vmem:[%s8] sm:$0xf]
    %v3143 = vlaneseq
    %v3144 = vshrl.u32 %v3143, 7
    %v3145 = vsub.s32 0, %v3144
    %v3146 = vrot.slane %v3141, %v3145
    %v3147 = vlaneseq
    %v3148 = vshrl.u32 %v3147, 7
    %v3149 = vsub.s32 1, %v3148
    %v3150 = vrot.slane %v3141, %v3149
    %v3151 = vlaneseq
    %v3152 = vshrl.u32 %v3151, 7
    %v3153 = vsub.s32 2, %v3152
    %v3154 = vrot.slane %v3141, %v3153
    %v3155 = vlaneseq
    %v3156 = vshrl.u32 %v3155, 7
    %v3157 = vsub.s32 3, %v3156
    %v3158 = vrot.slane %v3141, %v3157
    %v3227 = vunpack.c.l.b16 %v3077
    %v3228 = vunpack.c.h.b16 %v3077
    %v3229 = vunpack.c.l.b16 %v3078
    %v3230 = vunpack.c.h.b16 %v3078
    %v3231 = vunpack.c.l.b16 %v3079
    %v3232 = vunpack.c.h.b16 %v3079
    %v3233 = vunpack.c.l.b16 %v3080
    %v3234 = vunpack.c.h.b16 %v3080
    %v3235 = vunpack.c.l.b16 %v3081
    %v3236 = vunpack.c.h.b16 %v3081
    %v3237 = vunpack.c.l.b16 %v3082
    %v3238 = vunpack.c.h.b16 %v3082
    %v3239 = vunpack.c.l.b16 %v3083
    %v3240 = vunpack.c.h.b16 %v3083
    %v3241 = vunpack.c.l.b16 %v3084
    %v3242 = vunpack.c.h.b16 %v3084
    %v3243 = vunpack.c.l.b16 %v3085
    %v3244 = vunpack.c.h.b16 %v3085
    %v3245 = vunpack.c.l.b16 %v3086
    %v3246 = vunpack.c.h.b16 %v3086
    %v3247 = vunpack.c.l.b16 %v3087
    %v3248 = vunpack.c.h.b16 %v3087
    %v3249 = vunpack.c.l.b16 %v3088
    %v3250 = vunpack.c.h.b16 %v3088
    %v3251 = vunpack.c.l.b16 %v3089
    %v3252 = vunpack.c.h.b16 %v3089
    %v3253 = vunpack.c.l.b16 %v3090
    %v3254 = vunpack.c.h.b16 %v3090
    %v3255 = vunpack.c.l.b16 %v3091
    %v3256 = vunpack.c.h.b16 %v3091
    %v3257 = vunpack.c.l.b16 %v3092
    %v3258 = vunpack.c.h.b16 %v3092
    %v3259 = vunpack.c.l.b16 %v3093
    %v3260 = vunpack.c.h.b16 %v3093
    %v3261 = vunpack.c.l.b16 %v3094
    %v3262 = vunpack.c.h.b16 %v3094
    %v3263 = vunpack.c.l.b16 %v3095
    %v3264 = vunpack.c.h.b16 %v3095
    %v3265 = vunpack.c.l.b16 %v3096
    %v3266 = vunpack.c.h.b16 %v3096
    %v3267 = vunpack.c.l.b16 %v3097
    %v3268 = vunpack.c.h.b16 %v3097
    %v3269 = vunpack.c.l.b16 %v3098
    %v3270 = vunpack.c.h.b16 %v3098
    %v3271 = vunpack.c.l.b16 %v3099
    %v3272 = vunpack.c.h.b16 %v3099
    %v3273 = vunpack.c.l.b16 %v3100
    %v3274 = vunpack.c.h.b16 %v3100
    %v3275 = vunpack.c.l.b16 %v3101
    %v3276 = vunpack.c.h.b16 %v3101
    %v3277 = vunpack.c.l.b16 %v3102
    %v3278 = vunpack.c.h.b16 %v3102
    %v3279 = vunpack.c.l.b16 %v3103
    %v3280 = vunpack.c.h.b16 %v3103
    %v3281 = vunpack.c.l.b16 %v3104
    %v3282 = vunpack.c.h.b16 %v3104
    %v3283 = vunpack.c.l.b16 %v3105
    %v3284 = vunpack.c.h.b16 %v3105
    %v3285 = vunpack.c.l.b16 %v3106
    %v3286 = vunpack.c.h.b16 %v3106
    %v3287 = vunpack.c.l.b16 %v3107
    %v3288 = vunpack.c.h.b16 %v3107
    %v3289 = vunpack.c.l.b16 %v3108
    %v3290 = vunpack.c.h.b16 %v3108
    %v3291 = vunpack.c.l.b16 %v3109
    %v3292 = vunpack.c.h.b16 %v3109
    %v3293 = vunpack.c.l.b16 %v3110
    %v3294 = vunpack.c.h.b16 %v3110
    %v3295 = vunpack.c.l.b16 %v3111
    %v3296 = vunpack.c.h.b16 %v3111
    %v3297 = vunpack.c.l.b16 %v3112
    %v3298 = vunpack.c.h.b16 %v3112
    %v3299 = vunpack.c.l.b16 %v3113
    %v3300 = vunpack.c.h.b16 %v3113
    %v3301 = vunpack.c.l.b16 %v3114
    %v3302 = vunpack.c.h.b16 %v3114
    %v3303 = vunpack.c.l.b16 %v3115
    %v3304 = vunpack.c.h.b16 %v3115
    %v3305 = vunpack.c.l.b16 %v3116
    %v3306 = vunpack.c.h.b16 %v3116
    %v3307 = vunpack.c.l.b16 %v3117
    %v3308 = vunpack.c.h.b16 %v3117
    %v3309 = vunpack.c.l.b16 %v3118
    %v3310 = vunpack.c.h.b16 %v3118
    %v3311 = vunpack.c.l.b16 %v3119
    %v3312 = vunpack.c.h.b16 %v3119
    %v3313 = vunpack.c.l.b16 %v3120
    %v3314 = vunpack.c.h.b16 %v3120
    %v3315 = vunpack.c.l.b16 %v3121
    %v3316 = vunpack.c.h.b16 %v3121
    %v3317 = vunpack.c.l.b16 %v3122
    %v3318 = vunpack.c.h.b16 %v3122
    %v3319 = vunpack.c.l.b16 %v3123
    %v3320 = vunpack.c.h.b16 %v3123
    %v3321 = vunpack.c.l.b16 %v3124
    %v3322 = vunpack.c.h.b16 %v3124
    %v3323 = vunpack.c.l.b16 %v3125
    %v3324 = vunpack.c.h.b16 %v3125
    %v3325 = vunpack.c.l.b16 %v3126
    %v3326 = vunpack.c.h.b16 %v3126
    %v3327 = vunpack.c.l.b16 %v3127
    %v3328 = vunpack.c.h.b16 %v3127
    %v3329 = vunpack.c.l.b16 %v3128
    %v3330 = vunpack.c.h.b16 %v3128
    %v3331 = vunpack.c.l.b16 %v3129
    %v3332 = vunpack.c.h.b16 %v3129
    %v3333 = vunpack.c.l.b16 %v3130
    %v3334 = vunpack.c.h.b16 %v3130
    %v3335 = vunpack.c.l.b16 %v3131
    %v3336 = vunpack.c.h.b16 %v3131
    %v3337 = vunpack.c.l.b16 %v3132
    %v3338 = vunpack.c.h.b16 %v3132
    %v3339 = vunpack.c.l.b16 %v3133
    %v3340 = vunpack.c.h.b16 %v3133
    %v3341 = vunpack.c.l.b16 %v3134
    %v3342 = vunpack.c.h.b16 %v3134
    %v3343 = vunpack.c.l.b16 %v3135
    %v3344 = vunpack.c.h.b16 %v3135
    %v3345 = vunpack.c.l.b16 %v3136
    %v3346 = vunpack.c.h.b16 %v3136
    %v3347 = vunpack.c.l.b16 %v3137
    %v3348 = vunpack.c.h.b16 %v3137
    %v3349 = vunpack.c.l.b16 %v3138
    %v3350 = vunpack.c.h.b16 %v3138
    %v3351 = vunpack.c.l.b16 %v3139
    %v3352 = vunpack.c.h.b16 %v3139
    %v3353 = vunpack.c.l.b16 %v3140
    %v3354 = vunpack.c.h.b16 %v3140
    %v3355 = vpack.c.b16 %v3231, %v3227
    %v3356 = vpack.c.b16 %v3232, %v3228
    %v3357 = vpack.c.b16 %v3233, %v3229
    %v3358 = vpack.c.b16 %v3234, %v3230
    %v3359 = vpack.c.b16 %v3239, %v3235
    %v3360 = vpack.c.b16 %v3240, %v3236
    %v3361 = vpack.c.b16 %v3241, %v3237
    %v3362 = vpack.c.b16 %v3242, %v3238
    %v3363 = vpack.c.b16 %v3247, %v3243
    %v3364 = vpack.c.b16 %v3248, %v3244
    %v3365 = vpack.c.b16 %v3249, %v3245
    %v3366 = vpack.c.b16 %v3250, %v3246
    %v3367 = vpack.c.b16 %v3255, %v3251
    %v3368 = vpack.c.b16 %v3256, %v3252
    %v3369 = vpack.c.b16 %v3257, %v3253
    %v3370 = vpack.c.b16 %v3258, %v3254
    %v3371 = vpack.c.b16 %v3263, %v3259
    %v3372 = vpack.c.b16 %v3264, %v3260
    %v3373 = vpack.c.b16 %v3265, %v3261
    %v3374 = vpack.c.b16 %v3266, %v3262
    %v3375 = vpack.c.b16 %v3271, %v3267
    %v3376 = vpack.c.b16 %v3272, %v3268
    %v3377 = vpack.c.b16 %v3273, %v3269
    %v3378 = vpack.c.b16 %v3274, %v3270
    %v3379 = vpack.c.b16 %v3279, %v3275
    %v3380 = vpack.c.b16 %v3280, %v3276
    %v3381 = vpack.c.b16 %v3281, %v3277
    %v3382 = vpack.c.b16 %v3282, %v3278
    %v3383 = vpack.c.b16 %v3287, %v3283
    %v3384 = vpack.c.b16 %v3288, %v3284
    %v3385 = vpack.c.b16 %v3289, %v3285
    %v3386 = vpack.c.b16 %v3290, %v3286
    %v3387 = vpack.c.b16 %v3295, %v3291
    %v3388 = vpack.c.b16 %v3296, %v3292
    %v3389 = vpack.c.b16 %v3297, %v3293
    %v3390 = vpack.c.b16 %v3298, %v3294
    %v3391 = vpack.c.b16 %v3303, %v3299
    %v3392 = vpack.c.b16 %v3304, %v3300
    %v3393 = vpack.c.b16 %v3305, %v3301
    %v3394 = vpack.c.b16 %v3306, %v3302
    %v3395 = vpack.c.b16 %v3311, %v3307
    %v3396 = vpack.c.b16 %v3312, %v3308
    %v3397 = vpack.c.b16 %v3313, %v3309
    %v3398 = vpack.c.b16 %v3314, %v3310
    %v3399 = vpack.c.b16 %v3319, %v3315
    %v3400 = vpack.c.b16 %v3320, %v3316
    %v3401 = vpack.c.b16 %v3321, %v3317
    %v3402 = vpack.c.b16 %v3322, %v3318
    %v3403 = vpack.c.b16 %v3327, %v3323
    %v3404 = vpack.c.b16 %v3328, %v3324
    %v3405 = vpack.c.b16 %v3329, %v3325
    %v3406 = vpack.c.b16 %v3330, %v3326
    %v3407 = vpack.c.b16 %v3335, %v3331
    %v3408 = vpack.c.b16 %v3336, %v3332
    %v3409 = vpack.c.b16 %v3337, %v3333
    %v3410 = vpack.c.b16 %v3338, %v3334
    %v3411 = vpack.c.b16 %v3343, %v3339
    %v3412 = vpack.c.b16 %v3344, %v3340
    %v3413 = vpack.c.b16 %v3345, %v3341
    %v3414 = vpack.c.b16 %v3346, %v3342
    %v3415 = vpack.c.b16 %v3351, %v3347
    %v3416 = vpack.c.b16 %v3352, %v3348
    %v3417 = vpack.c.b16 %v3353, %v3349
    %v3418 = vpack.c.b16 %v3354, %v3350
    %3483 = vmatprep.subr.bf16.mxu0 %v3384
    %3484 = vmatpush1.bf16.msra.mxu0 %v3383
    %3485 = vmatprep.subr.bf16.mxu0 %v3380
    %3486 = vmatpush1.bf16.msra.mxu0 %v3379
    %3487 = vmatprep.subr.bf16.mxu0 %v3376
    %3488 = vmatpush1.bf16.msra.mxu0 %v3375
    %3489 = vmatprep.subr.bf16.mxu0 %v3372
    %3490 = vmatpush1.bf16.msra.mxu0 %v3371
    %3491 = vmatprep.subr.bf16.mxu0 %v3368
    %3492 = vmatpush1.bf16.msra.mxu0 %v3367
    %3493 = vmatprep.subr.bf16.mxu0 %v3364
    %3494 = vmatpush1.bf16.msra.mxu0 %v3363
    %3495 = vmatprep.subr.bf16.mxu0 %v3360
    %3496 = vmatpush1.bf16.msra.mxu0 %v3359
    %3497 = vmatprep.subr.bf16.mxu0 %v3356
    %3498 = vmatpush1.bf16.msra.mxu0 %v3355
    %3499 = vmatprep.subr.bf16.mxu0 %v3416
    %3500 = vmatpush2.bf16.msra.mxu0 %v3415
    %3501 = vmatprep.subr.bf16.mxu0 %v3412
    %3502 = vmatpush2.bf16.msra.mxu0 %v3411
    %3503 = vmatprep.subr.bf16.mxu0 %v3408
    %3504 = vmatpush2.bf16.msra.mxu0 %v3407
    %3505 = vmatprep.subr.bf16.mxu0 %v3404
    %3506 = vmatpush2.bf16.msra.mxu0 %v3403
    %3507 = vmatprep.subr.bf16.mxu0 %v3400
    %3508 = vmatpush2.bf16.msra.mxu0 %v3399
    %3509 = vmatprep.subr.bf16.mxu0 %v3396
    %3510 = vmatpush2.bf16.msra.mxu0 %v3395
    %3511 = vmatprep.subr.bf16.mxu0 %v3392
    %3512 = vmatpush2.bf16.msra.mxu0 %v3391
    %3513 = vmatprep.subr.bf16.mxu0 %v3388
    %3514 = vmatpush2.bf16.msra.mxu0 %v3387
    %3515 = vmatprep.mubr.bf16.mxu0 %v2938
    %3516 = vmatmul.mubr.bf16.gmra.mxu0 %v3076
    %v3517 = vpop.f32.mrf.mxu0
    %v3518 = vadd.f32 %v3146, %v3517
    %v3519 = vpop.f32.mrf.mxu0
    %v3520 = vadd.f32 %v3150, %v3519
    %v3521 = vpop.f32.mrf.mxu0
    %v3522 = vadd.f32 %v3146, %v3521
    %v3523 = vpop.f32.mrf.mxu0
    %v3524 = vadd.f32 %v3150, %v3523
    %3525 = vdwg.mxu0
    %3526 = vmatprep.subr.bf16.mxu0 %v3386
    %3527 = vmatpush1.bf16.msra.mxu0 %v3385
    %3528 = vmatprep.subr.bf16.mxu0 %v3382
    %3529 = vmatpush1.bf16.msra.mxu0 %v3381
    %3530 = vmatprep.subr.bf16.mxu0 %v3378
    %3531 = vmatpush1.bf16.msra.mxu0 %v3377
    %3532 = vmatprep.subr.bf16.mxu0 %v3374
    %3533 = vmatpush1.bf16.msra.mxu0 %v3373
    %3534 = vmatprep.subr.bf16.mxu0 %v3370
    %3535 = vmatpush1.bf16.msra.mxu0 %v3369
    %3536 = vmatprep.subr.bf16.mxu0 %v3366
    %3537 = vmatpush1.bf16.msra.mxu0 %v3365
    %3538 = vmatprep.subr.bf16.mxu0 %v3362
    %3539 = vmatpush1.bf16.msra.mxu0 %v3361
    %3540 = vmatprep.subr.bf16.mxu0 %v3358
    %3541 = vmatpush1.bf16.msra.mxu0 %v3357
    %3542 = vmatprep.subr.bf16.mxu0 %v3418
    %3543 = vmatpush2.bf16.msra.mxu0 %v3417
    %3544 = vmatprep.subr.bf16.mxu0 %v3414
    %3545 = vmatpush2.bf16.msra.mxu0 %v3413
    %3546 = vmatprep.subr.bf16.mxu0 %v3410
    %3547 = vmatpush2.bf16.msra.mxu0 %v3409
    %3548 = vmatprep.subr.bf16.mxu0 %v3406
    %3549 = vmatpush2.bf16.msra.mxu0 %v3405
    %3550 = vmatprep.subr.bf16.mxu0 %v3402
    %3551 = vmatpush2.bf16.msra.mxu0 %v3401
    %3552 = vmatprep.subr.bf16.mxu0 %v3398
    %3553 = vmatpush2.bf16.msra.mxu0 %v3397
    %3554 = vmatprep.subr.bf16.mxu0 %v3394
    %3555 = vmatpush2.bf16.msra.mxu0 %v3393
    %3556 = vmatprep.subr.bf16.mxu0 %v3390
    %3557 = vmatpush2.bf16.msra.mxu0 %v3389
    %3558 = vmatprep.mubr.bf16.mxu0 %v2938
    %3559 = vmatmul.mubr.bf16.gmra.mxu0 %v3076
    %v3560 = vpop.f32.mrf.mxu0
    %v3561 = vadd.f32 %v3154, %v3560
    %v3562 = vpop.f32.mrf.mxu0
    %v3563 = vadd.f32 %v3158, %v3562
    %v3564 = vpop.f32.mrf.mxu0
    %v3565 = vadd.f32 %v3154, %v3564
    %v3566 = vpop.f32.mrf.mxu0
    %v3567 = vadd.f32 %v3158, %v3566
    %3568 = vdwg.mxu0
    %v3569 = vsub.f32 0.0, %v3518
    %v3570 = vsub.f32 0.0, %v3522
    %v3571 = vmul.f32 %v3569, 1.442695
    %v3572 = vpow.pop %v3571
    %v3573 = vmul.f32 %v3570, 1.442695
    %v3574 = vpow.pop %v3573
    %v3575 = vadd.f32 %v3572, 1.0
    %v3576 = vadd.f32 %v3574, 1.0
    %v3577 = vrcp.pop %v3575
    %v3578 = vmul.f32 1.0, %v3577
    %v3579 = vrcp.pop %v3576
    %v3580 = vmul.f32 1.0, %v3579
    %v3581 = vsub.f32 0.0, %v3520
    %v3582 = vsub.f32 0.0, %v3524
    %v3583 = vmul.f32 %v3581, 1.442695
    %v3584 = vpow.pop %v3583
    %v3585 = vmul.f32 %v3582, 1.442695
    %v3586 = vpow.pop %v3585
    %v3587 = vadd.f32 %v3584, 1.0
    %v3588 = vadd.f32 %v3586, 1.0
    %v3589 = vrcp.pop %v3587
    %v3590 = vmul.f32 1.0, %v3589
    %v3591 = vrcp.pop %v3588
    %v3592 = vmul.f32 1.0, %v3591
    %v3593 = vtanh.pop %v3561
    %v3594 = vtanh.pop %v3565
    %v3595 = vsub.f32 0.0, %v3563
    %v3596 = vsub.f32 0.0, %v3567
    %v3597 = vmul.f32 %v3595, 1.442695
    %v3598 = vpow.pop %v3597
    %v3599 = vmul.f32 %v3596, 1.442695
    %v3600 = vpow.pop %v3599
    %v3601 = vadd.f32 %v3598, 1.0
    %v3602 = vadd.f32 %v3600, 1.0
    %v3603 = vrcp.pop %v3601
    %v3604 = vmul.f32 1.0, %v3603
    %v3605 = vrcp.pop %v3602
    %v3606 = vmul.f32 1.0, %v3605
    %v3607 = vmul.f32 %v3590, %v2932
    %v3608 = vmul.f32 %v3592, %v2933
    %v3609 = vmul.f32 %v3578, %v3593
    %v3610 = vmul.f32 %v3580, %v3594
    %v3611 = vadd.f32 %v3607, %v3609
    %v3612 = vadd.f32 %v3608, %v3610
    %v3613 = vtanh.pop %v3611
    %v3614 = vtanh.pop %v3612
    %v3615 = vmul.f32 %v3604, %v3613
    %v3616 = vmul.f32 %v3606, %v3614
    %v3617 = vpack.c.bf16 %v3616, %v3615
    %v3618 = vld [vmem:[#allocation13] sm:$0xf]
    %v3619 = vld [vmem:[#allocation13 + $0x4] sm:$0xf]
    %v3620 = vld [vmem:[#allocation13 + $0x8] sm:$0xf]
    %v3621 = vld [vmem:[#allocation13 + $0xc] sm:$0xf]
    %v3622 = vld [vmem:[#allocation13 + $0x10] sm:$0xf]
    %v3623 = vld [vmem:[#allocation13 + $0x14] sm:$0xf]
    %v3624 = vld [vmem:[#allocation13 + $0x18] sm:$0xf]
    %v3625 = vld [vmem:[#allocation13 + $0x1c] sm:$0xf]
    %v3626 = vld [vmem:[#allocation13 + $0x20] sm:$0xf]
    %v3627 = vld [vmem:[#allocation13 + $0x24] sm:$0xf]
    %v3628 = vld [vmem:[#allocation13 + $0x28] sm:$0xf]
    %v3629 = vld [vmem:[#allocation13 + $0x2c] sm:$0xf]
    %v3630 = vld [vmem:[#allocation13 + $0x30] sm:$0xf]
    %v3631 = vld [vmem:[#allocation13 + $0x34] sm:$0xf]
    %v3632 = vld [vmem:[#allocation13 + $0x38] sm:$0xf]
    %v3633 = vld [vmem:[#allocation13 + $0x3c] sm:$0xf]
    %v3634 = vld [vmem:[%s10] sm:$0x1]
    %v3636 = vlaneseq
    %v3637 = vshrl.u32 %v3636, 7
    %v3638 = vsub.s32 0, %v3637
    %v3639 = vrot.slane %v3634, %v3638
    %v3657 = vunpack.c.l.b16 %v3618
    %v3658 = vunpack.c.l.b16 %v3619
    %v3659 = vunpack.c.l.b16 %v3620
    %v3660 = vunpack.c.l.b16 %v3621
    %v3661 = vunpack.c.l.b16 %v3622
    %v3662 = vunpack.c.l.b16 %v3623
    %v3663 = vunpack.c.l.b16 %v3624
    %v3664 = vunpack.c.l.b16 %v3625
    %v3665 = vunpack.c.l.b16 %v3626
    %v3666 = vunpack.c.l.b16 %v3627
    %v3667 = vunpack.c.l.b16 %v3628
    %v3668 = vunpack.c.l.b16 %v3629
    %v3669 = vunpack.c.l.b16 %v3630
    %v3670 = vunpack.c.l.b16 %v3631
    %v3671 = vunpack.c.l.b16 %v3632
    %v3672 = vunpack.c.l.b16 %v3633
    %v3673 = vpack.c.b16 %v3658, %v3657
    %v3674 = vpack.c.b16 %v3660, %v3659
    %v3675 = vpack.c.b16 %v3662, %v3661
    %v3676 = vpack.c.b16 %v3664, %v3663
    %v3677 = vpack.c.b16 %v3666, %v3665
    %v3678 = vpack.c.b16 %v3668, %v3667
    %v3679 = vpack.c.b16 %v3670, %v3669
    %v3680 = vpack.c.b16 %v3672, %v3671
    %3689 = vmatprep.subr.bf16.mxu0 0
    %3690 = vmatpush1.bf16.msra.mxu0 %v3680
    %3691 = vmatprep.subr.bf16.mxu0 0
    %3692 = vmatpush1.bf16.msra.mxu0 %v3679
    %3693 = vmatprep.subr.bf16.mxu0 0
    %3694 = vmatpush1.bf16.msra.mxu0 %v3678
    %3695 = vmatprep.subr.bf16.mxu0 0
    %3696 = vmatpush1.bf16.msra.mxu0 %v3677
    %3697 = vmatprep.subr.bf16.mxu0 0
    %3698 = vmatpush1.bf16.msra.mxu0 %v3676
    %3699 = vmatprep.subr.bf16.mxu0 0
    %3700 = vmatpush1.bf16.msra.mxu0 %v3675
    %3701 = vmatprep.subr.bf16.mxu0 0
    %3702 = vmatpush1.bf16.msra.mxu0 %v3674
    %3703 = vmatprep.subr.bf16.mxu0 0
    %3704 = vmatpush1.bf16.msra.mxu0 %v3673
    %3705 = vmatprep.subr.bf16.mxu0 0
    %3706 = vmatpush2.bf16.msra.mxu0 0
    %3707 = vmatprep.subr.bf16.mxu0 0
    %3708 = vmatpush2.bf16.msra.mxu0 0
    %3709 = vmatprep.subr.bf16.mxu0 0
    %3710 = vmatpush2.bf16.msra.mxu0 0
    %3711 = vmatprep.subr.bf16.mxu0 0
    %3712 = vmatpush2.bf16.msra.mxu0 0
    %3713 = vmatprep.subr.bf16.mxu0 0
    %3714 = vmatpush2.bf16.msra.mxu0 0
    %3715 = vmatprep.subr.bf16.mxu0 0
    %3716 = vmatpush2.bf16.msra.mxu0 0
    %3717 = vmatprep.subr.bf16.mxu0 0
    %3718 = vmatpush2.bf16.msra.mxu0 0
    %3719 = vmatprep.subr.bf16.mxu0 0
    %3720 = vmatpush2.bf16.msra.mxu0 0
    %3721 = vmatprep.mubr.bf16.mxu0 0
    %3722 = vmatmul.mubr.bf16.gmra.mxu0 %v3617
    %v3723 = vpop.f32.mrf.mxu0
    %v3724 = vadd.f32 %v3639, %v3723
    %v3725 = vpop.f32.mrf.mxu0
    %v3726 = vpop.f32.mrf.mxu0
    %v3727 = vadd.f32 %v3639, %v3726
    %v3728 = vpop.f32.mrf.mxu0
    %3729 = vdwg.mxu0
    %3730 = vst [vmem:[#allocation14 + $0x18] sm:$0xff] %v3724
    %3731 = vst [vmem:[#allocation14 + $0x50] sm:$0xff] %v3727
    %3732 = vmax.xlane.f32.xlu0 %v3724
    %v3733 = vpop.xlane.xlu0 %3732
    %3734 = vmax.xlane.f32.xlu0 %v3727
    %v3735 = vpop.xlane.xlu0 %3734
    %vm3736 = vcmp.eq.f32.partialorder %v3724, %v3733
    %vm3737 = vcmp.eq.f32.partialorder %v3727, %v3735
    %v3738 = vsel %vm3736, %v1056, 128.0
    %v3739 = vsel %vm3737, %v1056, 128.0
    %3740 = vmin.xlane.f32.xlu0 %v3738
    %v3741 = vpop.xlane.xlu0 %3740
    %3742 = vmin.xlane.f32.xlu0 %v3739
    %v3743 = vpop.xlane.xlu0 %3742
    %v3744 = vcvt.f32.s32.to.zero.pseudo %v3741
    %v3745 = vcvt.f32.s32.to.zero.pseudo %v3743
    %vm3746 = vcmask 31768
    %3747 = vst.msk [vmem:[%s12] sm:$0xff] %vm3746, %v3744
    %3748 = vst.msk [vmem:[%s12 + $0x8] sm:$0xff] %vm3746, %v3745
    %vm3749 = vcmp.eq.s32.totalorder %v1055, %v3744
    %vm3750 = vcmp.eq.s32.totalorder %v1055, %v3745
    %v3751 = vsel %vm3749, 1, 0
    %v3752 = vsel %vm3750, 1, 0
    %v3753 = vcvt.s32.f32 %v3751
    %v3754 = vcvt.s32.f32 %v3752
    %v3755 = vpack.c.bf16 %v3754, %v3753
    %v3756 = vld [vmem:[#allocation11] sm:$0xff]
    %v3757 = vld [vmem:[#allocation11 + $0x8] sm:$0xff]
    %v3758 = vld [vmem:[#allocation11 + $0x10] sm:$0xff]
    %v3759 = vld [vmem:[#allocation11 + $0x18] sm:$0xff]
    %v3760 = vld [vmem:[#allocation11 + $0x20] sm:$0xff]
    %v3761 = vld [vmem:[#allocation11 + $0x28] sm:$0xff]
    %v3762 = vld [vmem:[#allocation11 + $0x30] sm:$0xff]
    %v3763 = vld [vmem:[#allocation11 + $0x38] sm:$0xff]
    %v3764 = vld [vmem:[#allocation11 + $0x40] sm:$0xff]
    %v3765 = vld [vmem:[#allocation11 + $0x48] sm:$0xff]
    %v3766 = vld [vmem:[#allocation11 + $0x50] sm:$0xff]
    %v3767 = vld [vmem:[#allocation11 + $0x58] sm:$0xff]
    %v3768 = vld [vmem:[#allocation11 + $0x60] sm:$0xff]
    %v3769 = vld [vmem:[#allocation11 + $0x68] sm:$0xff]
    %v3770 = vld [vmem:[#allocation11 + $0x70] sm:$0xff]
    %v3771 = vld [vmem:[#allocation11 + $0x78] sm:$0xff]
    %v3772 = vld [vmem:[#allocation11 + $0x80] sm:$0xff]
    %v3773 = vld [vmem:[#allocation11 + $0x88] sm:$0xff]
    %v3774 = vld [vmem:[#allocation11 + $0x90] sm:$0xff]
    %v3775 = vld [vmem:[#allocation11 + $0x98] sm:$0xff]
    %v3776 = vld [vmem:[#allocation11 + $0xa0] sm:$0xff]
    %v3777 = vld [vmem:[#allocation11 + $0xa8] sm:$0xff]
    %v3778 = vld [vmem:[#allocation11 + $0xb0] sm:$0xff]
    %v3779 = vld [vmem:[#allocation11 + $0xb8] sm:$0xff]
    %v3780 = vld [vmem:[#allocation11 + $0xc0] sm:$0xff]
    %v3781 = vld [vmem:[#allocation11 + $0xc8] sm:$0xff]
    %v3782 = vld [vmem:[#allocation11 + $0xd0] sm:$0xff]
    %v3783 = vld [vmem:[#allocation11 + $0xd8] sm:$0xff]
    %v3784 = vld [vmem:[#allocation11 + $0xe0] sm:$0xff]
    %v3785 = vld [vmem:[#allocation11 + $0xe8] sm:$0xff]
    %v3786 = vld [vmem:[#allocation11 + $0xf0] sm:$0xff]
    %v3787 = vld [vmem:[#allocation11 + $0xf8] sm:$0xff]
    %v3788 = vld [vmem:[#allocation11 + $0x100] sm:$0xff]
    %v3789 = vld [vmem:[#allocation11 + $0x108] sm:$0xff]
    %v3790 = vld [vmem:[#allocation11 + $0x110] sm:$0xff]
    %v3791 = vld [vmem:[#allocation11 + $0x118] sm:$0xff]
    %v3792 = vld [vmem:[#allocation11 + $0x120] sm:$0xff]
    %v3793 = vld [vmem:[#allocation11 + $0x128] sm:$0xff]
    %v3794 = vld [vmem:[#allocation11 + $0x130] sm:$0xff]
    %v3795 = vld [vmem:[#allocation11 + $0x138] sm:$0xff]
    %v3796 = vld [vmem:[#allocation11 + $0x140] sm:$0xff]
    %v3797 = vld [vmem:[#allocation11 + $0x148] sm:$0xff]
    %v3798 = vld [vmem:[#allocation11 + $0x150] sm:$0xff]
    %v3799 = vld [vmem:[#allocation11 + $0x158] sm:$0xff]
    %v3800 = vld [vmem:[#allocation11 + $0x160] sm:$0xff]
    %v3801 = vld [vmem:[#allocation11 + $0x168] sm:$0xff]
    %v3802 = vld [vmem:[#allocation11 + $0x170] sm:$0xff]
    %v3803 = vld [vmem:[#allocation11 + $0x178] sm:$0xff]
    %v3804 = vld [vmem:[#allocation11 + $0x180] sm:$0xff]
    %v3805 = vld [vmem:[#allocation11 + $0x188] sm:$0xff]
    %v3806 = vld [vmem:[#allocation11 + $0x190] sm:$0xff]
    %v3807 = vld [vmem:[#allocation11 + $0x198] sm:$0xff]
    %v3808 = vld [vmem:[#allocation11 + $0x1a0] sm:$0xff]
    %v3809 = vld [vmem:[#allocation11 + $0x1a8] sm:$0xff]
    %v3810 = vld [vmem:[#allocation11 + $0x1b0] sm:$0xff]
    %v3811 = vld [vmem:[#allocation11 + $0x1b8] sm:$0xff]
    %v3812 = vld [vmem:[#allocation11 + $0x1c0] sm:$0xff]
    %v3813 = vld [vmem:[#allocation11 + $0x1c8] sm:$0xff]
    %v3814 = vld [vmem:[#allocation11 + $0x1d0] sm:$0xff]
    %v3815 = vld [vmem:[#allocation11 + $0x1d8] sm:$0xff]
    %v3816 = vld [vmem:[#allocation11 + $0x1e0] sm:$0xff]
    %v3817 = vld [vmem:[#allocation11 + $0x1e8] sm:$0xff]
    %v3818 = vld [vmem:[#allocation11 + $0x1f0] sm:$0xff]
    %v3819 = vld [vmem:[#allocation11 + $0x1f8] sm:$0xff]
    %v3820 = vld [vmem:[%s8] sm:$0xf]
    %v3822 = vlaneseq
    %v3823 = vshrl.u32 %v3822, 7
    %v3824 = vsub.s32 0, %v3823
    %v3825 = vrot.slane %v3820, %v3824
    %v3826 = vlaneseq
    %v3827 = vshrl.u32 %v3826, 7
    %v3828 = vsub.s32 1, %v3827
    %v3829 = vrot.slane %v3820, %v3828
    %v3830 = vlaneseq
    %v3831 = vshrl.u32 %v3830, 7
    %v3832 = vsub.s32 2, %v3831
    %v3833 = vrot.slane %v3820, %v3832
    %v3834 = vlaneseq
    %v3835 = vshrl.u32 %v3834, 7
    %v3836 = vsub.s32 3, %v3835
    %v3837 = vrot.slane %v3820, %v3836
    %v3906 = vunpack.c.l.b16 %v3756
    %v3907 = vunpack.c.h.b16 %v3756
    %v3908 = vunpack.c.l.b16 %v3757
    %v3909 = vunpack.c.h.b16 %v3757
    %v3910 = vunpack.c.l.b16 %v3758
    %v3911 = vunpack.c.h.b16 %v3758
    %v3912 = vunpack.c.l.b16 %v3759
    %v3913 = vunpack.c.h.b16 %v3759
    %v3914 = vunpack.c.l.b16 %v3760
    %v3915 = vunpack.c.h.b16 %v3760
    %v3916 = vunpack.c.l.b16 %v3761
    %v3917 = vunpack.c.h.b16 %v3761
    %v3918 = vunpack.c.l.b16 %v3762
    %v3919 = vunpack.c.h.b16 %v3762
    %v3920 = vunpack.c.l.b16 %v3763
    %v3921 = vunpack.c.h.b16 %v3763
    %v3922 = vunpack.c.l.b16 %v3764
    %v3923 = vunpack.c.h.b16 %v3764
    %v3924 = vunpack.c.l.b16 %v3765
    %v3925 = vunpack.c.h.b16 %v3765
    %v3926 = vunpack.c.l.b16 %v3766
    %v3927 = vunpack.c.h.b16 %v3766
    %v3928 = vunpack.c.l.b16 %v3767
    %v3929 = vunpack.c.h.b16 %v3767
    %v3930 = vunpack.c.l.b16 %v3768
    %v3931 = vunpack.c.h.b16 %v3768
    %v3932 = vunpack.c.l.b16 %v3769
    %v3933 = vunpack.c.h.b16 %v3769
    %v3934 = vunpack.c.l.b16 %v3770
    %v3935 = vunpack.c.h.b16 %v3770
    %v3936 = vunpack.c.l.b16 %v3771
    %v3937 = vunpack.c.h.b16 %v3771
    %v3938 = vunpack.c.l.b16 %v3772
    %v3939 = vunpack.c.h.b16 %v3772
    %v3940 = vunpack.c.l.b16 %v3773
    %v3941 = vunpack.c.h.b16 %v3773
    %v3942 = vunpack.c.l.b16 %v3774
    %v3943 = vunpack.c.h.b16 %v3774
    %v3944 = vunpack.c.l.b16 %v3775
    %v3945 = vunpack.c.h.b16 %v3775
    %v3946 = vunpack.c.l.b16 %v3776
    %v3947 = vunpack.c.h.b16 %v3776
    %v3948 = vunpack.c.l.b16 %v3777
    %v3949 = vunpack.c.h.b16 %v3777
    %v3950 = vunpack.c.l.b16 %v3778
    %v3951 = vunpack.c.h.b16 %v3778
    %v3952 = vunpack.c.l.b16 %v3779
    %v3953 = vunpack.c.h.b16 %v3779
    %v3954 = vunpack.c.l.b16 %v3780
    %v3955 = vunpack.c.h.b16 %v3780
    %v3956 = vunpack.c.l.b16 %v3781
    %v3957 = vunpack.c.h.b16 %v3781
    %v3958 = vunpack.c.l.b16 %v3782
    %v3959 = vunpack.c.h.b16 %v3782
    %v3960 = vunpack.c.l.b16 %v3783
    %v3961 = vunpack.c.h.b16 %v3783
    %v3962 = vunpack.c.l.b16 %v3784
    %v3963 = vunpack.c.h.b16 %v3784
    %v3964 = vunpack.c.l.b16 %v3785
    %v3965 = vunpack.c.h.b16 %v3785
    %v3966 = vunpack.c.l.b16 %v3786
    %v3967 = vunpack.c.h.b16 %v3786
    %v3968 = vunpack.c.l.b16 %v3787
    %v3969 = vunpack.c.h.b16 %v3787
    %v3970 = vunpack.c.l.b16 %v3788
    %v3971 = vunpack.c.h.b16 %v3788
    %v3972 = vunpack.c.l.b16 %v3789
    %v3973 = vunpack.c.h.b16 %v3789
    %v3974 = vunpack.c.l.b16 %v3790
    %v3975 = vunpack.c.h.b16 %v3790
    %v3976 = vunpack.c.l.b16 %v3791
    %v3977 = vunpack.c.h.b16 %v3791
    %v3978 = vunpack.c.l.b16 %v3792
    %v3979 = vunpack.c.h.b16 %v3792
    %v3980 = vunpack.c.l.b16 %v3793
    %v3981 = vunpack.c.h.b16 %v3793
    %v3982 = vunpack.c.l.b16 %v3794
    %v3983 = vunpack.c.h.b16 %v3794
    %v3984 = vunpack.c.l.b16 %v3795
    %v3985 = vunpack.c.h.b16 %v3795
    %v3986 = vunpack.c.l.b16 %v3796
    %v3987 = vunpack.c.h.b16 %v3796
    %v3988 = vunpack.c.l.b16 %v3797
    %v3989 = vunpack.c.h.b16 %v3797
    %v3990 = vunpack.c.l.b16 %v3798
    %v3991 = vunpack.c.h.b16 %v3798
    %v3992 = vunpack.c.l.b16 %v3799
    %v3993 = vunpack.c.h.b16 %v3799
    %v3994 = vunpack.c.l.b16 %v3800
    %v3995 = vunpack.c.h.b16 %v3800
    %v3996 = vunpack.c.l.b16 %v3801
    %v3997 = vunpack.c.h.b16 %v3801
    %v3998 = vunpack.c.l.b16 %v3802
    %v3999 = vunpack.c.h.b16 %v3802
    %v4000 = vunpack.c.l.b16 %v3803
    %v4001 = vunpack.c.h.b16 %v3803
    %v4002 = vunpack.c.l.b16 %v3804
    %v4003 = vunpack.c.h.b16 %v3804
    %v4004 = vunpack.c.l.b16 %v3805
    %v4005 = vunpack.c.h.b16 %v3805
    %v4006 = vunpack.c.l.b16 %v3806
    %v4007 = vunpack.c.h.b16 %v3806
    %v4008 = vunpack.c.l.b16 %v3807
    %v4009 = vunpack.c.h.b16 %v3807
    %v4010 = vunpack.c.l.b16 %v3808
    %v4011 = vunpack.c.h.b16 %v3808
    %v4012 = vunpack.c.l.b16 %v3809
    %v4013 = vunpack.c.h.b16 %v3809
    %v4014 = vunpack.c.l.b16 %v3810
    %v4015 = vunpack.c.h.b16 %v3810
    %v4016 = vunpack.c.l.b16 %v3811
    %v4017 = vunpack.c.h.b16 %v3811
    %v4018 = vunpack.c.l.b16 %v3812
    %v4019 = vunpack.c.h.b16 %v3812
    %v4020 = vunpack.c.l.b16 %v3813
    %v4021 = vunpack.c.h.b16 %v3813
    %v4022 = vunpack.c.l.b16 %v3814
    %v4023 = vunpack.c.h.b16 %v3814
    %v4024 = vunpack.c.l.b16 %v3815
    %v4025 = vunpack.c.h.b16 %v3815
    %v4026 = vunpack.c.l.b16 %v3816
    %v4027 = vunpack.c.h.b16 %v3816
    %v4028 = vunpack.c.l.b16 %v3817
    %v4029 = vunpack.c.h.b16 %v3817
    %v4030 = vunpack.c.l.b16 %v3818
    %v4031 = vunpack.c.h.b16 %v3818
    %v4032 = vunpack.c.l.b16 %v3819
    %v4033 = vunpack.c.h.b16 %v3819
    %v4034 = vpack.c.b16 %v3910, %v3906
    %v4035 = vpack.c.b16 %v3911, %v3907
    %v4036 = vpack.c.b16 %v3912, %v3908
    %v4037 = vpack.c.b16 %v3913, %v3909
    %v4038 = vpack.c.b16 %v3918, %v3914
    %v4039 = vpack.c.b16 %v3919, %v3915
    %v4040 = vpack.c.b16 %v3920, %v3916
    %v4041 = vpack.c.b16 %v3921, %v3917
    %v4042 = vpack.c.b16 %v3926, %v3922
    %v4043 = vpack.c.b16 %v3927, %v3923
    %v4044 = vpack.c.b16 %v3928, %v3924
    %v4045 = vpack.c.b16 %v3929, %v3925
    %v4046 = vpack.c.b16 %v3934, %v3930
    %v4047 = vpack.c.b16 %v3935, %v3931
    %v4048 = vpack.c.b16 %v3936, %v3932
    %v4049 = vpack.c.b16 %v3937, %v3933
    %v4050 = vpack.c.b16 %v3942, %v3938
    %v4051 = vpack.c.b16 %v3943, %v3939
    %v4052 = vpack.c.b16 %v3944, %v3940
    %v4053 = vpack.c.b16 %v3945, %v3941
    %v4054 = vpack.c.b16 %v3950, %v3946
    %v4055 = vpack.c.b16 %v3951, %v3947
    %v4056 = vpack.c.b16 %v3952, %v3948
    %v4057 = vpack.c.b16 %v3953, %v3949
    %v4058 = vpack.c.b16 %v3958, %v3954
    %v4059 = vpack.c.b16 %v3959, %v3955
    %v4060 = vpack.c.b16 %v3960, %v3956
    %v4061 = vpack.c.b16 %v3961, %v3957
    %v4062 = vpack.c.b16 %v3966, %v3962
    %v4063 = vpack.c.b16 %v3967, %v3963
    %v4064 = vpack.c.b16 %v3968, %v3964
    %v4065 = vpack.c.b16 %v3969, %v3965
    %v4066 = vpack.c.b16 %v3974, %v3970
    %v4067 = vpack.c.b16 %v3975, %v3971
    %v4068 = vpack.c.b16 %v3976, %v3972
    %v4069 = vpack.c.b16 %v3977, %v3973
    %v4070 = vpack.c.b16 %v3982, %v3978
    %v4071 = vpack.c.b16 %v3983, %v3979
    %v4072 = vpack.c.b16 %v3984, %v3980
    %v4073 = vpack.c.b16 %v3985, %v3981
    %v4074 = vpack.c.b16 %v3990, %v3986
    %v4075 = vpack.c.b16 %v3991, %v3987
    %v4076 = vpack.c.b16 %v3992, %v3988
    %v4077 = vpack.c.b16 %v3993, %v3989
    %v4078 = vpack.c.b16 %v3998, %v3994
    %v4079 = vpack.c.b16 %v3999, %v3995
    %v4080 = vpack.c.b16 %v4000, %v3996
    %v4081 = vpack.c.b16 %v4001, %v3997
    %v4082 = vpack.c.b16 %v4006, %v4002
    %v4083 = vpack.c.b16 %v4007, %v4003
    %v4084 = vpack.c.b16 %v4008, %v4004
    %v4085 = vpack.c.b16 %v4009, %v4005
    %v4086 = vpack.c.b16 %v4014, %v4010
    %v4087 = vpack.c.b16 %v4015, %v4011
    %v4088 = vpack.c.b16 %v4016, %v4012
    %v4089 = vpack.c.b16 %v4017, %v4013
    %v4090 = vpack.c.b16 %v4022, %v4018
    %v4091 = vpack.c.b16 %v4023, %v4019
    %v4092 = vpack.c.b16 %v4024, %v4020
    %v4093 = vpack.c.b16 %v4025, %v4021
    %v4094 = vpack.c.b16 %v4030, %v4026
    %v4095 = vpack.c.b16 %v4031, %v4027
    %v4096 = vpack.c.b16 %v4032, %v4028
    %v4097 = vpack.c.b16 %v4033, %v4029
    %4162 = vmatprep.subr.bf16.mxu0 %v4063
    %4163 = vmatpush1.bf16.msra.mxu0 %v4062
    %4164 = vmatprep.subr.bf16.mxu0 %v4059
    %4165 = vmatpush1.bf16.msra.mxu0 %v4058
    %4166 = vmatprep.subr.bf16.mxu0 %v4055
    %4167 = vmatpush1.bf16.msra.mxu0 %v4054
    %4168 = vmatprep.subr.bf16.mxu0 %v4051
    %4169 = vmatpush1.bf16.msra.mxu0 %v4050
    %4170 = vmatprep.subr.bf16.mxu0 %v4047
    %4171 = vmatpush1.bf16.msra.mxu0 %v4046
    %4172 = vmatprep.subr.bf16.mxu0 %v4043
    %4173 = vmatpush1.bf16.msra.mxu0 %v4042
    %4174 = vmatprep.subr.bf16.mxu0 %v4039
    %4175 = vmatpush1.bf16.msra.mxu0 %v4038
    %4176 = vmatprep.subr.bf16.mxu0 %v4035
    %4177 = vmatpush1.bf16.msra.mxu0 %v4034
    %4178 = vmatprep.subr.bf16.mxu0 %v4095
    %4179 = vmatpush2.bf16.msra.mxu0 %v4094
    %4180 = vmatprep.subr.bf16.mxu0 %v4091
    %4181 = vmatpush2.bf16.msra.mxu0 %v4090
    %4182 = vmatprep.subr.bf16.mxu0 %v4087
    %4183 = vmatpush2.bf16.msra.mxu0 %v4086
    %4184 = vmatprep.subr.bf16.mxu0 %v4083
    %4185 = vmatpush2.bf16.msra.mxu0 %v4082
    %4186 = vmatprep.subr.bf16.mxu0 %v4079
    %4187 = vmatpush2.bf16.msra.mxu0 %v4078
    %4188 = vmatprep.subr.bf16.mxu0 %v4075
    %4189 = vmatpush2.bf16.msra.mxu0 %v4074
    %4190 = vmatprep.subr.bf16.mxu0 %v4071
    %4191 = vmatpush2.bf16.msra.mxu0 %v4070
    %4192 = vmatprep.subr.bf16.mxu0 %v4067
    %4193 = vmatpush2.bf16.msra.mxu0 %v4066
    %4194 = vmatprep.mubr.bf16.mxu0 %v3617
    %4195 = vmatmul.mubr.bf16.gmra.mxu0 %v3755
    %v4196 = vpop.f32.mrf.mxu0
    %v4197 = vadd.f32 %v3825, %v4196
    %v4198 = vpop.f32.mrf.mxu0
    %v4199 = vadd.f32 %v3829, %v4198
    %v4200 = vpop.f32.mrf.mxu0
    %v4201 = vadd.f32 %v3825, %v4200
    %v4202 = vpop.f32.mrf.mxu0
    %v4203 = vadd.f32 %v3829, %v4202
    %4204 = vdwg.mxu0
    %4205 = vmatprep.subr.bf16.mxu0 %v4065
    %4206 = vmatpush1.bf16.msra.mxu0 %v4064
    %4207 = vmatprep.subr.bf16.mxu0 %v4061
    %4208 = vmatpush1.bf16.msra.mxu0 %v4060
    %4209 = vmatprep.subr.bf16.mxu0 %v4057
    %4210 = vmatpush1.bf16.msra.mxu0 %v4056
    %4211 = vmatprep.subr.bf16.mxu0 %v4053
    %4212 = vmatpush1.bf16.msra.mxu0 %v4052
    %4213 = vmatprep.subr.bf16.mxu0 %v4049
    %4214 = vmatpush1.bf16.msra.mxu0 %v4048
    %4215 = vmatprep.subr.bf16.mxu0 %v4045
    %4216 = vmatpush1.bf16.msra.mxu0 %v4044
    %4217 = vmatprep.subr.bf16.mxu0 %v4041
    %4218 = vmatpush1.bf16.msra.mxu0 %v4040
    %4219 = vmatprep.subr.bf16.mxu0 %v4037
    %4220 = vmatpush1.bf16.msra.mxu0 %v4036
    %4221 = vmatprep.subr.bf16.mxu0 %v4097
    %4222 = vmatpush2.bf16.msra.mxu0 %v4096
    %4223 = vmatprep.subr.bf16.mxu0 %v4093
    %4224 = vmatpush2.bf16.msra.mxu0 %v4092
    %4225 = vmatprep.subr.bf16.mxu0 %v4089
    %4226 = vmatpush2.bf16.msra.mxu0 %v4088
    %4227 = vmatprep.subr.bf16.mxu0 %v4085
    %4228 = vmatpush2.bf16.msra.mxu0 %v4084
    %4229 = vmatprep.subr.bf16.mxu0 %v4081
    %4230 = vmatpush2.bf16.msra.mxu0 %v4080
    %4231 = vmatprep.subr.bf16.mxu0 %v4077
    %4232 = vmatpush2.bf16.msra.mxu0 %v4076
    %4233 = vmatprep.subr.bf16.mxu0 %v4073
    %4234 = vmatpush2.bf16.msra.mxu0 %v4072
    %4235 = vmatprep.subr.bf16.mxu0 %v4069
    %4236 = vmatpush2.bf16.msra.mxu0 %v4068
    %4237 = vmatprep.mubr.bf16.mxu0 %v3617
    %4238 = vmatmul.mubr.bf16.gmra.mxu0 %v3755
    %v4239 = vpop.f32.mrf.mxu0
    %v4240 = vadd.f32 %v3833, %v4239
    %v4241 = vpop.f32.mrf.mxu0
    %v4242 = vadd.f32 %v3837, %v4241
    %v4243 = vpop.f32.mrf.mxu0
    %v4244 = vadd.f32 %v3833, %v4243
    %v4245 = vpop.f32.mrf.mxu0
    %v4246 = vadd.f32 %v3837, %v4245
    %4247 = vdwg.mxu0
    %v4248 = vsub.f32 0.0, %v4197
    %v4249 = vsub.f32 0.0, %v4201
    %v4250 = vmul.f32 %v4248, 1.442695
    %v4251 = vpow.pop %v4250
    %v4252 = vmul.f32 %v4249, 1.442695
    %v4253 = vpow.pop %v4252
    %v4254 = vadd.f32 %v4251, 1.0
    %v4255 = vadd.f32 %v4253, 1.0
    %v4256 = vrcp.pop %v4254
    %v4257 = vmul.f32 1.0, %v4256
    %v4258 = vrcp.pop %v4255
    %v4259 = vmul.f32 1.0, %v4258
    %v4260 = vsub.f32 0.0, %v4199
    %v4261 = vsub.f32 0.0, %v4203
    %v4262 = vmul.f32 %v4260, 1.442695
    %v4263 = vpow.pop %v4262
    %v4264 = vmul.f32 %v4261, 1.442695
    %v4265 = vpow.pop %v4264
    %v4266 = vadd.f32 %v4263, 1.0
    %v4267 = vadd.f32 %v4265, 1.0
    %v4268 = vrcp.pop %v4266
    %v4269 = vmul.f32 1.0, %v4268
    %v4270 = vrcp.pop %v4267
    %v4271 = vmul.f32 1.0, %v4270
    %v4272 = vtanh.pop %v4240
    %v4273 = vtanh.pop %v4244
    %v4274 = vsub.f32 0.0, %v4242
    %v4275 = vsub.f32 0.0, %v4246
    %v4276 = vmul.f32 %v4274, 1.442695
    %v4277 = vpow.pop %v4276
    %v4278 = vmul.f32 %v4275, 1.442695
    %v4279 = vpow.pop %v4278
    %v4280 = vadd.f32 %v4277, 1.0
    %v4281 = vadd.f32 %v4279, 1.0
    %v4282 = vrcp.pop %v4280
    %v4283 = vmul.f32 1.0, %v4282
    %v4284 = vrcp.pop %v4281
    %v4285 = vmul.f32 1.0, %v4284
    %v4286 = vmul.f32 %v4269, %v3611
    %v4287 = vmul.f32 %v4271, %v3612
    %v4288 = vmul.f32 %v4257, %v4272
    %v4289 = vmul.f32 %v4259, %v4273
    %v4290 = vadd.f32 %v4286, %v4288
    %v4291 = vadd.f32 %v4287, %v4289
    %v4292 = vtanh.pop %v4290
    %v4293 = vtanh.pop %v4291
    %v4294 = vmul.f32 %v4283, %v4292
    %v4295 = vmul.f32 %v4285, %v4293
    %v4296 = vpack.c.bf16 %v4295, %v4294
    %v4297 = vld [vmem:[#allocation13] sm:$0xf]
    %v4298 = vld [vmem:[#allocation13 + $0x4] sm:$0xf]
    %v4299 = vld [vmem:[#allocation13 + $0x8] sm:$0xf]
    %v4300 = vld [vmem:[#allocation13 + $0xc] sm:$0xf]
    %v4301 = vld [vmem:[#allocation13 + $0x10] sm:$0xf]
    %v4302 = vld [vmem:[#allocation13 + $0x14] sm:$0xf]
    %v4303 = vld [vmem:[#allocation13 + $0x18] sm:$0xf]
    %v4304 = vld [vmem:[#allocation13 + $0x1c] sm:$0xf]
    %v4305 = vld [vmem:[#allocation13 + $0x20] sm:$0xf]
    %v4306 = vld [vmem:[#allocation13 + $0x24] sm:$0xf]
    %v4307 = vld [vmem:[#allocation13 + $0x28] sm:$0xf]
    %v4308 = vld [vmem:[#allocation13 + $0x2c] sm:$0xf]
    %v4309 = vld [vmem:[#allocation13 + $0x30] sm:$0xf]
    %v4310 = vld [vmem:[#allocation13 + $0x34] sm:$0xf]
    %v4311 = vld [vmem:[#allocation13 + $0x38] sm:$0xf]
    %v4312 = vld [vmem:[#allocation13 + $0x3c] sm:$0xf]
    %v4313 = vld [vmem:[%s10] sm:$0x1]
    %v4315 = vlaneseq
    %v4316 = vshrl.u32 %v4315, 7
    %v4317 = vsub.s32 0, %v4316
    %v4318 = vrot.slane %v4313, %v4317
    %v4336 = vunpack.c.l.b16 %v4297
    %v4337 = vunpack.c.l.b16 %v4298
    %v4338 = vunpack.c.l.b16 %v4299
    %v4339 = vunpack.c.l.b16 %v4300
    %v4340 = vunpack.c.l.b16 %v4301
    %v4341 = vunpack.c.l.b16 %v4302
    %v4342 = vunpack.c.l.b16 %v4303
    %v4343 = vunpack.c.l.b16 %v4304
    %v4344 = vunpack.c.l.b16 %v4305
    %v4345 = vunpack.c.l.b16 %v4306
    %v4346 = vunpack.c.l.b16 %v4307
    %v4347 = vunpack.c.l.b16 %v4308
    %v4348 = vunpack.c.l.b16 %v4309
    %v4349 = vunpack.c.l.b16 %v4310
    %v4350 = vunpack.c.l.b16 %v4311
    %v4351 = vunpack.c.l.b16 %v4312
    %v4352 = vpack.c.b16 %v4337, %v4336
    %v4353 = vpack.c.b16 %v4339, %v4338
    %v4354 = vpack.c.b16 %v4341, %v4340
    %v4355 = vpack.c.b16 %v4343, %v4342
    %v4356 = vpack.c.b16 %v4345, %v4344
    %v4357 = vpack.c.b16 %v4347, %v4346
    %v4358 = vpack.c.b16 %v4349, %v4348
    %v4359 = vpack.c.b16 %v4351, %v4350
    %4368 = vmatprep.subr.bf16.mxu0 0
    %4369 = vmatpush1.bf16.msra.mxu0 %v4359
    %4370 = vmatprep.subr.bf16.mxu0 0
    %4371 = vmatpush1.bf16.msra.mxu0 %v4358
    %4372 = vmatprep.subr.bf16.mxu0 0
    %4373 = vmatpush1.bf16.msra.mxu0 %v4357
    %4374 = vmatprep.subr.bf16.mxu0 0
    %4375 = vmatpush1.bf16.msra.mxu0 %v4356
    %4376 = vmatprep.subr.bf16.mxu0 0
    %4377 = vmatpush1.bf16.msra.mxu0 %v4355
    %4378 = vmatprep.subr.bf16.mxu0 0
    %4379 = vmatpush1.bf16.msra.mxu0 %v4354
    %4380 = vmatprep.subr.bf16.mxu0 0
    %4381 = vmatpush1.bf16.msra.mxu0 %v4353
    %4382 = vmatprep.subr.bf16.mxu0 0
    %4383 = vmatpush1.bf16.msra.mxu0 %v4352
    %4384 = vmatprep.subr.bf16.mxu0 0
    %4385 = vmatpush2.bf16.msra.mxu0 0
    %4386 = vmatprep.subr.bf16.mxu0 0
    %4387 = vmatpush2.bf16.msra.mxu0 0
    %4388 = vmatprep.subr.bf16.mxu0 0
    %4389 = vmatpush2.bf16.msra.mxu0 0
    %4390 = vmatprep.subr.bf16.mxu0 0
    %4391 = vmatpush2.bf16.msra.mxu0 0
    %4392 = vmatprep.subr.bf16.mxu0 0
    %4393 = vmatpush2.bf16.msra.mxu0 0
    %4394 = vmatprep.subr.bf16.mxu0 0
    %4395 = vmatpush2.bf16.msra.mxu0 0
    %4396 = vmatprep.subr.bf16.mxu0 0
    %4397 = vmatpush2.bf16.msra.mxu0 0
    %4398 = vmatprep.subr.bf16.mxu0 0
    %4399 = vmatpush2.bf16.msra.mxu0 0
    %4400 = vmatprep.mubr.bf16.mxu0 0
    %4401 = vmatmul.mubr.bf16.gmra.mxu0 %v4296
    %v4402 = vpop.f32.mrf.mxu0
    %v4403 = vadd.f32 %v4318, %v4402
    %v4404 = vpop.f32.mrf.mxu0
    %v4405 = vpop.f32.mrf.mxu0
    %v4406 = vadd.f32 %v4318, %v4405
    %v4407 = vpop.f32.mrf.mxu0
    %4408 = vdwg.mxu0
    %4409 = vst [vmem:[#allocation14 + $0x20] sm:$0xff] %v4403
    %4410 = vst [vmem:[#allocation14 + $0x58] sm:$0xff] %v4406
    %4411 = vmax.xlane.f32.xlu0 %v4403
    %v4412 = vpop.xlane.xlu0 %4411
    %4413 = vmax.xlane.f32.xlu0 %v4406
    %v4414 = vpop.xlane.xlu0 %4413
    %vm4415 = vcmp.eq.f32.partialorder %v4403, %v4412
    %vm4416 = vcmp.eq.f32.partialorder %v4406, %v4414
    %v4417 = vsel %vm4415, %v1056, 128.0
    %v4418 = vsel %vm4416, %v1056, 128.0
    %4419 = vmin.xlane.f32.xlu0 %v4417
    %v4420 = vpop.xlane.xlu0 %4419
    %4421 = vmin.xlane.f32.xlu0 %v4418
    %v4422 = vpop.xlane.xlu0 %4421
    %v4423 = vcvt.f32.s32.to.zero.pseudo %v4420
    %v4424 = vcvt.f32.s32.to.zero.pseudo %v4422
    %vm4425 = vcmask 39968
    %4426 = vst.msk [vmem:[%s12] sm:$0xff] %vm4425, %v4423
    %4427 = vst.msk [vmem:[%s12 + $0x8] sm:$0xff] %vm4425, %v4424
    %vm4428 = vcmp.eq.s32.totalorder %v1055, %v4423
    %vm4429 = vcmp.eq.s32.totalorder %v1055, %v4424
    %v4430 = vsel %vm4428, 1, 0
    %v4431 = vsel %vm4429, 1, 0
    %v4432 = vcvt.s32.f32 %v4430
    %v4433 = vcvt.s32.f32 %v4431
    %v4434 = vpack.c.bf16 %v4433, %v4432
    %v4435 = vld [vmem:[#allocation11] sm:$0xff]
    %v4436 = vld [vmem:[#allocation11 + $0x8] sm:$0xff]
    %v4437 = vld [vmem:[#allocation11 + $0x10] sm:$0xff]
    %v4438 = vld [vmem:[#allocation11 + $0x18] sm:$0xff]
    %v4439 = vld [vmem:[#allocation11 + $0x20] sm:$0xff]
    %v4440 = vld [vmem:[#allocation11 + $0x28] sm:$0xff]
    %v4441 = vld [vmem:[#allocation11 + $0x30] sm:$0xff]
    %v4442 = vld [vmem:[#allocation11 + $0x38] sm:$0xff]
    %v4443 = vld [vmem:[#allocation11 + $0x40] sm:$0xff]
    %v4444 = vld [vmem:[#allocation11 + $0x48] sm:$0xff]
    %v4445 = vld [vmem:[#allocation11 + $0x50] sm:$0xff]
    %v4446 = vld [vmem:[#allocation11 + $0x58] sm:$0xff]
    %v4447 = vld [vmem:[#allocation11 + $0x60] sm:$0xff]
    %v4448 = vld [vmem:[#allocation11 + $0x68] sm:$0xff]
    %v4449 = vld [vmem:[#allocation11 + $0x70] sm:$0xff]
    %v4450 = vld [vmem:[#allocation11 + $0x78] sm:$0xff]
    %v4451 = vld [vmem:[#allocation11 + $0x80] sm:$0xff]
    %v4452 = vld [vmem:[#allocation11 + $0x88] sm:$0xff]
    %v4453 = vld [vmem:[#allocation11 + $0x90] sm:$0xff]
    %v4454 = vld [vmem:[#allocation11 + $0x98] sm:$0xff]
    %v4455 = vld [vmem:[#allocation11 + $0xa0] sm:$0xff]
    %v4456 = vld [vmem:[#allocation11 + $0xa8] sm:$0xff]
    %v4457 = vld [vmem:[#allocation11 + $0xb0] sm:$0xff]
    %v4458 = vld [vmem:[#allocation11 + $0xb8] sm:$0xff]
    %v4459 = vld [vmem:[#allocation11 + $0xc0] sm:$0xff]
    %v4460 = vld [vmem:[#allocation11 + $0xc8] sm:$0xff]
    %v4461 = vld [vmem:[#allocation11 + $0xd0] sm:$0xff]
    %v4462 = vld [vmem:[#allocation11 + $0xd8] sm:$0xff]
    %v4463 = vld [vmem:[#allocation11 + $0xe0] sm:$0xff]
    %v4464 = vld [vmem:[#allocation11 + $0xe8] sm:$0xff]
    %v4465 = vld [vmem:[#allocation11 + $0xf0] sm:$0xff]
    %v4466 = vld [vmem:[#allocation11 + $0xf8] sm:$0xff]
    %v4467 = vld [vmem:[#allocation11 + $0x100] sm:$0xff]
    %v4468 = vld [vmem:[#allocation11 + $0x108] sm:$0xff]
    %v4469 = vld [vmem:[#allocation11 + $0x110] sm:$0xff]
    %v4470 = vld [vmem:[#allocation11 + $0x118] sm:$0xff]
    %v4471 = vld [vmem:[#allocation11 + $0x120] sm:$0xff]
    %v4472 = vld [vmem:[#allocation11 + $0x128] sm:$0xff]
    %v4473 = vld [vmem:[#allocation11 + $0x130] sm:$0xff]
    %v4474 = vld [vmem:[#allocation11 + $0x138] sm:$0xff]
    %v4475 = vld [vmem:[#allocation11 + $0x140] sm:$0xff]
    %v4476 = vld [vmem:[#allocation11 + $0x148] sm:$0xff]
    %v4477 = vld [vmem:[#allocation11 + $0x150] sm:$0xff]
    %v4478 = vld [vmem:[#allocation11 + $0x158] sm:$0xff]
    %v4479 = vld [vmem:[#allocation11 + $0x160] sm:$0xff]
    %v4480 = vld [vmem:[#allocation11 + $0x168] sm:$0xff]
    %v4481 = vld [vmem:[#allocation11 + $0x170] sm:$0xff]
    %v4482 = vld [vmem:[#allocation11 + $0x178] sm:$0xff]
    %v4483 = vld [vmem:[#allocation11 + $0x180] sm:$0xff]
    %v4484 = vld [vmem:[#allocation11 + $0x188] sm:$0xff]
    %v4485 = vld [vmem:[#allocation11 + $0x190] sm:$0xff]
    %v4486 = vld [vmem:[#allocation11 + $0x198] sm:$0xff]
    %v4487 = vld [vmem:[#allocation11 + $0x1a0] sm:$0xff]
    %v4488 = vld [vmem:[#allocation11 + $0x1a8] sm:$0xff]
    %v4489 = vld [vmem:[#allocation11 + $0x1b0] sm:$0xff]
    %v4490 = vld [vmem:[#allocation11 + $0x1b8] sm:$0xff]
    %v4491 = vld [vmem:[#allocation11 + $0x1c0] sm:$0xff]
    %v4492 = vld [vmem:[#allocation11 + $0x1c8] sm:$0xff]
    %v4493 = vld [vmem:[#allocation11 + $0x1d0] sm:$0xff]
    %v4494 = vld [vmem:[#allocation11 + $0x1d8] sm:$0xff]
    %v4495 = vld [vmem:[#allocation11 + $0x1e0] sm:$0xff]
    %v4496 = vld [vmem:[#allocation11 + $0x1e8] sm:$0xff]
    %v4497 = vld [vmem:[#allocation11 + $0x1f0] sm:$0xff]
    %v4498 = vld [vmem:[#allocation11 + $0x1f8] sm:$0xff]
    %v4499 = vld [vmem:[%s8] sm:$0xf]
    %v4501 = vlaneseq
    %v4502 = vshrl.u32 %v4501, 7
    %v4503 = vsub.s32 0, %v4502
    %v4504 = vrot.slane %v4499, %v4503
    %v4505 = vlaneseq
    %v4506 = vshrl.u32 %v4505, 7
    %v4507 = vsub.s32 1, %v4506
    %v4508 = vrot.slane %v4499, %v4507
    %v4509 = vlaneseq
    %v4510 = vshrl.u32 %v4509, 7
    %v4511 = vsub.s32 2, %v4510
    %v4512 = vrot.slane %v4499, %v4511
    %v4513 = vlaneseq
    %v4514 = vshrl.u32 %v4513, 7
    %v4515 = vsub.s32 3, %v4514
    %v4516 = vrot.slane %v4499, %v4515
    %v4585 = vunpack.c.l.b16 %v4435
    %v4586 = vunpack.c.h.b16 %v4435
    %v4587 = vunpack.c.l.b16 %v4436
    %v4588 = vunpack.c.h.b16 %v4436
    %v4589 = vunpack.c.l.b16 %v4437
    %v4590 = vunpack.c.h.b16 %v4437
    %v4591 = vunpack.c.l.b16 %v4438
    %v4592 = vunpack.c.h.b16 %v4438
    %v4593 = vunpack.c.l.b16 %v4439
    %v4594 = vunpack.c.h.b16 %v4439
    %v4595 = vunpack.c.l.b16 %v4440
    %v4596 = vunpack.c.h.b16 %v4440
    %v4597 = vunpack.c.l.b16 %v4441
    %v4598 = vunpack.c.h.b16 %v4441
    %v4599 = vunpack.c.l.b16 %v4442
    %v4600 = vunpack.c.h.b16 %v4442
    %v4601 = vunpack.c.l.b16 %v4443
    %v4602 = vunpack.c.h.b16 %v4443
    %v4603 = vunpack.c.l.b16 %v4444
    %v4604 = vunpack.c.h.b16 %v4444
    %v4605 = vunpack.c.l.b16 %v4445
    %v4606 = vunpack.c.h.b16 %v4445
    %v4607 = vunpack.c.l.b16 %v4446
    %v4608 = vunpack.c.h.b16 %v4446
    %v4609 = vunpack.c.l.b16 %v4447
    %v4610 = vunpack.c.h.b16 %v4447
    %v4611 = vunpack.c.l.b16 %v4448
    %v4612 = vunpack.c.h.b16 %v4448
    %v4613 = vunpack.c.l.b16 %v4449
    %v4614 = vunpack.c.h.b16 %v4449
    %v4615 = vunpack.c.l.b16 %v4450
    %v4616 = vunpack.c.h.b16 %v4450
    %v4617 = vunpack.c.l.b16 %v4451
    %v4618 = vunpack.c.h.b16 %v4451
    %v4619 = vunpack.c.l.b16 %v4452
    %v4620 = vunpack.c.h.b16 %v4452
    %v4621 = vunpack.c.l.b16 %v4453
    %v4622 = vunpack.c.h.b16 %v4453
    %v4623 = vunpack.c.l.b16 %v4454
    %v4624 = vunpack.c.h.b16 %v4454
    %v4625 = vunpack.c.l.b16 %v4455
    %v4626 = vunpack.c.h.b16 %v4455
    %v4627 = vunpack.c.l.b16 %v4456
    %v4628 = vunpack.c.h.b16 %v4456
    %v4629 = vunpack.c.l.b16 %v4457
    %v4630 = vunpack.c.h.b16 %v4457
    %v4631 = vunpack.c.l.b16 %v4458
    %v4632 = vunpack.c.h.b16 %v4458
    %v4633 = vunpack.c.l.b16 %v4459
    %v4634 = vunpack.c.h.b16 %v4459
    %v4635 = vunpack.c.l.b16 %v4460
    %v4636 = vunpack.c.h.b16 %v4460
    %v4637 = vunpack.c.l.b16 %v4461
    %v4638 = vunpack.c.h.b16 %v4461
    %v4639 = vunpack.c.l.b16 %v4462
    %v4640 = vunpack.c.h.b16 %v4462
    %v4641 = vunpack.c.l.b16 %v4463
    %v4642 = vunpack.c.h.b16 %v4463
    %v4643 = vunpack.c.l.b16 %v4464
    %v4644 = vunpack.c.h.b16 %v4464
    %v4645 = vunpack.c.l.b16 %v4465
    %v4646 = vunpack.c.h.b16 %v4465
    %v4647 = vunpack.c.l.b16 %v4466
    %v4648 = vunpack.c.h.b16 %v4466
    %v4649 = vunpack.c.l.b16 %v4467
    %v4650 = vunpack.c.h.b16 %v4467
    %v4651 = vunpack.c.l.b16 %v4468
    %v4652 = vunpack.c.h.b16 %v4468
    %v4653 = vunpack.c.l.b16 %v4469
    %v4654 = vunpack.c.h.b16 %v4469
    %v4655 = vunpack.c.l.b16 %v4470
    %v4656 = vunpack.c.h.b16 %v4470
    %v4657 = vunpack.c.l.b16 %v4471
    %v4658 = vunpack.c.h.b16 %v4471
    %v4659 = vunpack.c.l.b16 %v4472
    %v4660 = vunpack.c.h.b16 %v4472
    %v4661 = vunpack.c.l.b16 %v4473
    %v4662 = vunpack.c.h.b16 %v4473
    %v4663 = vunpack.c.l.b16 %v4474
    %v4664 = vunpack.c.h.b16 %v4474
    %v4665 = vunpack.c.l.b16 %v4475
    %v4666 = vunpack.c.h.b16 %v4475
    %v4667 = vunpack.c.l.b16 %v4476
    %v4668 = vunpack.c.h.b16 %v4476
    %v4669 = vunpack.c.l.b16 %v4477
    %v4670 = vunpack.c.h.b16 %v4477
    %v4671 = vunpack.c.l.b16 %v4478
    %v4672 = vunpack.c.h.b16 %v4478
    %v4673 = vunpack.c.l.b16 %v4479
    %v4674 = vunpack.c.h.b16 %v4479
    %v4675 = vunpack.c.l.b16 %v4480
    %v4676 = vunpack.c.h.b16 %v4480
    %v4677 = vunpack.c.l.b16 %v4481
    %v4678 = vunpack.c.h.b16 %v4481
    %v4679 = vunpack.c.l.b16 %v4482
    %v4680 = vunpack.c.h.b16 %v4482
    %v4681 = vunpack.c.l.b16 %v4483
    %v4682 = vunpack.c.h.b16 %v4483
    %v4683 = vunpack.c.l.b16 %v4484
    %v4684 = vunpack.c.h.b16 %v4484
    %v4685 = vunpack.c.l.b16 %v4485
    %v4686 = vunpack.c.h.b16 %v4485
    %v4687 = vunpack.c.l.b16 %v4486
    %v4688 = vunpack.c.h.b16 %v4486
    %v4689 = vunpack.c.l.b16 %v4487
    %v4690 = vunpack.c.h.b16 %v4487
    %v4691 = vunpack.c.l.b16 %v4488
    %v4692 = vunpack.c.h.b16 %v4488
    %v4693 = vunpack.c.l.b16 %v4489
    %v4694 = vunpack.c.h.b16 %v4489
    %v4695 = vunpack.c.l.b16 %v4490
    %v4696 = vunpack.c.h.b16 %v4490
    %v4697 = vunpack.c.l.b16 %v4491
    %v4698 = vunpack.c.h.b16 %v4491
    %v4699 = vunpack.c.l.b16 %v4492
    %v4700 = vunpack.c.h.b16 %v4492
    %v4701 = vunpack.c.l.b16 %v4493
    %v4702 = vunpack.c.h.b16 %v4493
    %v4703 = vunpack.c.l.b16 %v4494
    %v4704 = vunpack.c.h.b16 %v4494
    %v4705 = vunpack.c.l.b16 %v4495
    %v4706 = vunpack.c.h.b16 %v4495
    %v4707 = vunpack.c.l.b16 %v4496
    %v4708 = vunpack.c.h.b16 %v4496
    %v4709 = vunpack.c.l.b16 %v4497
    %v4710 = vunpack.c.h.b16 %v4497
    %v4711 = vunpack.c.l.b16 %v4498
    %v4712 = vunpack.c.h.b16 %v4498
    %v4713 = vpack.c.b16 %v4589, %v4585
    %v4714 = vpack.c.b16 %v4590, %v4586
    %v4715 = vpack.c.b16 %v4591, %v4587
    %v4716 = vpack.c.b16 %v4592, %v4588
    %v4717 = vpack.c.b16 %v4597, %v4593
    %v4718 = vpack.c.b16 %v4598, %v4594
    %v4719 = vpack.c.b16 %v4599, %v4595
    %v4720 = vpack.c.b16 %v4600, %v4596
    %v4721 = vpack.c.b16 %v4605, %v4601
    %v4722 = vpack.c.b16 %v4606, %v4602
    %v4723 = vpack.c.b16 %v4607, %v4603
    %v4724 = vpack.c.b16 %v4608, %v4604
    %v4725 = vpack.c.b16 %v4613, %v4609
    %v4726 = vpack.c.b16 %v4614, %v4610
    %v4727 = vpack.c.b16 %v4615, %v4611
    %v4728 = vpack.c.b16 %v4616, %v4612
    %v4729 = vpack.c.b16 %v4621, %v4617
    %v4730 = vpack.c.b16 %v4622, %v4618
    %v4731 = vpack.c.b16 %v4623, %v4619
    %v4732 = vpack.c.b16 %v4624, %v4620
    %v4733 = vpack.c.b16 %v4629, %v4625
    %v4734 = vpack.c.b16 %v4630, %v4626
    %v4735 = vpack.c.b16 %v4631, %v4627
    %v4736 = vpack.c.b16 %v4632, %v4628
    %v4737 = vpack.c.b16 %v4637, %v4633
    %v4738 = vpack.c.b16 %v4638, %v4634
    %v4739 = vpack.c.b16 %v4639, %v4635
    %v4740 = vpack.c.b16 %v4640, %v4636
    %v4741 = vpack.c.b16 %v4645, %v4641
    %v4742 = vpack.c.b16 %v4646, %v4642
    %v4743 = vpack.c.b16 %v4647, %v4643
    %v4744 = vpack.c.b16 %v4648, %v4644
    %v4745 = vpack.c.b16 %v4653, %v4649
    %v4746 = vpack.c.b16 %v4654, %v4650
    %v4747 = vpack.c.b16 %v4655, %v4651
    %v4748 = vpack.c.b16 %v4656, %v4652
    %v4749 = vpack.c.b16 %v4661, %v4657
    %v4750 = vpack.c.b16 %v4662, %v4658
    %v4751 = vpack.c.b16 %v4663, %v4659
    %v4752 = vpack.c.b16 %v4664, %v4660
    %v4753 = vpack.c.b16 %v4669, %v4665
    %v4754 = vpack.c.b16 %v4670, %v4666
    %v4755 = vpack.c.b16 %v4671, %v4667
    %v4756 = vpack.c.b16 %v4672, %v4668
    %v4757 = vpack.c.b16 %v4677, %v4673
    %v4758 = vpack.c.b16 %v4678, %v4674
    %v4759 = vpack.c.b16 %v4679, %v4675
    %v4760 = vpack.c.b16 %v4680, %v4676
    %v4761 = vpack.c.b16 %v4685, %v4681
    %v4762 = vpack.c.b16 %v4686, %v4682
    %v4763 = vpack.c.b16 %v4687, %v4683
    %v4764 = vpack.c.b16 %v4688, %v4684
    %v4765 = vpack.c.b16 %v4693, %v4689
    %v4766 = vpack.c.b16 %v4694, %v4690
    %v4767 = vpack.c.b16 %v4695, %v4691
    %v4768 = vpack.c.b16 %v4696, %v4692
    %v4769 = vpack.c.b16 %v4701, %v4697
    %v4770 = vpack.c.b16 %v4702, %v4698
    %v4771 = vpack.c.b16 %v4703, %v4699
    %v4772 = vpack.c.b16 %v4704, %v4700
    %v4773 = vpack.c.b16 %v4709, %v4705
    %v4774 = vpack.c.b16 %v4710, %v4706
    %v4775 = vpack.c.b16 %v4711, %v4707
    %v4776 = vpack.c.b16 %v4712, %v4708
    %4841 = vmatprep.subr.bf16.mxu0 %v4742
    %4842 = vmatpush1.bf16.msra.mxu0 %v4741
    %4843 = vmatprep.subr.bf16.mxu0 %v4738
    %4844 = vmatpush1.bf16.msra.mxu0 %v4737
    %4845 = vmatprep.subr.bf16.mxu0 %v4734
    %4846 = vmatpush1.bf16.msra.mxu0 %v4733
    %4847 = vmatprep.subr.bf16.mxu0 %v4730
    %4848 = vmatpush1.bf16.msra.mxu0 %v4729
    %4849 = vmatprep.subr.bf16.mxu0 %v4726
    %4850 = vmatpush1.bf16.msra.mxu0 %v4725
    %4851 = vmatprep.subr.bf16.mxu0 %v4722
    %4852 = vmatpush1.bf16.msra.mxu0 %v4721
    %4853 = vmatprep.subr.bf16.mxu0 %v4718
    %4854 = vmatpush1.bf16.msra.mxu0 %v4717
    %4855 = vmatprep.subr.bf16.mxu0 %v4714
    %4856 = vmatpush1.bf16.msra.mxu0 %v4713
    %4857 = vmatprep.subr.bf16.mxu0 %v4774
    %4858 = vmatpush2.bf16.msra.mxu0 %v4773
    %4859 = vmatprep.subr.bf16.mxu0 %v4770
    %4860 = vmatpush2.bf16.msra.mxu0 %v4769
    %4861 = vmatprep.subr.bf16.mxu0 %v4766
    %4862 = vmatpush2.bf16.msra.mxu0 %v4765
    %4863 = vmatprep.subr.bf16.mxu0 %v4762
    %4864 = vmatpush2.bf16.msra.mxu0 %v4761
    %4865 = vmatprep.subr.bf16.mxu0 %v4758
    %4866 = vmatpush2.bf16.msra.mxu0 %v4757
    %4867 = vmatprep.subr.bf16.mxu0 %v4754
    %4868 = vmatpush2.bf16.msra.mxu0 %v4753
    %4869 = vmatprep.subr.bf16.mxu0 %v4750
    %4870 = vmatpush2.bf16.msra.mxu0 %v4749
    %4871 = vmatprep.subr.bf16.mxu0 %v4746
    %4872 = vmatpush2.bf16.msra.mxu0 %v4745
    %4873 = vmatprep.mubr.bf16.mxu0 %v4296
    %4874 = vmatmul.mubr.bf16.gmra.mxu0 %v4434
    %v4875 = vpop.f32.mrf.mxu0
    %v4876 = vadd.f32 %v4504, %v4875
    %v4877 = vpop.f32.mrf.mxu0
    %v4878 = vadd.f32 %v4508, %v4877
    %v4879 = vpop.f32.mrf.mxu0
    %v4880 = vadd.f32 %v4504, %v4879
    %v4881 = vpop.f32.mrf.mxu0
    %v4882 = vadd.f32 %v4508, %v4881
    %4883 = vdwg.mxu0
    %4884 = vmatprep.subr.bf16.mxu0 %v4744
    %4885 = vmatpush1.bf16.msra.mxu0 %v4743
    %4886 = vmatprep.subr.bf16.mxu0 %v4740
    %4887 = vmatpush1.bf16.msra.mxu0 %v4739
    %4888 = vmatprep.subr.bf16.mxu0 %v4736
    %4889 = vmatpush1.bf16.msra.mxu0 %v4735
    %4890 = vmatprep.subr.bf16.mxu0 %v4732
    %4891 = vmatpush1.bf16.msra.mxu0 %v4731
    %4892 = vmatprep.subr.bf16.mxu0 %v4728
    %4893 = vmatpush1.bf16.msra.mxu0 %v4727
    %4894 = vmatprep.subr.bf16.mxu0 %v4724
    %4895 = vmatpush1.bf16.msra.mxu0 %v4723
    %4896 = vmatprep.subr.bf16.mxu0 %v4720
    %4897 = vmatpush1.bf16.msra.mxu0 %v4719
    %4898 = vmatprep.subr.bf16.mxu0 %v4716
    %4899 = vmatpush1.bf16.msra.mxu0 %v4715
    %4900 = vmatprep.subr.bf16.mxu0 %v4776
    %4901 = vmatpush2.bf16.msra.mxu0 %v4775
    %4902 = vmatprep.subr.bf16.mxu0 %v4772
    %4903 = vmatpush2.bf16.msra.mxu0 %v4771
    %4904 = vmatprep.subr.bf16.mxu0 %v4768
    %4905 = vmatpush2.bf16.msra.mxu0 %v4767
    %4906 = vmatprep.subr.bf16.mxu0 %v4764
    %4907 = vmatpush2.bf16.msra.mxu0 %v4763
    %4908 = vmatprep.subr.bf16.mxu0 %v4760
    %4909 = vmatpush2.bf16.msra.mxu0 %v4759
    %4910 = vmatprep.subr.bf16.mxu0 %v4756
    %4911 = vmatpush2.bf16.msra.mxu0 %v4755
    %4912 = vmatprep.subr.bf16.mxu0 %v4752
    %4913 = vmatpush2.bf16.msra.mxu0 %v4751
    %4914 = vmatprep.subr.bf16.mxu0 %v4748
    %4915 = vmatpush2.bf16.msra.mxu0 %v4747
    %4916 = vmatprep.mubr.bf16.mxu0 %v4296
    %4917 = vmatmul.mubr.bf16.gmra.mxu0 %v4434
    %v4918 = vpop.f32.mrf.mxu0
    %v4919 = vadd.f32 %v4512, %v4918
    %v4920 = vpop.f32.mrf.mxu0
    %v4921 = vadd.f32 %v4516, %v4920
    %v4922 = vpop.f32.mrf.mxu0
    %v4923 = vadd.f32 %v4512, %v4922
    %v4924 = vpop.f32.mrf.mxu0
    %v4925 = vadd.f32 %v4516, %v4924
    %4926 = vdwg.mxu0
    %v4927 = vsub.f32 0.0, %v4876
    %v4928 = vsub.f32 0.0, %v4880
    %v4929 = vmul.f32 %v4927, 1.442695
    %v4930 = vpow.pop %v4929
    %v4931 = vmul.f32 %v4928, 1.442695
    %v4932 = vpow.pop %v4931
    %v4933 = vadd.f32 %v4930, 1.0
    %v4934 = vadd.f32 %v4932, 1.0
    %v4935 = vrcp.pop %v4933
    %v4936 = vmul.f32 1.0, %v4935
    %v4937 = vrcp.pop %v4934
    %v4938 = vmul.f32 1.0, %v4937
    %v4939 = vsub.f32 0.0, %v4878
    %v4940 = vsub.f32 0.0, %v4882
    %v4941 = vmul.f32 %v4939, 1.442695
    %v4942 = vpow.pop %v4941
    %v4943 = vmul.f32 %v4940, 1.442695
    %v4944 = vpow.pop %v4943
    %v4945 = vadd.f32 %v4942, 1.0
    %v4946 = vadd.f32 %v4944, 1.0
    %v4947 = vrcp.pop %v4945
    %v4948 = vmul.f32 1.0, %v4947
    %v4949 = vrcp.pop %v4946
    %v4950 = vmul.f32 1.0, %v4949
    %v4951 = vtanh.pop %v4919
    %v4952 = vtanh.pop %v4923
    %v4953 = vsub.f32 0.0, %v4921
    %v4954 = vsub.f32 0.0, %v4925
    %v4955 = vmul.f32 %v4953, 1.442695
    %v4956 = vpow.pop %v4955
    %v4957 = vmul.f32 %v4954, 1.442695
    %v4958 = vpow.pop %v4957
    %v4959 = vadd.f32 %v4956, 1.0
    %v4960 = vadd.f32 %v4958, 1.0
    %v4961 = vrcp.pop %v4959
    %v4962 = vmul.f32 1.0, %v4961
    %v4963 = vrcp.pop %v4960
    %v4964 = vmul.f32 1.0, %v4963
    %v4965 = vmul.f32 %v4948, %v4290
    %v4966 = vmul.f32 %v4950, %v4291
    %v4967 = vmul.f32 %v4936, %v4951
    %v4968 = vmul.f32 %v4938, %v4952
    %v4969 = vadd.f32 %v4965, %v4967
    %v4970 = vadd.f32 %v4966, %v4968
    %v4971 = vtanh.pop %v4969
    %v4972 = vtanh.pop %v4970
    %v4973 = vmul.f32 %v4962, %v4971
    %v4974 = vmul.f32 %v4964, %v4972
    %v4975 = vpack.c.bf16 %v4974, %v4973
    %v4976 = vld [vmem:[#allocation13] sm:$0xf]
    %v4977 = vld [vmem:[#allocation13 + $0x4] sm:$0xf]
    %v4978 = vld [vmem:[#allocation13 + $0x8] sm:$0xf]
    %v4979 = vld [vmem:[#allocation13 + $0xc] sm:$0xf]
    %v4980 = vld [vmem:[#allocation13 + $0x10] sm:$0xf]
    %v4981 = vld [vmem:[#allocation13 + $0x14] sm:$0xf]
    %v4982 = vld [vmem:[#allocation13 + $0x18] sm:$0xf]
    %v4983 = vld [vmem:[#allocation13 + $0x1c] sm:$0xf]
    %v4984 = vld [vmem:[#allocation13 + $0x20] sm:$0xf]
    %v4985 = vld [vmem:[#allocation13 + $0x24] sm:$0xf]
    %v4986 = vld [vmem:[#allocation13 + $0x28] sm:$0xf]
    %v4987 = vld [vmem:[#allocation13 + $0x2c] sm:$0xf]
    %v4988 = vld [vmem:[#allocation13 + $0x30] sm:$0xf]
    %v4989 = vld [vmem:[#allocation13 + $0x34] sm:$0xf]
    %v4990 = vld [vmem:[#allocation13 + $0x38] sm:$0xf]
    %v4991 = vld [vmem:[#allocation13 + $0x3c] sm:$0xf]
    %v4992 = vld [vmem:[%s10] sm:$0x1]
    %v4994 = vlaneseq
    %v4995 = vshrl.u32 %v4994, 7
    %v4996 = vsub.s32 0, %v4995
    %v4997 = vrot.slane %v4992, %v4996
    %v5015 = vunpack.c.l.b16 %v4976
    %v5016 = vunpack.c.l.b16 %v4977
    %v5017 = vunpack.c.l.b16 %v4978
    %v5018 = vunpack.c.l.b16 %v4979
    %v5019 = vunpack.c.l.b16 %v4980
    %v5020 = vunpack.c.l.b16 %v4981
    %v5021 = vunpack.c.l.b16 %v4982
    %v5022 = vunpack.c.l.b16 %v4983
    %v5023 = vunpack.c.l.b16 %v4984
    %v5024 = vunpack.c.l.b16 %v4985
    %v5025 = vunpack.c.l.b16 %v4986
    %v5026 = vunpack.c.l.b16 %v4987
    %v5027 = vunpack.c.l.b16 %v4988
    %v5028 = vunpack.c.l.b16 %v4989
    %v5029 = vunpack.c.l.b16 %v4990
    %v5030 = vunpack.c.l.b16 %v4991
    %v5031 = vpack.c.b16 %v5016, %v5015
    %v5032 = vpack.c.b16 %v5018, %v5017
    %v5033 = vpack.c.b16 %v5020, %v5019
    %v5034 = vpack.c.b16 %v5022, %v5021
    %v5035 = vpack.c.b16 %v5024, %v5023
    %v5036 = vpack.c.b16 %v5026, %v5025
    %v5037 = vpack.c.b16 %v5028, %v5027
    %v5038 = vpack.c.b16 %v5030, %v5029
    %5047 = vmatprep.subr.bf16.mxu0 0
    %5048 = vmatpush1.bf16.msra.mxu0 %v5038
    %5049 = vmatprep.subr.bf16.mxu0 0
    %5050 = vmatpush1.bf16.msra.mxu0 %v5037
    %5051 = vmatprep.subr.bf16.mxu0 0
    %5052 = vmatpush1.bf16.msra.mxu0 %v5036
    %5053 = vmatprep.subr.bf16.mxu0 0
    %5054 = vmatpush1.bf16.msra.mxu0 %v5035
    %5055 = vmatprep.subr.bf16.mxu0 0
    %5056 = vmatpush1.bf16.msra.mxu0 %v5034
    %5057 = vmatprep.subr.bf16.mxu0 0
    %5058 = vmatpush1.bf16.msra.mxu0 %v5033
    %5059 = vmatprep.subr.bf16.mxu0 0
    %5060 = vmatpush1.bf16.msra.mxu0 %v5032
    %5061 = vmatprep.subr.bf16.mxu0 0
    %5062 = vmatpush1.bf16.msra.mxu0 %v5031
    %5063 = vmatprep.subr.bf16.mxu0 0
    %5064 = vmatpush2.bf16.msra.mxu0 0
    %5065 = vmatprep.subr.bf16.mxu0 0
    %5066 = vmatpush2.bf16.msra.mxu0 0
    %5067 = vmatprep.subr.bf16.mxu0 0
    %5068 = vmatpush2.bf16.msra.mxu0 0
    %5069 = vmatprep.subr.bf16.mxu0 0
    %5070 = vmatpush2.bf16.msra.mxu0 0
    %5071 = vmatprep.subr.bf16.mxu0 0
    %5072 = vmatpush2.bf16.msra.mxu0 0
    %5073 = vmatprep.subr.bf16.mxu0 0
    %5074 = vmatpush2.bf16.msra.mxu0 0
    %5075 = vmatprep.subr.bf16.mxu0 0
    %5076 = vmatpush2.bf16.msra.mxu0 0
    %5077 = vmatprep.subr.bf16.mxu0 0
    %5078 = vmatpush2.bf16.msra.mxu0 0
    %5079 = vmatprep.mubr.bf16.mxu0 0
    %5080 = vmatmul.mubr.bf16.gmra.mxu0 %v4975
    %v5081 = vpop.f32.mrf.mxu0
    %v5082 = vadd.f32 %v4997, %v5081
    %v5083 = vpop.f32.mrf.mxu0
    %v5084 = vpop.f32.mrf.mxu0
    %v5085 = vadd.f32 %v4997, %v5084
    %v5086 = vpop.f32.mrf.mxu0
    %5087 = vdwg.mxu0
    %5088 = vst [vmem:[#allocation14 + $0x28] sm:$0xff] %v5082
    %5089 = vst [vmem:[#allocation14 + $0x60] sm:$0xff] %v5085
    %5090 = vmax.xlane.f32.xlu0 %v5082
    %v5091 = vpop.xlane.xlu0 %5090
    %5092 = vmax.xlane.f32.xlu0 %v5085
    %v5093 = vpop.xlane.xlu0 %5092
    %vm5094 = vcmp.eq.f32.partialorder %v5082, %v5091
    %vm5095 = vcmp.eq.f32.partialorder %v5085, %v5093
    %v5096 = vsel %vm5094, %v1056, 128.0
    %v5097 = vsel %vm5095, %v1056, 128.0
    %5098 = vmin.xlane.f32.xlu0 %v5096
    %v5099 = vpop.xlane.xlu0 %5098
    %5100 = vmin.xlane.f32.xlu0 %v5097
    %v5101 = vpop.xlane.xlu0 %5100
    %v5102 = vcvt.f32.s32.to.zero.pseudo %v5099
    %v5103 = vcvt.f32.s32.to.zero.pseudo %v5101
    %vm5104 = vcmask 48168
    %5105 = vst.msk [vmem:[%s12] sm:$0xff] %vm5104, %v5102
    %5106 = vst.msk [vmem:[%s12 + $0x8] sm:$0xff] %vm5104, %v5103
    %vm5107 = vcmp.eq.s32.totalorder %v1055, %v5102
    %vm5108 = vcmp.eq.s32.totalorder %v1055, %v5103
    %v5109 = vsel %vm5107, 1, 0
    %v5110 = vsel %vm5108, 1, 0
    %v5111 = vcvt.s32.f32 %v5109
    %v5112 = vcvt.s32.f32 %v5110
    %v5113 = vpack.c.bf16 %v5112, %v5111
    %v5114 = vld [vmem:[#allocation11] sm:$0xff]
    %v5115 = vld [vmem:[#allocation11 + $0x8] sm:$0xff]
    %v5116 = vld [vmem:[#allocation11 + $0x10] sm:$0xff]
    %v5117 = vld [vmem:[#allocation11 + $0x18] sm:$0xff]
    %v5118 = vld [vmem:[#allocation11 + $0x20] sm:$0xff]
    %v5119 = vld [vmem:[#allocation11 + $0x28] sm:$0xff]
    %v5120 = vld [vmem:[#allocation11 + $0x30] sm:$0xff]
    %v5121 = vld [vmem:[#allocation11 + $0x38] sm:$0xff]
    %v5122 = vld [vmem:[#allocation11 + $0x40] sm:$0xff]
    %v5123 = vld [vmem:[#allocation11 + $0x48] sm:$0xff]
    %v5124 = vld [vmem:[#allocation11 + $0x50] sm:$0xff]
    %v5125 = vld [vmem:[#allocation11 + $0x58] sm:$0xff]
    %v5126 = vld [vmem:[#allocation11 + $0x60] sm:$0xff]
    %v5127 = vld [vmem:[#allocation11 + $0x68] sm:$0xff]
    %v5128 = vld [vmem:[#allocation11 + $0x70] sm:$0xff]
    %v5129 = vld [vmem:[#allocation11 + $0x78] sm:$0xff]
    %v5130 = vld [vmem:[#allocation11 + $0x80] sm:$0xff]
    %v5131 = vld [vmem:[#allocation11 + $0x88] sm:$0xff]
    %v5132 = vld [vmem:[#allocation11 + $0x90] sm:$0xff]
    %v5133 = vld [vmem:[#allocation11 + $0x98] sm:$0xff]
    %v5134 = vld [vmem:[#allocation11 + $0xa0] sm:$0xff]
    %v5135 = vld [vmem:[#allocation11 + $0xa8] sm:$0xff]
    %v5136 = vld [vmem:[#allocation11 + $0xb0] sm:$0xff]
    %v5137 = vld [vmem:[#allocation11 + $0xb8] sm:$0xff]
    %v5138 = vld [vmem:[#allocation11 + $0xc0] sm:$0xff]
    %v5139 = vld [vmem:[#allocation11 + $0xc8] sm:$0xff]
    %v5140 = vld [vmem:[#allocation11 + $0xd0] sm:$0xff]
    %v5141 = vld [vmem:[#allocation11 + $0xd8] sm:$0xff]
    %v5142 = vld [vmem:[#allocation11 + $0xe0] sm:$0xff]
    %v5143 = vld [vmem:[#allocation11 + $0xe8] sm:$0xff]
    %v5144 = vld [vmem:[#allocation11 + $0xf0] sm:$0xff]
    %v5145 = vld [vmem:[#allocation11 + $0xf8] sm:$0xff]
    %v5146 = vld [vmem:[#allocation11 + $0x100] sm:$0xff]
    %v5147 = vld [vmem:[#allocation11 + $0x108] sm:$0xff]
    %v5148 = vld [vmem:[#allocation11 + $0x110] sm:$0xff]
    %v5149 = vld [vmem:[#allocation11 + $0x118] sm:$0xff]
    %v5150 = vld [vmem:[#allocation11 + $0x120] sm:$0xff]
    %v5151 = vld [vmem:[#allocation11 + $0x128] sm:$0xff]
    %v5152 = vld [vmem:[#allocation11 + $0x130] sm:$0xff]
    %v5153 = vld [vmem:[#allocation11 + $0x138] sm:$0xff]
    %v5154 = vld [vmem:[#allocation11 + $0x140] sm:$0xff]
    %v5155 = vld [vmem:[#allocation11 + $0x148] sm:$0xff]
    %v5156 = vld [vmem:[#allocation11 + $0x150] sm:$0xff]
    %v5157 = vld [vmem:[#allocation11 + $0x158] sm:$0xff]
    %v5158 = vld [vmem:[#allocation11 + $0x160] sm:$0xff]
    %v5159 = vld [vmem:[#allocation11 + $0x168] sm:$0xff]
    %v5160 = vld [vmem:[#allocation11 + $0x170] sm:$0xff]
    %v5161 = vld [vmem:[#allocation11 + $0x178] sm:$0xff]
    %v5162 = vld [vmem:[#allocation11 + $0x180] sm:$0xff]
    %v5163 = vld [vmem:[#allocation11 + $0x188] sm:$0xff]
    %v5164 = vld [vmem:[#allocation11 + $0x190] sm:$0xff]
    %v5165 = vld [vmem:[#allocation11 + $0x198] sm:$0xff]
    %v5166 = vld [vmem:[#allocation11 + $0x1a0] sm:$0xff]
    %v5167 = vld [vmem:[#allocation11 + $0x1a8] sm:$0xff]
    %v5168 = vld [vmem:[#allocation11 + $0x1b0] sm:$0xff]
    %v5169 = vld [vmem:[#allocation11 + $0x1b8] sm:$0xff]
    %v5170 = vld [vmem:[#allocation11 + $0x1c0] sm:$0xff]
    %v5171 = vld [vmem:[#allocation11 + $0x1c8] sm:$0xff]
    %v5172 = vld [vmem:[#allocation11 + $0x1d0] sm:$0xff]
    %v5173 = vld [vmem:[#allocation11 + $0x1d8] sm:$0xff]
    %v5174 = vld [vmem:[#allocation11 + $0x1e0] sm:$0xff]
    %v5175 = vld [vmem:[#allocation11 + $0x1e8] sm:$0xff]
    %v5176 = vld [vmem:[#allocation11 + $0x1f0] sm:$0xff]
    %v5177 = vld [vmem:[#allocation11 + $0x1f8] sm:$0xff]
    %v5178 = vld [vmem:[%s8] sm:$0xf]
    %v5180 = vlaneseq
    %v5181 = vshrl.u32 %v5180, 7
    %v5182 = vsub.s32 0, %v5181
    %v5183 = vrot.slane %v5178, %v5182
    %v5184 = vlaneseq
    %v5185 = vshrl.u32 %v5184, 7
    %v5186 = vsub.s32 1, %v5185
    %v5187 = vrot.slane %v5178, %v5186
    %v5188 = vlaneseq
    %v5189 = vshrl.u32 %v5188, 7
    %v5190 = vsub.s32 2, %v5189
    %v5191 = vrot.slane %v5178, %v5190
    %v5192 = vlaneseq
    %v5193 = vshrl.u32 %v5192, 7
    %v5194 = vsub.s32 3, %v5193
    %v5195 = vrot.slane %v5178, %v5194
    %v5264 = vunpack.c.l.b16 %v5114
    %v5265 = vunpack.c.h.b16 %v5114
    %v5266 = vunpack.c.l.b16 %v5115
    %v5267 = vunpack.c.h.b16 %v5115
    %v5268 = vunpack.c.l.b16 %v5116
    %v5269 = vunpack.c.h.b16 %v5116
    %v5270 = vunpack.c.l.b16 %v5117
    %v5271 = vunpack.c.h.b16 %v5117
    %v5272 = vunpack.c.l.b16 %v5118
    %v5273 = vunpack.c.h.b16 %v5118
    %v5274 = vunpack.c.l.b16 %v5119
    %v5275 = vunpack.c.h.b16 %v5119
    %v5276 = vunpack.c.l.b16 %v5120
    %v5277 = vunpack.c.h.b16 %v5120
    %v5278 = vunpack.c.l.b16 %v5121
    %v5279 = vunpack.c.h.b16 %v5121
    %v5280 = vunpack.c.l.b16 %v5122
    %v5281 = vunpack.c.h.b16 %v5122
    %v5282 = vunpack.c.l.b16 %v5123
    %v5283 = vunpack.c.h.b16 %v5123
    %v5284 = vunpack.c.l.b16 %v5124
    %v5285 = vunpack.c.h.b16 %v5124
    %v5286 = vunpack.c.l.b16 %v5125
    %v5287 = vunpack.c.h.b16 %v5125
    %v5288 = vunpack.c.l.b16 %v5126
    %v5289 = vunpack.c.h.b16 %v5126
    %v5290 = vunpack.c.l.b16 %v5127
    %v5291 = vunpack.c.h.b16 %v5127
    %v5292 = vunpack.c.l.b16 %v5128
    %v5293 = vunpack.c.h.b16 %v5128
    %v5294 = vunpack.c.l.b16 %v5129
    %v5295 = vunpack.c.h.b16 %v5129
    %v5296 = vunpack.c.l.b16 %v5130
    %v5297 = vunpack.c.h.b16 %v5130
    %v5298 = vunpack.c.l.b16 %v5131
    %v5299 = vunpack.c.h.b16 %v5131
    %v5300 = vunpack.c.l.b16 %v5132
    %v5301 = vunpack.c.h.b16 %v5132
    %v5302 = vunpack.c.l.b16 %v5133
    %v5303 = vunpack.c.h.b16 %v5133
    %v5304 = vunpack.c.l.b16 %v5134
    %v5305 = vunpack.c.h.b16 %v5134
    %v5306 = vunpack.c.l.b16 %v5135
    %v5307 = vunpack.c.h.b16 %v5135
    %v5308 = vunpack.c.l.b16 %v5136
    %v5309 = vunpack.c.h.b16 %v5136
    %v5310 = vunpack.c.l.b16 %v5137
    %v5311 = vunpack.c.h.b16 %v5137
    %v5312 = vunpack.c.l.b16 %v5138
    %v5313 = vunpack.c.h.b16 %v5138
    %v5314 = vunpack.c.l.b16 %v5139
    %v5315 = vunpack.c.h.b16 %v5139
    %v5316 = vunpack.c.l.b16 %v5140
    %v5317 = vunpack.c.h.b16 %v5140
    %v5318 = vunpack.c.l.b16 %v5141
    %v5319 = vunpack.c.h.b16 %v5141
    %v5320 = vunpack.c.l.b16 %v5142
    %v5321 = vunpack.c.h.b16 %v5142
    %v5322 = vunpack.c.l.b16 %v5143
    %v5323 = vunpack.c.h.b16 %v5143
    %v5324 = vunpack.c.l.b16 %v5144
    %v5325 = vunpack.c.h.b16 %v5144
    %v5326 = vunpack.c.l.b16 %v5145
    %v5327 = vunpack.c.h.b16 %v5145
    %v5328 = vunpack.c.l.b16 %v5146
    %v5329 = vunpack.c.h.b16 %v5146
    %v5330 = vunpack.c.l.b16 %v5147
    %v5331 = vunpack.c.h.b16 %v5147
    %v5332 = vunpack.c.l.b16 %v5148
    %v5333 = vunpack.c.h.b16 %v5148
    %v5334 = vunpack.c.l.b16 %v5149
    %v5335 = vunpack.c.h.b16 %v5149
    %v5336 = vunpack.c.l.b16 %v5150
    %v5337 = vunpack.c.h.b16 %v5150
    %v5338 = vunpack.c.l.b16 %v5151
    %v5339 = vunpack.c.h.b16 %v5151
    %v5340 = vunpack.c.l.b16 %v5152
    %v5341 = vunpack.c.h.b16 %v5152
    %v5342 = vunpack.c.l.b16 %v5153
    %v5343 = vunpack.c.h.b16 %v5153
    %v5344 = vunpack.c.l.b16 %v5154
    %v5345 = vunpack.c.h.b16 %v5154
    %v5346 = vunpack.c.l.b16 %v5155
    %v5347 = vunpack.c.h.b16 %v5155
    %v5348 = vunpack.c.l.b16 %v5156
    %v5349 = vunpack.c.h.b16 %v5156
    %v5350 = vunpack.c.l.b16 %v5157
    %v5351 = vunpack.c.h.b16 %v5157
    %v5352 = vunpack.c.l.b16 %v5158
    %v5353 = vunpack.c.h.b16 %v5158
    %v5354 = vunpack.c.l.b16 %v5159
    %v5355 = vunpack.c.h.b16 %v5159
    %v5356 = vunpack.c.l.b16 %v5160
    %v5357 = vunpack.c.h.b16 %v5160
    %v5358 = vunpack.c.l.b16 %v5161
    %v5359 = vunpack.c.h.b16 %v5161
    %v5360 = vunpack.c.l.b16 %v5162
    %v5361 = vunpack.c.h.b16 %v5162
    %v5362 = vunpack.c.l.b16 %v5163
    %v5363 = vunpack.c.h.b16 %v5163
    %v5364 = vunpack.c.l.b16 %v5164
    %v5365 = vunpack.c.h.b16 %v5164
    %v5366 = vunpack.c.l.b16 %v5165
    %v5367 = vunpack.c.h.b16 %v5165
    %v5368 = vunpack.c.l.b16 %v5166
    %v5369 = vunpack.c.h.b16 %v5166
    %v5370 = vunpack.c.l.b16 %v5167
    %v5371 = vunpack.c.h.b16 %v5167
    %v5372 = vunpack.c.l.b16 %v5168
    %v5373 = vunpack.c.h.b16 %v5168
    %v5374 = vunpack.c.l.b16 %v5169
    %v5375 = vunpack.c.h.b16 %v5169
    %v5376 = vunpack.c.l.b16 %v5170
    %v5377 = vunpack.c.h.b16 %v5170
    %v5378 = vunpack.c.l.b16 %v5171
    %v5379 = vunpack.c.h.b16 %v5171
    %v5380 = vunpack.c.l.b16 %v5172
    %v5381 = vunpack.c.h.b16 %v5172
    %v5382 = vunpack.c.l.b16 %v5173
    %v5383 = vunpack.c.h.b16 %v5173
    %v5384 = vunpack.c.l.b16 %v5174
    %v5385 = vunpack.c.h.b16 %v5174
    %v5386 = vunpack.c.l.b16 %v5175
    %v5387 = vunpack.c.h.b16 %v5175
    %v5388 = vunpack.c.l.b16 %v5176
    %v5389 = vunpack.c.h.b16 %v5176
    %v5390 = vunpack.c.l.b16 %v5177
    %v5391 = vunpack.c.h.b16 %v5177
    %v5392 = vpack.c.b16 %v5268, %v5264
    %v5393 = vpack.c.b16 %v5269, %v5265
    %v5394 = vpack.c.b16 %v5270, %v5266
    %v5395 = vpack.c.b16 %v5271, %v5267
    %v5396 = vpack.c.b16 %v5276, %v5272
    %v5397 = vpack.c.b16 %v5277, %v5273
    %v5398 = vpack.c.b16 %v5278, %v5274
    %v5399 = vpack.c.b16 %v5279, %v5275
    %v5400 = vpack.c.b16 %v5284, %v5280
    %v5401 = vpack.c.b16 %v5285, %v5281
    %v5402 = vpack.c.b16 %v5286, %v5282
    %v5403 = vpack.c.b16 %v5287, %v5283
    %v5404 = vpack.c.b16 %v5292, %v5288
    %v5405 = vpack.c.b16 %v5293, %v5289
    %v5406 = vpack.c.b16 %v5294, %v5290
    %v5407 = vpack.c.b16 %v5295, %v5291
    %v5408 = vpack.c.b16 %v5300, %v5296
    %v5409 = vpack.c.b16 %v5301, %v5297
    %v5410 = vpack.c.b16 %v5302, %v5298
    %v5411 = vpack.c.b16 %v5303, %v5299
    %v5412 = vpack.c.b16 %v5308, %v5304
    %v5413 = vpack.c.b16 %v5309, %v5305
    %v5414 = vpack.c.b16 %v5310, %v5306
    %v5415 = vpack.c.b16 %v5311, %v5307
    %v5416 = vpack.c.b16 %v5316, %v5312
    %v5417 = vpack.c.b16 %v5317, %v5313
    %v5418 = vpack.c.b16 %v5318, %v5314
    %v5419 = vpack.c.b16 %v5319, %v5315
    %v5420 = vpack.c.b16 %v5324, %v5320
    %v5421 = vpack.c.b16 %v5325, %v5321
    %v5422 = vpack.c.b16 %v5326, %v5322
    %v5423 = vpack.c.b16 %v5327, %v5323
    %v5424 = vpack.c.b16 %v5332, %v5328
    %v5425 = vpack.c.b16 %v5333, %v5329
    %v5426 = vpack.c.b16 %v5334, %v5330
    %v5427 = vpack.c.b16 %v5335, %v5331
    %v5428 = vpack.c.b16 %v5340, %v5336
    %v5429 = vpack.c.b16 %v5341, %v5337
    %v5430 = vpack.c.b16 %v5342, %v5338
    %v5431 = vpack.c.b16 %v5343, %v5339
    %v5432 = vpack.c.b16 %v5348, %v5344
    %v5433 = vpack.c.b16 %v5349, %v5345
    %v5434 = vpack.c.b16 %v5350, %v5346
    %v5435 = vpack.c.b16 %v5351, %v5347
    %v5436 = vpack.c.b16 %v5356, %v5352
    %v5437 = vpack.c.b16 %v5357, %v5353
    %v5438 = vpack.c.b16 %v5358, %v5354
    %v5439 = vpack.c.b16 %v5359, %v5355
    %v5440 = vpack.c.b16 %v5364, %v5360
    %v5441 = vpack.c.b16 %v5365, %v5361
    %v5442 = vpack.c.b16 %v5366, %v5362
    %v5443 = vpack.c.b16 %v5367, %v5363
    %v5444 = vpack.c.b16 %v5372, %v5368
    %v5445 = vpack.c.b16 %v5373, %v5369
    %v5446 = vpack.c.b16 %v5374, %v5370
    %v5447 = vpack.c.b16 %v5375, %v5371
    %v5448 = vpack.c.b16 %v5380, %v5376
    %v5449 = vpack.c.b16 %v5381, %v5377
    %v5450 = vpack.c.b16 %v5382, %v5378
    %v5451 = vpack.c.b16 %v5383, %v5379
    %v5452 = vpack.c.b16 %v5388, %v5384
    %v5453 = vpack.c.b16 %v5389, %v5385
    %v5454 = vpack.c.b16 %v5390, %v5386
    %v5455 = vpack.c.b16 %v5391, %v5387
    %5520 = vmatprep.subr.bf16.mxu0 %v5421
    %5521 = vmatpush1.bf16.msra.mxu0 %v5420
    %5522 = vmatprep.subr.bf16.mxu0 %v5417
    %5523 = vmatpush1.bf16.msra.mxu0 %v5416
    %5524 = vmatprep.subr.bf16.mxu0 %v5413
    %5525 = vmatpush1.bf16.msra.mxu0 %v5412
    %5526 = vmatprep.subr.bf16.mxu0 %v5409
    %5527 = vmatpush1.bf16.msra.mxu0 %v5408
    %5528 = vmatprep.subr.bf16.mxu0 %v5405
    %5529 = vmatpush1.bf16.msra.mxu0 %v5404
    %5530 = vmatprep.subr.bf16.mxu0 %v5401
    %5531 = vmatpush1.bf16.msra.mxu0 %v5400
    %5532 = vmatprep.subr.bf16.mxu0 %v5397
    %5533 = vmatpush1.bf16.msra.mxu0 %v5396
    %5534 = vmatprep.subr.bf16.mxu0 %v5393
    %5535 = vmatpush1.bf16.msra.mxu0 %v5392
    %5536 = vmatprep.subr.bf16.mxu0 %v5453
    %5537 = vmatpush2.bf16.msra.mxu0 %v5452
    %5538 = vmatprep.subr.bf16.mxu0 %v5449
    %5539 = vmatpush2.bf16.msra.mxu0 %v5448
    %5540 = vmatprep.subr.bf16.mxu0 %v5445
    %5541 = vmatpush2.bf16.msra.mxu0 %v5444
    %5542 = vmatprep.subr.bf16.mxu0 %v5441
    %5543 = vmatpush2.bf16.msra.mxu0 %v5440
    %5544 = vmatprep.subr.bf16.mxu0 %v5437
    %5545 = vmatpush2.bf16.msra.mxu0 %v5436
    %5546 = vmatprep.subr.bf16.mxu0 %v5433
    %5547 = vmatpush2.bf16.msra.mxu0 %v5432
    %5548 = vmatprep.subr.bf16.mxu0 %v5429
    %5549 = vmatpush2.bf16.msra.mxu0 %v5428
    %5550 = vmatprep.subr.bf16.mxu0 %v5425
    %5551 = vmatpush2.bf16.msra.mxu0 %v5424
    %5552 = vmatprep.mubr.bf16.mxu0 %v4975
    %5553 = vmatmul.mubr.bf16.gmra.mxu0 %v5113
    %v5554 = vpop.f32.mrf.mxu0
    %v5555 = vadd.f32 %v5183, %v5554
    %v5556 = vpop.f32.mrf.mxu0
    %v5557 = vadd.f32 %v5187, %v5556
    %v5558 = vpop.f32.mrf.mxu0
    %v5559 = vadd.f32 %v5183, %v5558
    %v5560 = vpop.f32.mrf.mxu0
    %v5561 = vadd.f32 %v5187, %v5560
    %5562 = vdwg.mxu0
    %5563 = vmatprep.subr.bf16.mxu0 %v5423
    %5564 = vmatpush1.bf16.msra.mxu0 %v5422
    %5565 = vmatprep.subr.bf16.mxu0 %v5419
    %5566 = vmatpush1.bf16.msra.mxu0 %v5418
    %5567 = vmatprep.subr.bf16.mxu0 %v5415
    %5568 = vmatpush1.bf16.msra.mxu0 %v5414
    %5569 = vmatprep.subr.bf16.mxu0 %v5411
    %5570 = vmatpush1.bf16.msra.mxu0 %v5410
    %5571 = vmatprep.subr.bf16.mxu0 %v5407
    %5572 = vmatpush1.bf16.msra.mxu0 %v5406
    %5573 = vmatprep.subr.bf16.mxu0 %v5403
    %5574 = vmatpush1.bf16.msra.mxu0 %v5402
    %5575 = vmatprep.subr.bf16.mxu0 %v5399
    %5576 = vmatpush1.bf16.msra.mxu0 %v5398
    %5577 = vmatprep.subr.bf16.mxu0 %v5395
    %5578 = vmatpush1.bf16.msra.mxu0 %v5394
    %5579 = vmatprep.subr.bf16.mxu0 %v5455
    %5580 = vmatpush2.bf16.msra.mxu0 %v5454
    %5581 = vmatprep.subr.bf16.mxu0 %v5451
    %5582 = vmatpush2.bf16.msra.mxu0 %v5450
    %5583 = vmatprep.subr.bf16.mxu0 %v5447
    %5584 = vmatpush2.bf16.msra.mxu0 %v5446
    %5585 = vmatprep.subr.bf16.mxu0 %v5443
    %5586 = vmatpush2.bf16.msra.mxu0 %v5442
    %5587 = vmatprep.subr.bf16.mxu0 %v5439
    %5588 = vmatpush2.bf16.msra.mxu0 %v5438
    %5589 = vmatprep.subr.bf16.mxu0 %v5435
    %5590 = vmatpush2.bf16.msra.mxu0 %v5434
    %5591 = vmatprep.subr.bf16.mxu0 %v5431
    %5592 = vmatpush2.bf16.msra.mxu0 %v5430
    %5593 = vmatprep.subr.bf16.mxu0 %v5427
    %5594 = vmatpush2.bf16.msra.mxu0 %v5426
    %5595 = vmatprep.mubr.bf16.mxu0 %v4975
    %5596 = vmatmul.mubr.bf16.gmra.mxu0 %v5113
    %v5597 = vpop.f32.mrf.mxu0
    %v5598 = vadd.f32 %v5191, %v5597
    %v5599 = vpop.f32.mrf.mxu0
    %v5600 = vadd.f32 %v5195, %v5599
    %v5601 = vpop.f32.mrf.mxu0
    %v5602 = vadd.f32 %v5191, %v5601
    %v5603 = vpop.f32.mrf.mxu0
    %v5604 = vadd.f32 %v5195, %v5603
    %5605 = vdwg.mxu0
    %v5606 = vsub.f32 0.0, %v5555
    %v5607 = vsub.f32 0.0, %v5559
    %v5608 = vmul.f32 %v5606, 1.442695
    %v5609 = vpow.pop %v5608
    %v5610 = vmul.f32 %v5607, 1.442695
    %v5611 = vpow.pop %v5610
    %v5612 = vadd.f32 %v5609, 1.0
    %v5613 = vadd.f32 %v5611, 1.0
    %v5614 = vrcp.pop %v5612
    %v5615 = vmul.f32 1.0, %v5614
    %v5616 = vrcp.pop %v5613
    %v5617 = vmul.f32 1.0, %v5616
    %v5618 = vsub.f32 0.0, %v5557
    %v5619 = vsub.f32 0.0, %v5561
    %v5620 = vmul.f32 %v5618, 1.442695
    %v5621 = vpow.pop %v5620
    %v5622 = vmul.f32 %v5619, 1.442695
    %v5623 = vpow.pop %v5622
    %v5624 = vadd.f32 %v5621, 1.0
    %v5625 = vadd.f32 %v5623, 1.0
    %v5626 = vrcp.pop %v5624
    %v5627 = vmul.f32 1.0, %v5626
    %v5628 = vrcp.pop %v5625
    %v5629 = vmul.f32 1.0, %v5628
    %v5630 = vtanh.pop %v5598
    %v5631 = vtanh.pop %v5602
    %v5632 = vsub.f32 0.0, %v5600
    %v5633 = vsub.f32 0.0, %v5604
    %v5634 = vmul.f32 %v5632, 1.442695
    %v5635 = vpow.pop %v5634
    %v5636 = vmul.f32 %v5633, 1.442695
    %v5637 = vpow.pop %v5636
    %v5638 = vadd.f32 %v5635, 1.0
    %v5639 = vadd.f32 %v5637, 1.0
    %v5640 = vrcp.pop %v5638
    %v5641 = vmul.f32 1.0, %v5640
    %v5642 = vrcp.pop %v5639
    %v5643 = vmul.f32 1.0, %v5642
    %v5644 = vmul.f32 %v5627, %v4969
    %v5645 = vmul.f32 %v5629, %v4970
    %v5646 = vmul.f32 %v5615, %v5630
    %v5647 = vmul.f32 %v5617, %v5631
    %v5648 = vadd.f32 %v5644, %v5646
    %v5649 = vadd.f32 %v5645, %v5647
    %v5650 = vtanh.pop %v5648
    %v5651 = vtanh.pop %v5649
    %v5652 = vmul.f32 %v5641, %v5650
    %v5653 = vmul.f32 %v5643, %v5651
    %v5654 = vpack.c.bf16 %v5653, %v5652
    %v5655 = vld [vmem:[#allocation13] sm:$0xf]
    %v5656 = vld [vmem:[#allocation13 + $0x4] sm:$0xf]
    %v5657 = vld [vmem:[#allocation13 + $0x8] sm:$0xf]
    %v5658 = vld [vmem:[#allocation13 + $0xc] sm:$0xf]
    %v5659 = vld [vmem:[#allocation13 + $0x10] sm:$0xf]
    %v5660 = vld [vmem:[#allocation13 + $0x14] sm:$0xf]
    %v5661 = vld [vmem:[#allocation13 + $0x18] sm:$0xf]
    %v5662 = vld [vmem:[#allocation13 + $0x1c] sm:$0xf]
    %v5663 = vld [vmem:[#allocation13 + $0x20] sm:$0xf]
    %v5664 = vld [vmem:[#allocation13 + $0x24] sm:$0xf]
    %v5665 = vld [vmem:[#allocation13 + $0x28] sm:$0xf]
    %v5666 = vld [vmem:[#allocation13 + $0x2c] sm:$0xf]
    %v5667 = vld [vmem:[#allocation13 + $0x30] sm:$0xf]
    %v5668 = vld [vmem:[#allocation13 + $0x34] sm:$0xf]
    %v5669 = vld [vmem:[#allocation13 + $0x38] sm:$0xf]
    %v5670 = vld [vmem:[#allocation13 + $0x3c] sm:$0xf]
    %v5671 = vld [vmem:[%s10] sm:$0x1]
    %v5673 = vlaneseq
    %v5674 = vshrl.u32 %v5673, 7
    %v5675 = vsub.s32 0, %v5674
    %v5676 = vrot.slane %v5671, %v5675
    %v5694 = vunpack.c.l.b16 %v5655
    %v5695 = vunpack.c.l.b16 %v5656
    %v5696 = vunpack.c.l.b16 %v5657
    %v5697 = vunpack.c.l.b16 %v5658
    %v5698 = vunpack.c.l.b16 %v5659
    %v5699 = vunpack.c.l.b16 %v5660
    %v5700 = vunpack.c.l.b16 %v5661
    %v5701 = vunpack.c.l.b16 %v5662
    %v5702 = vunpack.c.l.b16 %v5663
    %v5703 = vunpack.c.l.b16 %v5664
    %v5704 = vunpack.c.l.b16 %v5665
    %v5705 = vunpack.c.l.b16 %v5666
    %v5706 = vunpack.c.l.b16 %v5667
    %v5707 = vunpack.c.l.b16 %v5668
    %v5708 = vunpack.c.l.b16 %v5669
    %v5709 = vunpack.c.l.b16 %v5670
    %v5710 = vpack.c.b16 %v5695, %v5694
    %v5711 = vpack.c.b16 %v5697, %v5696
    %v5712 = vpack.c.b16 %v5699, %v5698
    %v5713 = vpack.c.b16 %v5701, %v5700
    %v5714 = vpack.c.b16 %v5703, %v5702
    %v5715 = vpack.c.b16 %v5705, %v5704
    %v5716 = vpack.c.b16 %v5707, %v5706
    %v5717 = vpack.c.b16 %v5709, %v5708
    %5726 = vmatprep.subr.bf16.mxu0 0
    %5727 = vmatpush1.bf16.msra.mxu0 %v5717
    %5728 = vmatprep.subr.bf16.mxu0 0
    %5729 = vmatpush1.bf16.msra.mxu0 %v5716
    %5730 = vmatprep.subr.bf16.mxu0 0
    %5731 = vmatpush1.bf16.msra.mxu0 %v5715
    %5732 = vmatprep.subr.bf16.mxu0 0
    %5733 = vmatpush1.bf16.msra.mxu0 %v5714
    %5734 = vmatprep.subr.bf16.mxu0 0
    %5735 = vmatpush1.bf16.msra.mxu0 %v5713
    %5736 = vmatprep.subr.bf16.mxu0 0
    %5737 = vmatpush1.bf16.msra.mxu0 %v5712
    %5738 = vmatprep.subr.bf16.mxu0 0
    %5739 = vmatpush1.bf16.msra.mxu0 %v5711
    %5740 = vmatprep.subr.bf16.mxu0 0
    %5741 = vmatpush1.bf16.msra.mxu0 %v5710
    %5742 = vmatprep.subr.bf16.mxu0 0
    %5743 = vmatpush2.bf16.msra.mxu0 0
    %5744 = vmatprep.subr.bf16.mxu0 0
    %5745 = vmatpush2.bf16.msra.mxu0 0
    %5746 = vmatprep.subr.bf16.mxu0 0
    %5747 = vmatpush2.bf16.msra.mxu0 0
    %5748 = vmatprep.subr.bf16.mxu0 0
    %5749 = vmatpush2.bf16.msra.mxu0 0
    %5750 = vmatprep.subr.bf16.mxu0 0
    %5751 = vmatpush2.bf16.msra.mxu0 0
    %5752 = vmatprep.subr.bf16.mxu0 0
    %5753 = vmatpush2.bf16.msra.mxu0 0
    %5754 = vmatprep.subr.bf16.mxu0 0
    %5755 = vmatpush2.bf16.msra.mxu0 0
    %5756 = vmatprep.subr.bf16.mxu0 0
    %5757 = vmatpush2.bf16.msra.mxu0 0
    %5758 = vmatprep.mubr.bf16.mxu0 0
    %5759 = vmatmul.mubr.bf16.gmra.mxu0 %v5654
    %v5760 = vpop.f32.mrf.mxu0
    %v5761 = vadd.f32 %v5676, %v5760
    %v5762 = vpop.f32.mrf.mxu0
    %v5763 = vpop.f32.mrf.mxu0
    %v5764 = vadd.f32 %v5676, %v5763
    %v5765 = vpop.f32.mrf.mxu0
    %5766 = vdwg.mxu0
    %5767 = vst [vmem:[#allocation14 + $0x30] sm:$0xff] %v5761
    %5768 = vst [vmem:[#allocation14 + $0x68] sm:$0xff] %v5764
    %5769 = vmax.xlane.f32.xlu0 %v5761
    %v5770 = vpop.xlane.xlu0 %5769
    %5771 = vmax.xlane.f32.xlu0 %v5764
    %v5772 = vpop.xlane.xlu0 %5771
    %vm5773 = vcmp.eq.f32.partialorder %v5761, %v5770
    %vm5774 = vcmp.eq.f32.partialorder %v5764, %v5772
    %v5775 = vsel %vm5773, %v1056, 128.0
    %v5776 = vsel %vm5774, %v1056, 128.0
    %5777 = vmin.xlane.f32.xlu0 %v5775
    %v5778 = vpop.xlane.xlu0 %5777
    %5779 = vmin.xlane.f32.xlu0 %v5776
    %v5780 = vpop.xlane.xlu0 %5779
    %v5781 = vcvt.f32.s32.to.zero.pseudo %v5778
    %v5782 = vcvt.f32.s32.to.zero.pseudo %v5780
    %vm5783 = vcmask 56368
    %5784 = vst.msk [vmem:[%s12] sm:$0xff] %vm5783, %v5781
    %5785 = vst.msk [vmem:[%s12 + $0x8] sm:$0xff] %vm5783, %v5782
    // Predicated region
    $region74: #{tpu_custom_call.1} parent=1 // pred_check
      _
    $region75: #{tpu_custom_call.1} parent=1 // pred_check_branch
      %5787 = sbr.rel (0) target = $region77
    $region76: #{tpu_custom_call.1} parent=1 // pred_region
      %s5789 = ssub.s32 1792, 1792
      %5790 = vsyncadd [#allocation4], %s5789
      %s5791 = sshll.u32 [#allocation14], 4
      %s5792 = int_to_ptr.vmem [resolvable:$true] %s5791
      %5797 = dma.vmem_to_hbm [thread:$0]  %s5792, 1792, %s11, [#allocation4], 896, 896, 56
    $region77: #{tpu_custom_call.1} parent=1 // pred_fallthru
      _
    // Predicated region
    $region78: #{tpu_custom_call.1} parent=1 // pred_check
      _
    $region79: #{tpu_custom_call.1} parent=1 // pred_check_branch
      %5799 = sbr.rel (0) target = $region81
    $region80: #{tpu_custom_call.1} parent=1 // pred_region
      _
    $region81: #{tpu_custom_call.1} parent=1 // pred_fallthru
      _
    // Predicated region
    $region82: #{tpu_custom_call.1} parent=1 // pred_check
      _
    $region83: #{tpu_custom_call.1} parent=1 // pred_check_branch
      %5801 = sbr.rel (0) target = $region85
    $region84: #{tpu_custom_call.1} parent=1 // pred_region
      %5802 = dma.done [#allocation4], 1792
    $region85: #{tpu_custom_call.1} parent=1 // pred_fallthru
      _
    // Predicated region
    $region86: #{tpu_custom_call.1} parent=1 // pred_check
      _
    $region87: #{tpu_custom_call.1} parent=1 // pred_check_branch
      %5804 = sbr.rel (0) target = $region89
    $region88: #{tpu_custom_call.1} parent=1 // pred_region
      _
    $region89: #{tpu_custom_call.1} parent=1 // pred_fallthru
      _
    %5805 = vsyncpa [#allocation3], 1
    %5806 = vsyncpa [#allocation6], 1
    %5807 = vsyncpa [#allocation9], 1
    %5808 = vsyncpa [#allocation12], 1
    %5809 = vsyncpa [#allocation4], 1

</llo_original>
